<compile_context>
chip_gen: v7x
topology: tpu7x:2x2x1
jax: 0.10.0
libtpu: 0.0.40
codegen_flags: <defaults>
</compile_context>

<pallas_src>
import functools

import jax
import jax.numpy as jnp
from jax.experimental import pallas as pl
from jax.experimental.pallas import tpu as pltpu


def _round_up(x, m):
    return ((x + m - 1) // m) * m


def _vmem_capacity_bytes():
    """Physical VMEM per TensorCore; falls back to the smallest (v7x, 64 MiB)."""
    try:
        info = pltpu.get_tpu_info()
        for name in ("vmem_capacity_bytes", "vmem_bytes", "vmem_size_bytes"):
            v = getattr(info, name, None)
            if isinstance(v, int) and 32 * 1024 * 1024 <= v <= 256 * 1024 * 1024:
                return v
    except Exception:
        pass
    return 64 * 1024 * 1024


def _vmem_estimate_bytes(th, Wp, Cp, Cnp):
    """Per-step VMEM: double-buffered blocks + scratch + main f32/bf16 temporaries."""
    r = th + 2
    blocks = 2 * (th * Wp * Cp * 4            # x tile block
                  + 2 * Wp * Cp * 4           # halo block
                  + th * Wp * Cp * 4          # out block
                  + Cp * Cnp * 2              # w1 (bf16)
                  + 9 * Cnp * Cp * 2          # w2 (bf16)
                  + 2 * (Cnp + Cp) * 4)       # BN scales / biases
    scratch = r * Wp * 3 * Cnp * 2            # im2col of y1 (bf16)
    temps = (r * Wp * Cp * 6                  # x_all (f32 + bf16 copy)
             + r * Wp * Cnp * 10              # y1 f32, y1b/left/right bf16
             + th * Wp * Cp * 8)              # conv2 acc + y2 (f32)
    return blocks + scratch + temps


def _pick_tile_h(H, N, fits):
    """Pick TH maximizing useful-row fraction H/(n_h*(TH+2)) under the VMEM budget,
    preferring >= 2 grid steps so both v7x TensorCores get work."""
    best_th, best_eff = 1, -1.0
    for th in range(1, min(H, 128) + 1):
        if not fits(th):
            continue
        n_h = -(-H // th)
        if N * n_h < 2 and th > 1 and N * H >= 2:
            continue                         # keep the second TensorCore busy
        eff = H / (n_h * (th + 2))
        if eff > best_eff + 1e-9 or (abs(eff - best_eff) <= 1e-9 and th > best_th):
            best_th, best_eff = th, eff
    return best_th


def _residual_block_kernel(x_ref, halo_ref, w1_ref, s1_ref, b1_ref,
                           w2_ref, s2_ref, b2_ref, out_ref, ycol_ref, *, W, rem):
    # x_ref/out_ref: (1, TH, Wp, Cp); halo_ref: (1, 2, Wp, Cp) = [row above | row below]
    TH, Wp, Cp = x_ref.shape[1], x_ref.shape[2], x_ref.shape[3]
    Cnp = w1_ref.shape[1]
    R = TH + 2
    i = pl.program_id(1)
    n_h = pl.num_programs(1)

    # --- conv1 (1x1) on [top halo | TH tile rows | bottom halo]: one bf16 MXU
    # matmul, f32 accumulate, fused BN + LeakyReLU(0.01). ---
    x2 = x_ref[...].reshape(TH * Wp, Cp)                        # f32, center rows
    hal = halo_ref[...].reshape(2 * Wp, Cp)                     # f32, halo rows
    x_all = jnp.concatenate([hal[:Wp], x2, hal[Wp:]], axis=0)   # (R*Wp, Cp)
    y1 = jnp.dot(x_all.astype(jnp.bfloat16), w1_ref[...],
                 preferred_element_type=jnp.float32)            # (R*Wp, Cnp)
    y1 = y1 * s1_ref[...] + b1_ref[...]
    y1 = jnp.where(y1 > 0, y1, 0.01 * y1)
    y1b = y1.astype(jnp.bfloat16).reshape(R, Wp, Cnp)

    # --- W-direction im2col [y1(w-1) | y1(w) | y1(w+1)] into a bf16 VMEM scratch.
    # Taps beyond the true W boundary are zero, so padded W lanes never leak in. ---
    zc = jnp.zeros((R, 1, Cnp), jnp.bfloat16)
    left = jnp.concatenate([zc, y1b[:, :Wp - 1, :]], axis=1)
    if W > 1:
        right = jnp.concatenate(
            [y1b[:, 1:W, :], jnp.zeros((R, Wp - W + 1, Cnp), jnp.bfloat16)], axis=1)
    else:
        right = jnp.zeros((R, Wp, Cnp), jnp.bfloat16)
    ycol_ref[:, 0:Cnp] = left.reshape(R * Wp, Cnp)
    ycol_ref[:, Cnp:2 * Cnp] = y1b.reshape(R * Wp, Cnp)
    ycol_ref[:, 2 * Cnp:3 * Cnp] = right.reshape(R * Wp, Cnp)

    # conv2's SAME zero padding along H: rows outside the real image (top halo of
    # tile 0; bottom halo + any H-remainder rows of the last tile) must be zero
    # *after* BN/activation -> overwrite them on the boundary tiles only.
    @pl.when(i == 0)
    def _():
        ycol_ref[pl.ds(0, Wp), :] = jnp.zeros((Wp, 3 * Cnp), jnp.bfloat16)

    @pl.when(i == n_h - 1)
    def _():
        nz = (rem + 1) * Wp
        ycol_ref[pl.ds((TH + 1 - rem) * Wp, nz), :] = jnp.zeros((nz, 3 * Cnp),
                                                                jnp.bfloat16)

    # --- conv2 (3x3): 3 MXU matmuls (one per dy), K = 3*Cnp, f32 accumulate. ---
    acc = jnp.zeros((TH * Wp, Cp), jnp.float32)
    for dy in range(3):                                   # static 3-tap unroll
        tap = ycol_ref[pl.ds(dy * Wp, TH * Wp), :]        # sublane-aligned slice
        acc = acc + jnp.dot(tap, w2_ref[dy], preferred_element_type=jnp.float32)
    y2 = acc * s2_ref[...] + b2_ref[...]
    y2 = jnp.where(y2 > 0, y2, 0.01 * y2)

    # --- residual add in f32, lane-dense store. ---
    out_ref[...] = (x2 + y2).reshape(out_ref.shape).astype(out_ref.dtype)


def residual_block_pallas(x_nchw, w1_t, w2_t, s1, b1, s2, b2):
    """ResidualBlock forward.  x_nchw (N,C,H,W) f32; weights in PyTorch layout
    (w1: (Cn,C,1,1), w2: (C,Cn,3,3)); BN folded into per-channel scale/bias."""
    N, C, H, W = x_nchw.shape
    Cn = w1_t.shape[0]
    Cp = _round_up(C, 128)                    # lane-dense channel widths
    Cnp = _round_up(Cn, 128)
    Wp = _round_up(W, 8)                      # sublane-aligned width

    vmem_cap = _vmem_capacity_bytes()
    budget = int(0.6 * vmem_cap)              # headroom for compiler temporaries
    TH = _pick_tile_h(H, N,
                      lambda th: _vmem_estimate_bytes(th, Wp, Cp, Cnp) <= budget)
    n_h = -(-H // TH)
    Hp = n_h * TH
    rem = Hp - H                              # H-remainder rows in the last tile

    # NHWC + channel/width/height zero padding.
    # TODO(synk): keep the surrounding network NHWC / channel-padded end-to-end so
    # these wrapper-level transpose+pad HBM round trips disappear.
    x = jnp.transpose(x_nchw, (0, 2, 3, 1))
    x = jnp.pad(x, ((0, 0), (0, Hp - H), (0, Wp - W), (0, Cp - C)))

    # Per-tile halo rows (the single row just above / below each TH-row tile):
    # only 2/TH of x in extra HBM reads, and it lets the auto-pipeline fetch
    # (and double-buffer) everything -- no exposed manual DMA in the kernel.
    zrow = jnp.zeros((N, 1, Wp, Cp), x.dtype)
    if n_h > 1:
        top = jnp.concatenate([zrow, x[:, TH - 1:Hp - 1:TH]], axis=1)   # (N, n_h, Wp, Cp)
        bot = jnp.concatenate([x[:, TH:Hp:TH], zrow], axis=1)           # (N, n_h, Wp, Cp)
    else:
        top, bot = zrow, zrow
    halo = jnp.stack([top, bot], axis=2).reshape(N, 2 * n_h, Wp, Cp)

    # conv1 weight -> (Cp, Cnp) bf16, zero-padded lanes.
    w1_k = (jnp.zeros((Cp, Cnp), jnp.float32)
            .at[:C, :Cn].set(jnp.transpose(w1_t[:, :, 0, 0], (1, 0)))
            .astype(jnp.bfloat16))
    # conv2 weight -> (3 [dy], 3*Cnp [dx-major, ci-minor], Cp) bf16, zero-padded.
    w2_hwio = jnp.transpose(w2_t, (2, 3, 1, 0))                      # (3,3,Cn,C)
    w2_k = (jnp.zeros((3, 3, Cnp, Cp), jnp.float32)
            .at[:, :, :Cn, :C].set(w2_hwio)
            .reshape(3, 3 * Cnp, Cp)
            .astype(jnp.bfloat16))
    # Folded BN scale/bias; padded lanes are zero so padded channels stay zero.
    s1_k = jnp.zeros((1, Cnp), jnp.float32).at[0, :Cn].set(s1)
    b1_k = jnp.zeros((1, Cnp), jnp.float32).at[0, :Cn].set(b1)
    s2_k = jnp.zeros((1, Cp), jnp.float32).at[0, :C].set(s2)
    b2_k = jnp.zeros((1, Cp), jnp.float32).at[0, :C].set(b2)

    kernel = functools.partial(_residual_block_kernel, W=W, rem=rem)

    out = pl.pallas_call(
        kernel,
        out_shape=jax.ShapeDtypeStruct((N, Hp, Wp, Cp), jnp.float32),
        grid_spec=pltpu.PrefetchScalarGridSpec(
            num_scalar_prefetch=0,
            grid=(N, n_h),
            in_specs=[
                pl.BlockSpec((1, TH, Wp, Cp), lambda n, i: (n, i, 0, 0)),      # x tile
                pl.BlockSpec((1, 2, Wp, Cp), lambda n, i: (n, i, 0, 0)),       # halo rows
                pl.BlockSpec((Cp, Cnp), lambda n, i: (0, 0)),                  # w1
                pl.BlockSpec((1, Cnp), lambda n, i: (0, 0)),                   # s1
                pl.BlockSpec((1, Cnp), lambda n, i: (0, 0)),                   # b1
                pl.BlockSpec((3, 3 * Cnp, Cp), lambda n, i: (0, 0, 0)),        # w2
                pl.BlockSpec((1, Cp), lambda n, i: (0, 0)),                    # s2
                pl.BlockSpec((1, Cp), lambda n, i: (0, 0)),                    # b2
            ],
            out_specs=pl.BlockSpec((1, TH, Wp, Cp), lambda n, i: (n, i, 0, 0)),
            scratch_shapes=[
                pltpu.VMEM(((TH + 2) * Wp, 3 * Cnp), jnp.bfloat16),            # im2col of y1
            ],
        ),
        compiler_params=pltpu.CompilerParams(
            dimension_semantics=("parallel", "parallel"),
            vmem_limit_bytes=min(int(0.85 * vmem_cap), 100 * 1024 * 1024),
        ),
    )(x, halo, w1_k, s1_k, b1_k, w2_k, s2_k, b2_k)

    out = out[:, :H, :W, :C]                             # drop padded rows/cols/lanes
    return jnp.transpose(out, (0, 3, 1, 2))              # back to NCHW


def init_params(key, in_channels):
    """Deterministic synthetic parameters (PyTorch shapes), BN folded for eval."""
    C = in_channels
    Cn = C // 2
    eps = 1e-5
    ks = jax.random.split(key, 10)

    # conv1: nn.Conv2d(C, Cn, 1, 1, 0, bias=False) -> weight (Cn, C, 1, 1)
    w1_t = jax.random.normal(ks[0], (Cn, C, 1, 1), jnp.float32) * 0.1
    g1 = 1.0 + 0.1 * jax.random.normal(ks[1], (Cn,), jnp.float32)
    be1 = 0.1 * jax.random.normal(ks[2], (Cn,), jnp.float32)
    m1 = 0.1 * jax.random.normal(ks[3], (Cn,), jnp.float32)
    v1 = jax.random.uniform(ks[4], (Cn,), jnp.float32, minval=0.5, maxval=1.5)

    # conv2: nn.Conv2d(Cn, C, 3, 1, 1, bias=False) -> weight (C, Cn, 3, 3)
    w2_t = jax.random.normal(ks[5], (C, Cn, 3, 3), jnp.float32) * 0.1
    g2 = 1.0 + 0.1 * jax.random.normal(ks[6], (C,), jnp.float32)
    be2 = 0.1 * jax.random.normal(ks[7], (C,), jnp.float32)
    m2 = 0.1 * jax.random.normal(ks[8], (C,), jnp.float32)
    v2 = jax.random.uniform(ks[9], (C,), jnp.float32, minval=0.5, maxval=1.5)

    # Fold BN (inference): y = scale * conv(x) + bias
    s1 = g1 / jnp.sqrt(v1 + eps)
    b1 = be1 - m1 * s1
    s2 = g2 / jnp.sqrt(v2 + eps)
    b2 = be2 - m2 * s2
    return (w1_t, w2_t), (s1, b1, s2, b2)


def reference(x_nchw, w1_t, w2_t, s1, b1, s2, b2, conv_dtype=jnp.float32):
    """Pure-JAX reference mirroring PyTorch semantics (BN eval mode).
    conv_dtype=bf16 mirrors the kernel's bf16 MXU inputs (f32 accumulation)."""
    x = jnp.transpose(x_nchw, (0, 2, 3, 1))                  # NHWC
    dn = ("NHWC", "HWIO", "NHWC")
    y = jax.lax.conv_general_dilated(
        x.astype(conv_dtype),
        jnp.transpose(w1_t, (2, 3, 1, 0)).astype(conv_dtype),
        (1, 1), "VALID", dimension_numbers=dn,
        preferred_element_type=jnp.float32)
    y = y * s1 + b1
    y = jnp.where(y > 0, y, 0.01 * y)
    y = jax.lax.conv_general_dilated(
        y.astype(conv_dtype),
        jnp.transpose(w2_t, (2, 3, 1, 0)).astype(conv_dtype),
        (1, 1), "SAME", dimension_numbers=dn,
        preferred_element_type=jnp.float32)
    y = y * s2 + b2
    y = jnp.where(y > 0, y, 0.01 * y)
    return jnp.transpose(x + y, (0, 3, 1, 2))


if __name__ == "__main__":
    key = jax.random.PRNGKey(0)
    k_x, k_p, k_x2 = jax.random.split(key, 3)

    # Shape 1: small toy shape.
    N, C, H, W = 2, 4, 16, 16
    x = jax.random.normal(k_x, (N, C, H, W), jnp.float32)
    (w1_t, w2_t), (s1, b1, s2, b2) = init_params(k_p, C)

    out = jax.block_until_ready(residual_block_pallas(x, w1_t, w2_t, s1, b1, s2, b2))
    assert out.shape == (N, C, H, W)

    # Primary check: same arithmetic (bf16 conv inputs, f32 accumulation).
    ref_bf16 = reference(x, w1_t, w2_t, s1, b1, s2, b2, conv_dtype=jnp.bfloat16)
    assert jnp.allclose(out, ref_bf16, atol=1e-2, rtol=1e-2), "mismatch vs bf16 reference"
    # Sanity check vs. pure-f32 PyTorch semantics (bf16 MXU rounding only).
    ref_f32 = reference(x, w1_t, w2_t, s1, b1, s2, b2, conv_dtype=jnp.float32)
    assert jnp.allclose(out, ref_f32, atol=5e-2, rtol=5e-2), "mismatch vs f32 reference"

    # Shape 2: Darknet-like odd spatial size (exercises W-padding + H-remainder tiling).
    N2, C2, H2, W2 = 1, 4, 13, 13
    x2 = jax.random.normal(k_x2, (N2, C2, H2, W2), jnp.float32)
    out2 = jax.block_until_ready(residual_block_pallas(x2, w1_t, w2_t, s1, b1, s2, b2))
    assert out2.shape == (N2, C2, H2, W2)
    ref2 = reference(x2, w1_t, w2_t, s1, b1, s2, b2, conv_dtype=jnp.bfloat16)
    assert jnp.allclose(out2, ref2, atol=1e-2, rtol=1e-2), "mismatch vs bf16 reference (odd)"

    print("KERNEL_OK")
</pallas_src>

<mosaic_0001>
module attributes {stable_mosaic.version = 11 : i64} {
  func.func @_residual_block_kernel(%arg0: i32, %arg1: i32, %arg2: memref<1x16x16x128xf32, #tpu.memory_space<vmem>>, %arg3: memref<1x2x16x128xf32, #tpu.memory_space<vmem>>, %arg4: memref<128x128xbf16, #tpu.memory_space<vmem>>, %arg5: memref<1x128xf32, #tpu.memory_space<vmem>>, %arg6: memref<1x128xf32, #tpu.memory_space<vmem>>, %arg7: memref<3x384x128xbf16, #tpu.memory_space<vmem>>, %arg8: memref<1x128xf32, #tpu.memory_space<vmem>>, %arg9: memref<1x128xf32, #tpu.memory_space<vmem>>, %arg10: memref<1x16x16x128xf32, #tpu.memory_space<vmem>>, %arg11: memref<288x384xbf16, #tpu.memory_space<vmem>>) attributes {dimension_semantics = [#tpu.dimension_semantics<parallel>, #tpu.dimension_semantics<parallel>], iteration_bounds = array<i64: 2, 1>, scalar_prefetch = 0 : i64, scratch_operands = 1 : i64, tpu.core_type = #tpu.core_type<tc>, window_params = [{transform_indices = @transform_0, window_bounds = array<i64: 1, 16, 16, 128>}, {transform_indices = @transform_1, window_bounds = array<i64: 1, 2, 16, 128>}, {pipeline_mode = #tpu.pipeline_mode<synchronous>, transform_indices = @transform_2, window_bounds = array<i64: 128, 128>}, {pipeline_mode = #tpu.pipeline_mode<synchronous>, transform_indices = @transform_3, window_bounds = array<i64: 1, 128>}, {pipeline_mode = #tpu.pipeline_mode<synchronous>, transform_indices = @transform_4, window_bounds = array<i64: 1, 128>}, {pipeline_mode = #tpu.pipeline_mode<synchronous>, transform_indices = @transform_5, window_bounds = array<i64: 3, 384, 128>}, {pipeline_mode = #tpu.pipeline_mode<synchronous>, transform_indices = @transform_6, window_bounds = array<i64: 1, 128>}, {pipeline_mode = #tpu.pipeline_mode<synchronous>, transform_indices = @transform_7, window_bounds = array<i64: 1, 128>}, {transform_indices = @transform_8, window_bounds = array<i64: 1, 16, 16, 128>}]} {
    %c0 = arith.constant 0 : index
    %c0_0 = arith.constant 0 : index
    %c0_1 = arith.constant 0 : index
    %c0_2 = arith.constant 0 : index
    %0 = vector.load %arg2[%c0, %c0_0, %c0_1, %c0_2] : memref<1x16x16x128xf32, #tpu.memory_space<vmem>>, vector<1x16x16x128xf32>
    %1 = vector.shape_cast %0 : vector<1x16x16x128xf32> to vector<256x128xf32>
    %c0_3 = arith.constant 0 : index
    %c0_4 = arith.constant 0 : index
    %c0_5 = arith.constant 0 : index
    %c0_6 = arith.constant 0 : index
    %2 = vector.load %arg3[%c0_3, %c0_4, %c0_5, %c0_6] : memref<1x2x16x128xf32, #tpu.memory_space<vmem>>, vector<1x2x16x128xf32>
    %3 = vector.shape_cast %2 : vector<1x2x16x128xf32> to vector<32x128xf32>
    %4 = vector.extract_strided_slice %3 {offsets = [0, 0], sizes = [16, 128], strides = [1, 1]} : vector<32x128xf32> to vector<16x128xf32>
    %5 = vector.extract_strided_slice %3 {offsets = [16, 0], sizes = [16, 128], strides = [1, 1]} : vector<32x128xf32> to vector<16x128xf32>
    %6 = tpu.concatenate %4, %1, %5 in 0 : vector<16x128xf32>, vector<256x128xf32>, vector<16x128xf32> -> vector<288x128xf32>
    %7 = arith.truncf %6 : vector<288x128xf32> to vector<288x128xbf16>
    %c0_7 = arith.constant 0 : index
    %c0_8 = arith.constant 0 : index
    %8 = vector.load %arg4[%c0_7, %c0_8] : memref<128x128xbf16, #tpu.memory_space<vmem>>, vector<128x128xbf16>
    %cst = arith.constant dense<0.000000e+00> : vector<288x128xf32>
    %9 = tpu.matmul %7, %8, %cst {dimension_numbers = #tpu.dot_dimension_numbers<[1], [0], [0], [1], [0, 0, 1, 1], [], []>} : vector<288x128xbf16>, vector<128x128xbf16>, vector<288x128xf32> -> vector<288x128xf32>
    %c0_9 = arith.constant 0 : index
    %c0_10 = arith.constant 0 : index
    %10 = vector.load %arg5[%c0_9, %c0_10] : memref<1x128xf32, #tpu.memory_space<vmem>>, vector<1x128xf32>
    %11 = vector.broadcast %10 : vector<1x128xf32> to vector<288x128xf32>
    %12 = arith.mulf %9, %11 : vector<288x128xf32>
    %c0_11 = arith.constant 0 : index
    %c0_12 = arith.constant 0 : index
    %13 = vector.load %arg6[%c0_11, %c0_12] : memref<1x128xf32, #tpu.memory_space<vmem>>, vector<1x128xf32>
    %14 = vector.broadcast %13 : vector<1x128xf32> to vector<288x128xf32>
    %15 = arith.addf %12, %14 : vector<288x128xf32>
    %cst_13 = arith.constant 0.000000e+00 : f32
    %16 = vector.broadcast %cst_13 : f32 to vector<288x128xf32>
    %17 = arith.cmpf ogt, %15, %16 : vector<288x128xf32>
    %cst_14 = arith.constant 0.00999999977 : f32
    %18 = vector.broadcast %cst_14 : f32 to vector<288x128xf32>
    %19 = arith.mulf %18, %15 : vector<288x128xf32>
    %20 = arith.select %17, %15, %19 : vector<288x128xi1>, vector<288x128xf32>
    %21 = arith.truncf %20 : vector<288x128xf32> to vector<288x128xbf16>
    %22 = vector.shape_cast %21 : vector<288x128xbf16> to vector<18x16x128xbf16>
    %cst_15 = arith.constant 0.000000e+00 : bf16
    %23 = vector.broadcast %cst_15 : bf16 to vector<18x1x128xbf16>
    %24 = vector.extract_strided_slice %22 {offsets = [0, 0, 0], sizes = [18, 15, 128], strides = [1, 1, 1]} : vector<18x16x128xbf16> to vector<18x15x128xbf16>
    %25 = tpu.concatenate %23, %24 in 1 : vector<18x1x128xbf16>, vector<18x15x128xbf16> -> vector<18x16x128xbf16>
    %26 = vector.extract_strided_slice %22 {offsets = [0, 1, 0], sizes = [18, 15, 128], strides = [1, 1, 1]} : vector<18x16x128xbf16> to vector<18x15x128xbf16>
    %cst_16 = arith.constant 0.000000e+00 : bf16
    %27 = vector.broadcast %cst_16 : bf16 to vector<18x1x128xbf16>
    %28 = tpu.concatenate %26, %27 in 1 : vector<18x15x128xbf16>, vector<18x1x128xbf16> -> vector<18x16x128xbf16>
    %29 = vector.shape_cast %25 : vector<18x16x128xbf16> to vector<288x128xbf16>
    %c0_17 = arith.constant 0 : index
    %c0_18 = arith.constant 0 : index
    %30 = vector.load %arg11[%c0_17, %c0_18] : memref<288x384xbf16, #tpu.memory_space<vmem>>, vector<288x128xbf16>
    tpu.vector_store %arg11[%c0_17, %c0_18], %29 {strides = array<i32>} : memref<288x384xbf16, #tpu.memory_space<vmem>>, vector<288x128xbf16>,
    %31 = vector.shape_cast %22 : vector<18x16x128xbf16> to vector<288x128xbf16>
    %c0_19 = arith.constant 0 : index
    %c128 = arith.constant 128 : index
    %32 = vector.load %arg11[%c0_19, %c128] : memref<288x384xbf16, #tpu.memory_space<vmem>>, vector<288x128xbf16>
    tpu.vector_store %arg11[%c0_19, %c128], %31 {strides = array<i32>} : memref<288x384xbf16, #tpu.memory_space<vmem>>, vector<288x128xbf16>,
    %33 = vector.shape_cast %28 : vector<18x16x128xbf16> to vector<288x128xbf16>
    %c0_20 = arith.constant 0 : index
    %c256 = arith.constant 256 : index
    %34 = vector.load %arg11[%c0_20, %c256] : memref<288x384xbf16, #tpu.memory_space<vmem>>, vector<288x128xbf16>
    tpu.vector_store %arg11[%c0_20, %c256], %33 {strides = array<i32>} : memref<288x384xbf16, #tpu.memory_space<vmem>>, vector<288x128xbf16>,
    %c0_i32 = arith.constant 0 : i32
    %35 = arith.cmpi eq, %arg1, %c0_i32 : i32
    %36 = arith.extui %35 : i1 to i32
    %c0_i32_21 = arith.constant 0 : i32
    %37 = arith.cmpi ne, %36, %c0_i32_21 : i32
    scf.if %37 {
      %cst_49 = arith.constant 0.000000e+00 : bf16
      %71 = vector.broadcast %cst_49 : bf16 to vector<16x384xbf16>
      %c0_50 = arith.constant 0 : index
      %c0_51 = arith.constant 0 : index
      %72 = vector.load %arg11[%c0_50, %c0_51] : memref<288x384xbf16, #tpu.memory_space<vmem>>, vector<16x384xbf16>
      tpu.vector_store %arg11[%c0_50, %c0_51], %71 {strides = array<i32>} : memref<288x384xbf16, #tpu.memory_space<vmem>>, vector<16x384xbf16>,
    } else {
    }
    %c0_i32_22 = arith.constant 0 : i32
    %38 = arith.cmpi eq, %arg1, %c0_i32_22 : i32
    %39 = arith.extui %38 : i1 to i32
    %c0_i32_23 = arith.constant 0 : i32
    %40 = arith.cmpi ne, %39, %c0_i32_23 : i32
    scf.if %40 {
      %cst_49 = arith.constant 0.000000e+00 : bf16
      %71 = vector.broadcast %cst_49 : bf16 to vector<16x384xbf16>
      %c272 = arith.constant 272 : index
      %c0_50 = arith.constant 0 : index
      %72 = vector.load %arg11[%c272, %c0_50] : memref<288x384xbf16, #tpu.memory_space<vmem>>, vector<16x384xbf16>
      tpu.vector_store %arg11[%c272, %c0_50], %71 {strides = array<i32>} : memref<288x384xbf16, #tpu.memory_space<vmem>>, vector<16x384xbf16>,
    } else {
    }
    %cst_24 = arith.constant 0.000000e+00 : f32
    %41 = vector.broadcast %cst_24 : f32 to vector<256x128xf32>
    %c0_25 = arith.constant 0 : index
    %c0_26 = arith.constant 0 : index
    %42 = vector.load %arg11[%c0_25, %c0_26] : memref<288x384xbf16, #tpu.memory_space<vmem>>, vector<256x384xbf16>
    %c0_27 = arith.constant 0 : index
    %c0_28 = arith.constant 0 : index
    %c0_29 = arith.constant 0 : index
    %43 = vector.load %arg7[%c0_27, %c0_28, %c0_29] : memref<3x384x128xbf16, #tpu.memory_space<vmem>>, vector<1x384x128xbf16>
    %44 = vector.shape_cast %43 : vector<1x384x128xbf16> to vector<384x128xbf16>
    %cst_30 = arith.constant dense<0.000000e+00> : vector<256x128xf32>
    %45 = tpu.matmul %42, %44, %cst_30 {dimension_numbers = #tpu.dot_dimension_numbers<[1], [0], [0], [1], [0, 0, 1, 1], [], []>} : vector<256x384xbf16>, vector<384x128xbf16>, vector<256x128xf32> -> vector<256x128xf32>
    %46 = arith.addf %41, %45 : vector<256x128xf32>
    %c16 = arith.constant 16 : index
    %c0_31 = arith.constant 0 : index
    %47 = vector.load %arg11[%c16, %c0_31] : memref<288x384xbf16, #tpu.memory_space<vmem>>, vector<256x384xbf16>
    %c1 = arith.constant 1 : index
    %c0_32 = arith.constant 0 : index
    %c0_33 = arith.constant 0 : index
    %48 = vector.load %arg7[%c1, %c0_32, %c0_33] : memref<3x384x128xbf16, #tpu.memory_space<vmem>>, vector<1x384x128xbf16>
    %49 = vector.shape_cast %48 : vector<1x384x128xbf16> to vector<384x128xbf16>
    %cst_34 = arith.constant dense<0.000000e+00> : vector<256x128xf32>
    %50 = tpu.matmul %47, %49, %cst_34 {dimension_numbers = #tpu.dot_dimension_numbers<[1], [0], [0], [1], [0, 0, 1, 1], [], []>} : vector<256x384xbf16>, vector<384x128xbf16>, vector<256x128xf32> -> vector<256x128xf32>
    %51 = arith.addf %46, %50 : vector<256x128xf32>
    %c32 = arith.constant 32 : index
    %c0_35 = arith.constant 0 : index
    %52 = vector.load %arg11[%c32, %c0_35] : memref<288x384xbf16, #tpu.memory_space<vmem>>, vector<256x384xbf16>
    %c2 = arith.constant 2 : index
    %c0_36 = arith.constant 0 : index
    %c0_37 = arith.constant 0 : index
    %53 = vector.load %arg7[%c2, %c0_36, %c0_37] : memref<3x384x128xbf16, #tpu.memory_space<vmem>>, vector<1x384x128xbf16>
    %54 = vector.shape_cast %53 : vector<1x384x128xbf16> to vector<384x128xbf16>
    %cst_38 = arith.constant dense<0.000000e+00> : vector<256x128xf32>
    %55 = tpu.matmul %52, %54, %cst_38 {dimension_numbers = #tpu.dot_dimension_numbers<[1], [0], [0], [1], [0, 0, 1, 1], [], []>} : vector<256x384xbf16>, vector<384x128xbf16>, vector<256x128xf32> -> vector<256x128xf32>
    %56 = arith.addf %51, %55 : vector<256x128xf32>
    %c0_39 = arith.constant 0 : index
    %c0_40 = arith.constant 0 : index
    %57 = vector.load %arg8[%c0_39, %c0_40] : memref<1x128xf32, #tpu.memory_space<vmem>>, vector<1x128xf32>
    %58 = vector.broadcast %57 : vector<1x128xf32> to vector<256x128xf32>
    %59 = arith.mulf %56, %58 : vector<256x128xf32>
    %c0_41 = arith.constant 0 : index
    %c0_42 = arith.constant 0 : index
    %60 = vector.load %arg9[%c0_41, %c0_42] : memref<1x128xf32, #tpu.memory_space<vmem>>, vector<1x128xf32>
    %61 = vector.broadcast %60 : vector<1x128xf32> to vector<256x128xf32>
    %62 = arith.addf %59, %61 : vector<256x128xf32>
    %cst_43 = arith.constant 0.000000e+00 : f32
    %63 = vector.broadcast %cst_43 : f32 to vector<256x128xf32>
    %64 = arith.cmpf ogt, %62, %63 : vector<256x128xf32>
    %cst_44 = arith.constant 0.00999999977 : f32
    %65 = vector.broadcast %cst_44 : f32 to vector<256x128xf32>
    %66 = arith.mulf %65, %62 : vector<256x128xf32>
    %67 = arith.select %64, %62, %66 : vector<256x128xi1>, vector<256x128xf32>
    %68 = arith.addf %1, %67 : vector<256x128xf32>
    %69 = vector.shape_cast %68 : vector<256x128xf32> to vector<1x16x16x128xf32>
    %c0_45 = arith.constant 0 : index
    %c0_46 = arith.constant 0 : index
    %c0_47 = arith.constant 0 : index
    %c0_48 = arith.constant 0 : index
    %70 = vector.load %arg10[%c0_45, %c0_46, %c0_47, %c0_48] : memref<1x16x16x128xf32, #tpu.memory_space<vmem>>, vector<1x16x16x128xf32>
    tpu.vector_store %arg10[%c0_45, %c0_46, %c0_47, %c0_48], %69 {strides = array<i32>} : memref<1x16x16x128xf32, #tpu.memory_space<vmem>>, vector<1x16x16x128xf32>,
    return
  }
  func.func @transform_0(%arg0: i32, %arg1: i32) -> (i32, i32, i32, i32) {
    %c0_i32 = arith.constant 0 : i32
    %c0_i32_0 = arith.constant 0 : i32
    %c0_i32_1 = arith.constant 0 : i32
    return %arg0, %arg1, %c0_i32, %c0_i32_0 : i32, i32, i32, i32
  }
  func.func @transform_1(%arg0: i32, %arg1: i32) -> (i32, i32, i32, i32) {
    %c0_i32 = arith.constant 0 : i32
    %c0_i32_0 = arith.constant 0 : i32
    %c0_i32_1 = arith.constant 0 : i32
    return %arg0, %arg1, %c0_i32, %c0_i32_0 : i32, i32, i32, i32
  }
  func.func @transform_2(%arg0: i32, %arg1: i32) -> (i32, i32) {
    %c0_i32 = arith.constant 0 : i32
    %c0_i32_0 = arith.constant 0 : i32
    %c0_i32_1 = arith.constant 0 : i32
    return %c0_i32, %c0_i32_0 : i32, i32
  }
  func.func @transform_3(%arg0: i32, %arg1: i32) -> (i32, i32) {
    %c0_i32 = arith.constant 0 : i32
    %c0_i32_0 = arith.constant 0 : i32
    %c0_i32_1 = arith.constant 0 : i32
    return %c0_i32, %c0_i32_0 : i32, i32
  }
  func.func @transform_4(%arg0: i32, %arg1: i32) -> (i32, i32) {
    %c0_i32 = arith.constant 0 : i32
    %c0_i32_0 = arith.constant 0 : i32
    %c0_i32_1 = arith.constant 0 : i32
    return %c0_i32, %c0_i32_0 : i32, i32
  }
  func.func @transform_5(%arg0: i32, %arg1: i32) -> (i32, i32, i32) {
    %c0_i32 = arith.constant 0 : i32
    %c0_i32_0 = arith.constant 0 : i32
    %c0_i32_1 = arith.constant 0 : i32
    %c0_i32_2 = arith.constant 0 : i32
    return %c0_i32, %c0_i32_0, %c0_i32_1 : i32, i32, i32
  }
  func.func @transform_6(%arg0: i32, %arg1: i32) -> (i32, i32) {
    %c0_i32 = arith.constant 0 : i32
    %c0_i32_0 = arith.constant 0 : i32
    %c0_i32_1 = arith.constant 0 : i32
    return %c0_i32, %c0_i32_0 : i32, i32
  }
  func.func @transform_7(%arg0: i32, %arg1: i32) -> (i32, i32) {
    %c0_i32 = arith.constant 0 : i32
    %c0_i32_0 = arith.constant 0 : i32
    %c0_i32_1 = arith.constant 0 : i32
    return %c0_i32, %c0_i32_0 : i32, i32
  }
  func.func @transform_8(%arg0: i32, %arg1: i32) -> (i32, i32, i32, i32) {
    %c0_i32 = arith.constant 0 : i32
    %c0_i32_0 = arith.constant 0 : i32
    %c0_i32_1 = arith.constant 0 : i32
    return %arg0, %arg1, %c0_i32, %c0_i32_0 : i32, i32, i32, i32
  }
}

</mosaic_0001>

<llo_original>
// kernel: tpu_custom_call.1
$region0: #{tpu_custom_call.1}
  #allocation0 [shape = 'u32[]', space=smem, size = 0x4, offset = 0x4, fixed_abs, tag = 'smem constant byte address 0x4 - core index']
  #allocation1 [shape = 'u32[144,128]{1,0:T(1,128)}', space=vmem, size = 0x12000, scoped, tag = 'internal scratch']
  #allocation2 [shape = 'bf16[288,384]{1,0:T(16,128)(2,1)}', space=vmem, size = 0x36000, scoped, tag = 'scratch operand']
  %s0 = inlined_call_operand.hbm [shape: f32[2,16,16,128], index: 0, kind: input, shape index: {}]
  %s1 = inlined_call_operand.hbm [shape: f32[2,2,16,128], index: 1, kind: input, shape index: {}]
  %s2 = inlined_call_operand.hbm [shape: bf16[128,128], index: 2, kind: input, shape index: {}]
  %s3 = inlined_call_operand.vmem [shape: f32[1,128], index: 3, kind: input, shape index: {}]
  %s4 = inlined_call_operand.vmem [shape: f32[1,128], index: 4, kind: input, shape index: {}]
  %s5 = inlined_call_operand.hbm [shape: bf16[3,384,128], index: 5, kind: input, shape index: {}]
  %s6 = inlined_call_operand.vmem [shape: f32[1,128], index: 6, kind: input, shape index: {}]
  %s7 = inlined_call_operand.vmem [shape: f32[1,128], index: 7, kind: input, shape index: {}]
  %s8 = inlined_call_operand.hbm [shape: f32[2,16,16,128], index: 8, kind: output, shape index: {}]
  %s9 = sld [smem:[#allocation0]]
  $region85: #{tpu_custom_call.1} parent=0
    _
  %s11 = ssub.s32 1, %s9
  %s12 = scalar_select 0, %s11, %s9
  $region1: #{tpu_custom_call.1} parent=0
    #allocation3 [shape = 'u8[262144]{0}', space=vmem, size = 0x40000, scoped, tag = 'input window, operand 0']
    #allocation4 [shape = 's32[2]{0}', space=sflag, size = 0x8, scoped, tag = 'scoped memory for tpu_custom_call.1']
    #allocation5 [shape = 's32[2]{0}', space=sflag, size = 0x8, scoped, tag = 'scoped memory for tpu_custom_call.1']
    #allocation6 [shape = 'u8[32768]{0}', space=vmem, size = 0x8000, scoped, tag = 'input window, operand 1']
    #allocation7 [shape = 's32[2]{0}', space=sflag, size = 0x8, scoped, tag = 'scoped memory for tpu_custom_call.1']
    #allocation8 [shape = 'u8[32768]{0}', space=vmem, size = 0x8000, scoped, tag = 'input window, operand 2, single buffered']
    #allocation9 [shape = 'u8[294912]{0}', space=vmem, size = 0x48000, scoped, tag = 'input window, operand 5, single buffered']
    #allocation10 [shape = 's32[1]{0}', space=sflag, size = 0x4, scoped, tag = 'scoped memory for tpu_custom_call.1']
    #allocation11 [shape = 'u8[262144]{0}', space=vmem, size = 0x40000, scoped, tag = 'output window, operand 0']
    %13 = vsyncpa [#allocation4], 0
    %s14 = scalar_lea.sflag [#allocation4], 1
    %15 = vsyncpa %s14, 0
    %16 = vsyncpa [#allocation7], 0
    %s17 = scalar_lea.sflag [#allocation7], 1
    %18 = vsyncpa %s17, 0
    %19 = vsyncpa [#allocation10], 0
    %20 = vsyncpa [#allocation5], 0
    %s21 = scalar_lea.sflag [#allocation5], 1
    %22 = vsyncpa %s21, 0
    loop: start=0, step=1, limit=4
    $region2: #{tpu_custom_call.1} parent=1 // loop_pre_header
      _
    $region3: #{tpu_custom_call.1} parent=1 // loop_header
      %s24 = sphi 0, %s28
      %p25 = scmp.ge.s32.totalorder %s24, 4
      %s31 = sphi 0, %s43
      %s32 = sphi 0, %s39
      %s33 = sphi 0, %s31
      %s34 = sphi 0, %s32
      %s35 = sphi 0, %s33
      %s36 = sphi 0, %s34
      %s48 = sphi 0, %s50
      %s51 = sphi 0, %s48
      %s52 = sphi 0, %s51
      %s68 = sphi 0, %s52
      %s76 = sphi 0, %s78
      %s79 = sphi 0, %s76
      %s80 = sphi 0, %s79
      %s96 = sphi 0, %s80
      %s100 = sphi 0, %s100
      %s102 = sphi 0, %s100
      %s103 = sphi 0, %s102
      %s117 = sphi 0, %s103
      %s121 = sphi 0, %s121
      %s123 = sphi 0, %s121
      %s124 = sphi 0, %s123
      %s138 = sphi 0, %s124
      %s142 = sphi 0, %s142
      %s144 = sphi 0, %s142
      %s145 = sphi 0, %s144
      %s159 = sphi 0, %s145
      %s163 = sphi 0, %s163
      %s165 = sphi 0, %s163
      %s166 = sphi 0, %s165
      %s180 = sphi 0, %s166
      %s184 = sphi 0, %s184
      %s186 = sphi 0, %s184
      %s187 = sphi 0, %s186
      %s201 = sphi 0, %s187
      %s205 = sphi 0, %s205
      %s207 = sphi 0, %s205
      %s208 = sphi 0, %s207
      %s222 = sphi 0, %s208
      %s230 = sphi 0, %s232
      %s233 = sphi 0, %s230
      %s234 = sphi 0, %s233
      %s250 = sphi 0, %s234
    $region4: #{tpu_custom_call.1} parent=1 // loop_header_branch
      %27 = sbr.rel (%p25) target = $region8
    $region5: #{tpu_custom_call.1} parent=1 // loop_body
      %s29 = ssub.s32 %s24, 1
      %s30 = ssub.s32 %s24, 2
      %s37 = sadd.s32 1, %s32
      %p38 = scmp.ge.s32.totalorder %s37, 1
      %s39 = scalar_select %p38, 0, %s37
      %s40 = sadd.s32 1, %s31
      %s41 = scalar_select %p38, %s40, %s31
      %p42 = scmp.ge.s32.totalorder %s41, 2
      %s43 = scalar_select %p42, 0, %s41
      %s44 = ssub.s32 %s31, %s43
      %s45 = ssub.s32 %s32, %s39
      %s46 = sor.u32 %s44, %s45
      %p47 = scmp.eq.s32.totalorder %s46, 0
      %s49 = sadd.s32 %s48, 1
      %s50 = scalar_select %p47, %s48, %s49
      %p53 = pneg %p47
      %p54 = scmp.eq.s32.totalorder %s24, 1
      %p55 = por %p53, %p54
      %p56 = scmp.ne.s32.totalorder %s48, %s51
      %p57 = scmp.eq.s32.totalorder %s24, 0
      %p58 = por %p56, %p57
      %p59 = scmp.ne.s32.totalorder %s48, %s51
      %p60 = scmp.eq.s32.totalorder %s29, 1
      %p61 = por %p59, %p60
      %p62 = scmp.ne.s32.totalorder %s51, %s52
      %p63 = scmp.eq.s32.totalorder %s29, 0
      %p64 = por %p62, %p63
      %p65 = scmp.ne.s32.totalorder %s51, %s52
      %p66 = scmp.eq.s32.totalorder %s30, 1
      %p67 = por %p65, %p66
      %p69 = scmp.ne.s32.totalorder %s52, %s68
      %p70 = scmp.eq.s32.totalorder %s30, 0
      %p71 = por %p69, %p70
      %s72 = ssub.s32 %s31, %s43
      %s73 = ssub.s32 %s32, %s39
      %s74 = sor.u32 %s72, %s73
      %p75 = scmp.eq.s32.totalorder %s74, 0
      %s77 = sadd.s32 %s76, 1
      %s78 = scalar_select %p75, %s76, %s77
      %p81 = pneg %p75
      %p82 = scmp.eq.s32.totalorder %s24, 1
      %p83 = por %p81, %p82
      %p84 = scmp.ne.s32.totalorder %s76, %s79
      %p85 = scmp.eq.s32.totalorder %s24, 0
      %p86 = por %p84, %p85
      %p87 = scmp.ne.s32.totalorder %s76, %s79
      %p88 = scmp.eq.s32.totalorder %s29, 1
      %p89 = por %p87, %p88
      %p90 = scmp.ne.s32.totalorder %s79, %s80
      %p91 = scmp.eq.s32.totalorder %s29, 0
      %p92 = por %p90, %p91
      %p93 = scmp.ne.s32.totalorder %s79, %s80
      %p94 = scmp.eq.s32.totalorder %s30, 1
      %p95 = por %p93, %p94
      %p97 = scmp.ne.s32.totalorder %s80, %s96
      %p98 = scmp.eq.s32.totalorder %s30, 0
      %p99 = por %p97, %p98
      %s101 = sadd.s32 %s100, 1
      %p104 = scmp.eq.s32.totalorder %s24, 1
      %p105 = scmp.ne.s32.totalorder %s100, %s102
      %p106 = scmp.eq.s32.totalorder %s24, 0
      %p107 = por %p105, %p106
      %p108 = scmp.ne.s32.totalorder %s100, %s102
      %p109 = scmp.eq.s32.totalorder %s29, 1
      %p110 = por %p108, %p109
      %p111 = scmp.ne.s32.totalorder %s102, %s103
      %p112 = scmp.eq.s32.totalorder %s29, 0
      %p113 = por %p111, %p112
      %p114 = scmp.ne.s32.totalorder %s102, %s103
      %p115 = scmp.eq.s32.totalorder %s30, 1
      %p116 = por %p114, %p115
      %p118 = scmp.ne.s32.totalorder %s103, %s117
      %p119 = scmp.eq.s32.totalorder %s30, 0
      %p120 = por %p118, %p119
      %s122 = sadd.s32 %s121, 1
      %p125 = scmp.eq.s32.totalorder %s24, 1
      %p126 = scmp.ne.s32.totalorder %s121, %s123
      %p127 = scmp.eq.s32.totalorder %s24, 0
      %p128 = por %p126, %p127
      %p129 = scmp.ne.s32.totalorder %s121, %s123
      %p130 = scmp.eq.s32.totalorder %s29, 1
      %p131 = por %p129, %p130
      %p132 = scmp.ne.s32.totalorder %s123, %s124
      %p133 = scmp.eq.s32.totalorder %s29, 0
      %p134 = por %p132, %p133
      %p135 = scmp.ne.s32.totalorder %s123, %s124
      %p136 = scmp.eq.s32.totalorder %s30, 1
      %p137 = por %p135, %p136
      %p139 = scmp.ne.s32.totalorder %s124, %s138
      %p140 = scmp.eq.s32.totalorder %s30, 0
      %p141 = por %p139, %p140
      %s143 = sadd.s32 %s142, 1
      %p146 = scmp.eq.s32.totalorder %s24, 1
      %p147 = scmp.ne.s32.totalorder %s142, %s144
      %p148 = scmp.eq.s32.totalorder %s24, 0
      %p149 = por %p147, %p148
      %p150 = scmp.ne.s32.totalorder %s142, %s144
      %p151 = scmp.eq.s32.totalorder %s29, 1
      %p152 = por %p150, %p151
      %p153 = scmp.ne.s32.totalorder %s144, %s145
      %p154 = scmp.eq.s32.totalorder %s29, 0
      %p155 = por %p153, %p154
      %p156 = scmp.ne.s32.totalorder %s144, %s145
      %p157 = scmp.eq.s32.totalorder %s30, 1
      %p158 = por %p156, %p157
      %p160 = scmp.ne.s32.totalorder %s145, %s159
      %p161 = scmp.eq.s32.totalorder %s30, 0
      %p162 = por %p160, %p161
      %s164 = sadd.s32 %s163, 1
      %p167 = scmp.eq.s32.totalorder %s24, 1
      %p168 = scmp.ne.s32.totalorder %s163, %s165
      %p169 = scmp.eq.s32.totalorder %s24, 0
      %p170 = por %p168, %p169
      %p171 = scmp.ne.s32.totalorder %s163, %s165
      %p172 = scmp.eq.s32.totalorder %s29, 1
      %p173 = por %p171, %p172
      %p174 = scmp.ne.s32.totalorder %s165, %s166
      %p175 = scmp.eq.s32.totalorder %s29, 0
      %p176 = por %p174, %p175
      %p177 = scmp.ne.s32.totalorder %s165, %s166
      %p178 = scmp.eq.s32.totalorder %s30, 1
      %p179 = por %p177, %p178
      %p181 = scmp.ne.s32.totalorder %s166, %s180
      %p182 = scmp.eq.s32.totalorder %s30, 0
      %p183 = por %p181, %p182
      %s185 = sadd.s32 %s184, 1
      %p188 = scmp.eq.s32.totalorder %s24, 1
      %p189 = scmp.ne.s32.totalorder %s184, %s186
      %p190 = scmp.eq.s32.totalorder %s24, 0
      %p191 = por %p189, %p190
      %p192 = scmp.ne.s32.totalorder %s184, %s186
      %p193 = scmp.eq.s32.totalorder %s29, 1
      %p194 = por %p192, %p193
      %p195 = scmp.ne.s32.totalorder %s186, %s187
      %p196 = scmp.eq.s32.totalorder %s29, 0
      %p197 = por %p195, %p196
      %p198 = scmp.ne.s32.totalorder %s186, %s187
      %p199 = scmp.eq.s32.totalorder %s30, 1
      %p200 = por %p198, %p199
      %p202 = scmp.ne.s32.totalorder %s187, %s201
      %p203 = scmp.eq.s32.totalorder %s30, 0
      %p204 = por %p202, %p203
      %s206 = sadd.s32 %s205, 1
      %p209 = scmp.eq.s32.totalorder %s24, 1
      %p210 = scmp.ne.s32.totalorder %s205, %s207
      %p211 = scmp.eq.s32.totalorder %s24, 0
      %p212 = por %p210, %p211
      %p213 = scmp.ne.s32.totalorder %s205, %s207
      %p214 = scmp.eq.s32.totalorder %s29, 1
      %p215 = por %p213, %p214
      %p216 = scmp.ne.s32.totalorder %s207, %s208
      %p217 = scmp.eq.s32.totalorder %s29, 0
      %p218 = por %p216, %p217
      %p219 = scmp.ne.s32.totalorder %s207, %s208
      %p220 = scmp.eq.s32.totalorder %s30, 1
      %p221 = por %p219, %p220
      %p223 = scmp.ne.s32.totalorder %s208, %s222
      %p224 = scmp.eq.s32.totalorder %s30, 0
      %p225 = por %p223, %p224
      %s226 = ssub.s32 %s31, %s43
      %s227 = ssub.s32 %s32, %s39
      %s228 = sor.u32 %s226, %s227
      %p229 = scmp.eq.s32.totalorder %s228, 0
      %s231 = sadd.s32 %s230, 1
      %s232 = scalar_select %p229, %s230, %s231
      %p235 = pneg %p229
      %p236 = scmp.eq.s32.totalorder %s24, 1
      %p237 = por %p235, %p236
      %p238 = scmp.ne.s32.totalorder %s230, %s233
      %p239 = scmp.eq.s32.totalorder %s24, 0
      %p240 = por %p238, %p239
      %p241 = scmp.ne.s32.totalorder %s230, %s233
      %p242 = scmp.eq.s32.totalorder %s29, 1
      %p243 = por %p241, %p242
      %p244 = scmp.ne.s32.totalorder %s233, %s234
      %p245 = scmp.eq.s32.totalorder %s29, 0
      %p246 = por %p244, %p245
      %p247 = scmp.ne.s32.totalorder %s233, %s234
      %p248 = scmp.eq.s32.totalorder %s30, 1
      %p249 = por %p247, %p248
      %p251 = scmp.ne.s32.totalorder %s234, %s250
      %p252 = scmp.eq.s32.totalorder %s30, 0
      %p253 = por %p251, %p252
      %p254 = scmp.le.s32.totalorder 1, %s24
      %p255 = scmp.lt.s32.totalorder %s24, 3
      %p256 = pnand %p254, %p255
      %p257 = pneg %p256
      // Predicated region
      $region9: #{tpu_custom_call.1} parent=5 // pred_check
        _
      $region10: #{tpu_custom_call.1} parent=5 // pred_check_branch
        %259 = sbr.rel (%p256) target = $region12
      $region11: #{tpu_custom_call.1} parent=5 // pred_region
        %s260 = ssub.s32 %s24, 1
        // Predicated region
        $region13: #{tpu_custom_call.1} parent=11 // pred_check
          %p261 = pneg %p113
        $region14: #{tpu_custom_call.1} parent=11 // pred_check_branch
          %263 = sbr.rel (%p261) target = $region16
        $region15: #{tpu_custom_call.1} parent=11 // pred_region
          %s265 = ssub.s32 1024, 1024
          %266 = vsyncadd [#allocation7], %s265
          %s267 = sshll.u32 [#allocation8], 4
          %s268 = int_to_ptr.vmem [resolvable:$true] %s267
          %273 = dma.hbm_to_vmem [thread:$0]  %s2, 1024, %s268, [#allocation7], 64, 64, 4
        $region16: #{tpu_custom_call.1} parent=11 // pred_fallthru
          _
        // Predicated region
        $region17: #{tpu_custom_call.1} parent=11 // pred_check
          %p274 = pneg %p134
        $region18: #{tpu_custom_call.1} parent=11 // pred_check_branch
          %276 = sbr.rel (%p274) target = $region20
        $region19: #{tpu_custom_call.1} parent=11 // pred_region
          _
        $region20: #{tpu_custom_call.1} parent=11 // pred_fallthru
          _
        // Predicated region
        $region21: #{tpu_custom_call.1} parent=11 // pred_check
          %p277 = pneg %p155
        $region22: #{tpu_custom_call.1} parent=11 // pred_check_branch
          %279 = sbr.rel (%p277) target = $region24
        $region23: #{tpu_custom_call.1} parent=11 // pred_region
          _
        $region24: #{tpu_custom_call.1} parent=11 // pred_fallthru
          _
        // Predicated region
        $region25: #{tpu_custom_call.1} parent=11 // pred_check
          %p280 = pneg %p176
        $region26: #{tpu_custom_call.1} parent=11 // pred_check_branch
          %282 = sbr.rel (%p280) target = $region28
        $region27: #{tpu_custom_call.1} parent=11 // pred_region
          %s284 = ssub.s32 9216, 9216
          %285 = vsyncadd [#allocation10], %s284
          %s286 = sshll.u32 [#allocation9], 4
          %s287 = int_to_ptr.vmem [resolvable:$true] %s286
          %292 = dma.hbm_to_vmem [thread:$0]  %s5, 9216, %s287, [#allocation10], 64, 64, 4
        $region28: #{tpu_custom_call.1} parent=11 // pred_fallthru
          _
        // Predicated region
        $region29: #{tpu_custom_call.1} parent=11 // pred_check
          %p293 = pneg %p197
        $region30: #{tpu_custom_call.1} parent=11 // pred_check_branch
          %295 = sbr.rel (%p293) target = $region32
        $region31: #{tpu_custom_call.1} parent=11 // pred_region
          _
        $region32: #{tpu_custom_call.1} parent=11 // pred_fallthru
          _
        // Predicated region
        $region33: #{tpu_custom_call.1} parent=11 // pred_check
          %p296 = pneg %p218
        $region34: #{tpu_custom_call.1} parent=11 // pred_check_branch
          %298 = sbr.rel (%p296) target = $region36
        $region35: #{tpu_custom_call.1} parent=11 // pred_region
          _
        $region36: #{tpu_custom_call.1} parent=11 // pred_fallthru
          _
      $region12: #{tpu_custom_call.1} parent=5 // pred_fallthru
        _
      %p299 = scmp.lt.s32.totalorder %s24, 2
      // Predicated region
      $region37: #{tpu_custom_call.1} parent=5 // pred_check
        %p300 = pneg %p299
      $region38: #{tpu_custom_call.1} parent=5 // pred_check_branch
        %302 = sbr.rel (%p300) target = $region40
      $region39: #{tpu_custom_call.1} parent=5 // pred_region
        // Predicated region
        $region41: #{tpu_custom_call.1} parent=39 // pred_check
          %p303 = pneg %p58
        $region42: #{tpu_custom_call.1} parent=39 // pred_check_branch
          %305 = sbr.rel (%p303) target = $region44
        $region43: #{tpu_custom_call.1} parent=39 // pred_region
          %s306 = sand.u32 %s48, 1
          %s307 = scalar_lea.sflag [#allocation4], %s306
          %s308 = sand.u32 %s48, 1
          %s309 = smul.addr %s308, 256
          %s310 = scalar_lea.vmem [#allocation3], %s309
          %s311 = smul.u32 16, %s32
          %s313 = ssub.s32 4096, 4096
          %314 = vsyncadd %s307, %s313
          %s315 = smul.addr %s311, 2
          %s316 = smul.addr %s31, 32
          %s317 = sadd.s32 %s315, %s316
          %s318 = smul.addr %s317, 128
          %s319 = scalar_lea.hbm %s0, %s318
          %s320 = sshll.u32 %s310, 4
          %s321 = int_to_ptr.vmem [resolvable:$true] %s320
          %326 = dma.hbm_to_vmem [thread:$0]  %s319, 4096, %s321, %s307, 128, 128, 8
        $region44: #{tpu_custom_call.1} parent=39 // pred_fallthru
          _
        // Predicated region
        $region45: #{tpu_custom_call.1} parent=39 // pred_check
          %p327 = pneg %p86
        $region46: #{tpu_custom_call.1} parent=39 // pred_check_branch
          %329 = sbr.rel (%p327) target = $region48
        $region47: #{tpu_custom_call.1} parent=39 // pred_region
          %s330 = sand.u32 %s24, 1
          %s331 = scalar_lea.sflag [#allocation7], %s330
          %s332 = sand.u32 %s76, 1
          %s333 = smul.addr %s332, 32
          %s334 = scalar_lea.vmem [#allocation6], %s333
          %s335 = smul.u32 2, %s32
          %s337 = ssub.s32 512, 512
          %338 = vsyncadd %s331, %s337
          %s339 = smul.addr %s335, 2
          %s340 = smul.addr %s31, 4
          %s341 = sadd.s32 %s339, %s340
          %s342 = smul.addr %s341, 128
          %s343 = scalar_lea.hbm %s1, %s342
          %s344 = sshll.u32 %s334, 4
          %s345 = int_to_ptr.vmem [resolvable:$true] %s344
          %350 = dma.hbm_to_vmem [thread:$0]  %s343, 512, %s345, %s331, 128, 128, 8
        $region48: #{tpu_custom_call.1} parent=39 // pred_fallthru
          _
      $region40: #{tpu_custom_call.1} parent=5 // pred_fallthru
        _
      %p351 = scmp.le.s32.totalorder 1, %s24
      %p352 = scmp.lt.s32.totalorder %s24, 3
      %p353 = pnand %p351, %p352
      %p354 = pneg %p353
      // Predicated region
      $region49: #{tpu_custom_call.1} parent=5 // pred_check
        _
      $region50: #{tpu_custom_call.1} parent=5 // pred_check_branch
        %356 = sbr.rel (%p353) target = $region52
      $region51: #{tpu_custom_call.1} parent=5 // pred_region
        %s357 = ssub.s32 %s24, 1
        %s358 = sand.u32 %s51, 1
        %s359 = scalar_lea.sflag [#allocation4], %s358
        %s360 = sand.u32 %s51, 1
        %s361 = smul.addr %s360, 256
        %s362 = scalar_lea.vmem [#allocation3], %s361
        // Predicated region
        $region53: #{tpu_custom_call.1} parent=51 // pred_check
          %p363 = pneg %p64
        $region54: #{tpu_custom_call.1} parent=51 // pred_check_branch
          %365 = sbr.rel (%p363) target = $region56
        $region55: #{tpu_custom_call.1} parent=51 // pred_region
          %366 = dma.done %s359, 4096
        $region56: #{tpu_custom_call.1} parent=51 // pred_fallthru
          _
        %s367 = sand.u32 %s29, 1
        %s368 = scalar_lea.sflag [#allocation7], %s367
        %s369 = sand.u32 %s79, 1
        %s370 = smul.addr %s369, 32
        %s371 = scalar_lea.vmem [#allocation6], %s370
        // Predicated region
        $region57: #{tpu_custom_call.1} parent=51 // pred_check
          %p372 = pneg %p92
        $region58: #{tpu_custom_call.1} parent=51 // pred_check_branch
          %374 = sbr.rel (%p372) target = $region60
        $region59: #{tpu_custom_call.1} parent=51 // pred_region
          %375 = dma.done %s368, 512
        $region60: #{tpu_custom_call.1} parent=51 // pred_fallthru
          _
        // Predicated region
        $region61: #{tpu_custom_call.1} parent=51 // pred_check
          %p376 = pneg %p113
        $region62: #{tpu_custom_call.1} parent=51 // pred_check_branch
          %378 = sbr.rel (%p376) target = $region64
        $region63: #{tpu_custom_call.1} parent=51 // pred_region
          %379 = dma.done [#allocation7], 1024
        $region64: #{tpu_custom_call.1} parent=51 // pred_fallthru
          _
        // Predicated region
        $region65: #{tpu_custom_call.1} parent=51 // pred_check
          %p380 = pneg %p176
        $region66: #{tpu_custom_call.1} parent=51 // pred_check_branch
          %382 = sbr.rel (%p380) target = $region68
        $region67: #{tpu_custom_call.1} parent=51 // pred_region
          %383 = dma.done [#allocation10], 9216
        $region68: #{tpu_custom_call.1} parent=51 // pred_fallthru
          _
        %s384 = sand.u32 %s51, 1
        %s385 = scalar_lea.sflag [#allocation4], %s384
        %s386 = sand.u32 %s51, 1
        %s387 = smul.addr %s386, 256
        %s388 = scalar_lea.vmem [#allocation3], %s387
        %p389 = pneg %p64
        %p390 = pneg %p61
        %s391 = sand.u32 %s29, 1
        %s392 = scalar_lea.sflag [#allocation7], %s391
        %s393 = sand.u32 %s79, 1
        %s394 = smul.addr %s393, 32
        %s395 = scalar_lea.vmem [#allocation6], %s394
        %p396 = pneg %p92
        %p397 = pneg %p89
        %p398 = pneg %p113
        %p399 = pneg %p110
        %p400 = pneg %p134
        %p401 = pneg %p131
        %p402 = pneg %p155
        %p403 = pneg %p152
        %p404 = pneg %p176
        %p405 = pneg %p173
        %p406 = pneg %p197
        %p407 = pneg %p194
        %p408 = pneg %p218
        %p409 = pneg %p215
        %p410 = pneg %p246
        %p411 = pneg %p243
        %s412 = sand.u32 %s233, 1
        %s413 = scalar_lea.sflag [#allocation5], %s412
        %s414 = sand.u32 %s233, 1
        %s415 = smul.addr %s414, 256
        %s416 = scalar_lea.vmem [#allocation11], %s415
        %s417 = smul.u32 16, %s34
        %s418 = smul.u32 2, %s34
        %s419 = smul.u32 16, %s34
        %v421 = vld [vmem:[%s362] sm:$0xff]
        %v422 = vld [vmem:[%s362 + $0x8] sm:$0xff]
        %v423 = vld [vmem:[%s362 + $0x10] sm:$0xff]
        %v424 = vld [vmem:[%s362 + $0x18] sm:$0xff]
        %v425 = vld [vmem:[%s362 + $0x20] sm:$0xff]
        %v426 = vld [vmem:[%s362 + $0x28] sm:$0xff]
        %v427 = vld [vmem:[%s362 + $0x30] sm:$0xff]
        %v428 = vld [vmem:[%s362 + $0x38] sm:$0xff]
        %v429 = vld [vmem:[%s362 + $0x40] sm:$0xff]
        %v430 = vld [vmem:[%s362 + $0x48] sm:$0xff]
        %v431 = vld [vmem:[%s362 + $0x50] sm:$0xff]
        %v432 = vld [vmem:[%s362 + $0x58] sm:$0xff]
        %v433 = vld [vmem:[%s362 + $0x60] sm:$0xff]
        %v434 = vld [vmem:[%s362 + $0x68] sm:$0xff]
        %v435 = vld [vmem:[%s362 + $0x70] sm:$0xff]
        %v436 = vld [vmem:[%s362 + $0x78] sm:$0xff]
        %v437 = vld [vmem:[%s362 + $0x80] sm:$0xff]
        %v438 = vld [vmem:[%s362 + $0x88] sm:$0xff]
        %v439 = vld [vmem:[%s362 + $0x90] sm:$0xff]
        %v440 = vld [vmem:[%s362 + $0x98] sm:$0xff]
        %v441 = vld [vmem:[%s362 + $0xa0] sm:$0xff]
        %v442 = vld [vmem:[%s362 + $0xa8] sm:$0xff]
        %v443 = vld [vmem:[%s362 + $0xb0] sm:$0xff]
        %v444 = vld [vmem:[%s362 + $0xb8] sm:$0xff]
        %v445 = vld [vmem:[%s362 + $0xc0] sm:$0xff]
        %v446 = vld [vmem:[%s362 + $0xc8] sm:$0xff]
        %v447 = vld [vmem:[%s362 + $0xd0] sm:$0xff]
        %v448 = vld [vmem:[%s362 + $0xd8] sm:$0xff]
        %v449 = vld [vmem:[%s362 + $0xe0] sm:$0xff]
        %v450 = vld [vmem:[%s362 + $0xe8] sm:$0xff]
        %v451 = vld [vmem:[%s362 + $0xf0] sm:$0xff]
        %v452 = vld [vmem:[%s362 + $0xf8] sm:$0xff]
        %v453 = vld [vmem:[%s371] sm:$0xff]
        %v454 = vld [vmem:[%s371 + $0x8] sm:$0xff]
        %v455 = vld [vmem:[%s371 + $0x10] sm:$0xff]
        %v456 = vld [vmem:[%s371 + $0x18] sm:$0xff]
        %v457 = vpack.c.bf16 %v454, %v453
        %v458 = vpack.c.bf16 %v422, %v421
        %v459 = vpack.c.bf16 %v424, %v423
        %v460 = vpack.c.bf16 %v426, %v425
        %v461 = vpack.c.bf16 %v428, %v427
        %v462 = vpack.c.bf16 %v430, %v429
        %v463 = vpack.c.bf16 %v432, %v431
        %v464 = vpack.c.bf16 %v434, %v433
        %v465 = vpack.c.bf16 %v436, %v435
        %v466 = vpack.c.bf16 %v438, %v437
        %v467 = vpack.c.bf16 %v440, %v439
        %v468 = vpack.c.bf16 %v442, %v441
        %v469 = vpack.c.bf16 %v444, %v443
        %v470 = vpack.c.bf16 %v446, %v445
        %v471 = vpack.c.bf16 %v448, %v447
        %v472 = vpack.c.bf16 %v450, %v449
        %v473 = vpack.c.bf16 %v452, %v451
        %v474 = vpack.c.bf16 %v456, %v455
        %v475 = vld [vmem:[#allocation8] sm:$0xf]
        %v476 = vld [vmem:[#allocation8 + $0x4] sm:$0xf]
        %v477 = vld [vmem:[#allocation8 + $0x8] sm:$0xf]
        %v478 = vld [vmem:[#allocation8 + $0xc] sm:$0xf]
        %v479 = vld [vmem:[#allocation8 + $0x10] sm:$0xf]
        %v480 = vld [vmem:[#allocation8 + $0x14] sm:$0xf]
        %v481 = vld [vmem:[#allocation8 + $0x18] sm:$0xf]
        %v482 = vld [vmem:[#allocation8 + $0x1c] sm:$0xf]
        %v483 = vld [vmem:[#allocation8 + $0x20] sm:$0xf]
        %v484 = vld [vmem:[#allocation8 + $0x24] sm:$0xf]
        %v485 = vld [vmem:[#allocation8 + $0x28] sm:$0xf]
        %v486 = vld [vmem:[#allocation8 + $0x2c] sm:$0xf]
        %v487 = vld [vmem:[#allocation8 + $0x30] sm:$0xf]
        %v488 = vld [vmem:[#allocation8 + $0x34] sm:$0xf]
        %v489 = vld [vmem:[#allocation8 + $0x38] sm:$0xf]
        %v490 = vld [vmem:[#allocation8 + $0x3c] sm:$0xf]
        %v507 = vunpack.c.l.b16 %v475
        %v508 = vunpack.c.l.b16 %v476
        %v509 = vunpack.c.l.b16 %v477
        %v510 = vunpack.c.l.b16 %v478
        %v511 = vunpack.c.l.b16 %v479
        %v512 = vunpack.c.l.b16 %v480
        %v513 = vunpack.c.l.b16 %v481
        %v514 = vunpack.c.l.b16 %v482
        %v515 = vunpack.c.l.b16 %v483
        %v516 = vunpack.c.l.b16 %v484
        %v517 = vunpack.c.l.b16 %v485
        %v518 = vunpack.c.l.b16 %v486
        %v519 = vunpack.c.l.b16 %v487
        %v520 = vunpack.c.l.b16 %v488
        %v521 = vunpack.c.l.b16 %v489
        %v522 = vunpack.c.l.b16 %v490
        %v523 = vpack.c.b16 %v508, %v507
        %v524 = vpack.c.b16 %v510, %v509
        %v525 = vpack.c.b16 %v512, %v511
        %v526 = vpack.c.b16 %v514, %v513
        %v527 = vpack.c.b16 %v516, %v515
        %v528 = vpack.c.b16 %v518, %v517
        %v529 = vpack.c.b16 %v520, %v519
        %v530 = vpack.c.b16 %v522, %v521
        %539 = vmatprep.subr.bf16.mxu0 0
        %540 = vmatpush1.bf16.msra.mxu0 %v523
        %541 = vmatprep.subr.bf16.mxu0 0
        %542 = vmatpush1.bf16.msra.mxu0 %v524
        %543 = vmatprep.subr.bf16.mxu0 0
        %544 = vmatpush1.bf16.msra.mxu0 %v525
        %545 = vmatprep.subr.bf16.mxu0 0
        %546 = vmatpush1.bf16.msra.mxu0 %v526
        %547 = vmatprep.subr.bf16.mxu0 0
        %548 = vmatpush1.bf16.msra.mxu0 %v527
        %549 = vmatprep.subr.bf16.mxu0 0
        %550 = vmatpush1.bf16.msra.mxu0 %v528
        %551 = vmatprep.subr.bf16.mxu0 0
        %552 = vmatpush1.bf16.msra.mxu0 %v529
        %553 = vmatprep.subr.bf16.mxu0 0
        %554 = vmatpush1.bf16.msra.mxu0 %v530
        %555 = vmatprep.subr.bf16.mxu0 0
        %556 = vmatpush1.bf16.msra.mxu0 0
        %557 = vmatprep.subr.bf16.mxu0 0
        %558 = vmatpush1.bf16.msra.mxu0 0
        %559 = vmatprep.subr.bf16.mxu0 0
        %560 = vmatpush1.bf16.msra.mxu0 0
        %561 = vmatprep.subr.bf16.mxu0 0
        %562 = vmatpush1.bf16.msra.mxu0 0
        %563 = vmatprep.subr.bf16.mxu0 0
        %564 = vmatpush1.bf16.msra.mxu0 0
        %565 = vmatprep.subr.bf16.mxu0 0
        %566 = vmatpush1.bf16.msra.mxu0 0
        %567 = vmatprep.subr.bf16.mxu0 0
        %568 = vmatpush1.bf16.msra.mxu0 0
        %569 = vmatprep.subr.bf16.mxu0 0
        %570 = vmatpush1.bf16.msra.mxu0 0
        %571 = vmatprep.mubr.bf16.mxu0 0
        %572 = vmatmul.mubr.bf16.gmra.mrb[0].mxu0 %v457
        %v573 = vpop.f32.mrb[0].mxu0
        %v574 = vadd.f32 0.0, %v573
        %v575 = vpop.f32.mrb[0].mxu0
        %v576 = vpop.f32.mrb[0].mxu0
        %v577 = vadd.f32 0.0, %v576
        %v578 = vpop.f32.mrb[0].mxu0
        %579 = vmatprep.mubr.bf16.mxu0 0
        %580 = vmatmul.mubr.bf16.gmra.mrb[0].mxu0 %v458
        %v581 = vpop.f32.mrb[0].mxu0
        %v582 = vadd.f32 0.0, %v581
        %v583 = vpop.f32.mrb[0].mxu0
        %v584 = vpop.f32.mrb[0].mxu0
        %v585 = vadd.f32 0.0, %v584
        %v586 = vpop.f32.mrb[0].mxu0
        %587 = vmatprep.mubr.bf16.mxu0 0
        %588 = vmatmul.mubr.bf16.gmra.mrb[0].mxu0 %v459
        %v589 = vpop.f32.mrb[0].mxu0
        %v590 = vadd.f32 0.0, %v589
        %v591 = vpop.f32.mrb[0].mxu0
        %v592 = vpop.f32.mrb[0].mxu0
        %v593 = vadd.f32 0.0, %v592
        %v594 = vpop.f32.mrb[0].mxu0
        %595 = vmatprep.mubr.bf16.mxu0 0
        %596 = vmatmul.mubr.bf16.gmra.mrb[0].mxu0 %v460
        %v597 = vpop.f32.mrb[0].mxu0
        %v598 = vadd.f32 0.0, %v597
        %v599 = vpop.f32.mrb[0].mxu0
        %v600 = vpop.f32.mrb[0].mxu0
        %v601 = vadd.f32 0.0, %v600
        %v602 = vpop.f32.mrb[0].mxu0
        %603 = vmatprep.mubr.bf16.mxu0 0
        %604 = vmatmul.mubr.bf16.gmra.mrb[0].mxu0 %v461
        %v605 = vpop.f32.mrb[0].mxu0
        %v606 = vadd.f32 0.0, %v605
        %v607 = vpop.f32.mrb[0].mxu0
        %v608 = vpop.f32.mrb[0].mxu0
        %v609 = vadd.f32 0.0, %v608
        %v610 = vpop.f32.mrb[0].mxu0
        %611 = vmatprep.mubr.bf16.mxu0 0
        %612 = vmatmul.mubr.bf16.gmra.mrb[0].mxu0 %v462
        %v613 = vpop.f32.mrb[0].mxu0
        %v614 = vadd.f32 0.0, %v613
        %v615 = vpop.f32.mrb[0].mxu0
        %v616 = vpop.f32.mrb[0].mxu0
        %v617 = vadd.f32 0.0, %v616
        %v618 = vpop.f32.mrb[0].mxu0
        %619 = vmatprep.mubr.bf16.mxu0 0
        %620 = vmatmul.mubr.bf16.gmra.mrb[0].mxu0 %v463
        %v621 = vpop.f32.mrb[0].mxu0
        %v622 = vadd.f32 0.0, %v621
        %v623 = vpop.f32.mrb[0].mxu0
        %v624 = vpop.f32.mrb[0].mxu0
        %v625 = vadd.f32 0.0, %v624
        %v626 = vpop.f32.mrb[0].mxu0
        %627 = vmatprep.mubr.bf16.mxu0 0
        %628 = vmatmul.mubr.bf16.gmra.mrb[0].mxu0 %v464
        %v629 = vpop.f32.mrb[0].mxu0
        %v630 = vadd.f32 0.0, %v629
        %v631 = vpop.f32.mrb[0].mxu0
        %v632 = vpop.f32.mrb[0].mxu0
        %v633 = vadd.f32 0.0, %v632
        %v634 = vpop.f32.mrb[0].mxu0
        %635 = vmatprep.mubr.bf16.mxu0 0
        %636 = vmatmul.mubr.bf16.gmra.mrb[0].mxu0 %v465
        %v637 = vpop.f32.mrb[0].mxu0
        %v638 = vadd.f32 0.0, %v637
        %v639 = vpop.f32.mrb[0].mxu0
        %v640 = vpop.f32.mrb[0].mxu0
        %v641 = vadd.f32 0.0, %v640
        %v642 = vpop.f32.mrb[0].mxu0
        %643 = vmatprep.mubr.bf16.mxu0 0
        %644 = vmatmul.mubr.bf16.gmra.mrb[0].mxu0 %v466
        %v645 = vpop.f32.mrb[0].mxu0
        %v646 = vadd.f32 0.0, %v645
        %v647 = vpop.f32.mrb[0].mxu0
        %v648 = vpop.f32.mrb[0].mxu0
        %v649 = vadd.f32 0.0, %v648
        %v650 = vpop.f32.mrb[0].mxu0
        %651 = vmatprep.mubr.bf16.mxu0 0
        %652 = vmatmul.mubr.bf16.gmra.mrb[0].mxu0 %v467
        %v653 = vpop.f32.mrb[0].mxu0
        %v654 = vadd.f32 0.0, %v653
        %v655 = vpop.f32.mrb[0].mxu0
        %v656 = vpop.f32.mrb[0].mxu0
        %v657 = vadd.f32 0.0, %v656
        %v658 = vpop.f32.mrb[0].mxu0
        %659 = vmatprep.mubr.bf16.mxu0 0
        %660 = vmatmul.mubr.bf16.gmra.mrb[0].mxu0 %v468
        %v661 = vpop.f32.mrb[0].mxu0
        %v662 = vadd.f32 0.0, %v661
        %v663 = vpop.f32.mrb[0].mxu0
        %v664 = vpop.f32.mrb[0].mxu0
        %v665 = vadd.f32 0.0, %v664
        %v666 = vpop.f32.mrb[0].mxu0
        %667 = vmatprep.mubr.bf16.mxu0 0
        %668 = vmatmul.mubr.bf16.gmra.mrb[0].mxu0 %v469
        %v669 = vpop.f32.mrb[0].mxu0
        %v670 = vadd.f32 0.0, %v669
        %v671 = vpop.f32.mrb[0].mxu0
        %v672 = vpop.f32.mrb[0].mxu0
        %v673 = vadd.f32 0.0, %v672
        %v674 = vpop.f32.mrb[0].mxu0
        %675 = vmatprep.mubr.bf16.mxu0 0
        %676 = vmatmul.mubr.bf16.gmra.mrb[0].mxu0 %v470
        %v677 = vpop.f32.mrb[0].mxu0
        %v678 = vadd.f32 0.0, %v677
        %v679 = vpop.f32.mrb[0].mxu0
        %v680 = vpop.f32.mrb[0].mxu0
        %v681 = vadd.f32 0.0, %v680
        %v682 = vpop.f32.mrb[0].mxu0
        %683 = vmatprep.mubr.bf16.mxu0 0
        %684 = vmatmul.mubr.bf16.gmra.mrb[0].mxu0 %v471
        %v685 = vpop.f32.mrb[0].mxu0
        %v686 = vadd.f32 0.0, %v685
        %v687 = vpop.f32.mrb[0].mxu0
        %v688 = vpop.f32.mrb[0].mxu0
        %v689 = vadd.f32 0.0, %v688
        %v690 = vpop.f32.mrb[0].mxu0
        %691 = vmatprep.mubr.bf16.mxu0 0
        %692 = vmatmul.mubr.bf16.gmra.mrb[0].mxu0 %v472
        %v693 = vpop.f32.mrb[0].mxu0
        %v694 = vadd.f32 0.0, %v693
        %v695 = vpop.f32.mrb[0].mxu0
        %v696 = vpop.f32.mrb[0].mxu0
        %v697 = vadd.f32 0.0, %v696
        %v698 = vpop.f32.mrb[0].mxu0
        %699 = vmatprep.mubr.bf16.mxu0 0
        %700 = vmatmul.mubr.bf16.gmra.mrb[0].mxu0 %v473
        %v701 = vpop.f32.mrb[0].mxu0
        %v702 = vadd.f32 0.0, %v701
        %v703 = vpop.f32.mrb[0].mxu0
        %v704 = vpop.f32.mrb[0].mxu0
        %v705 = vadd.f32 0.0, %v704
        %v706 = vpop.f32.mrb[0].mxu0
        %707 = vmatprep.mubr.bf16.mxu0 0
        %708 = vmatmul.mubr.bf16.gmra.mrb[0].mxu0 %v474
        %v709 = vpop.f32.mrb[0].mxu0
        %v710 = vadd.f32 0.0, %v709
        %v711 = vpop.f32.mrb[0].mxu0
        %v712 = vpop.f32.mrb[0].mxu0
        %v713 = vadd.f32 0.0, %v712
        %v714 = vpop.f32.mrb[0].mxu0
        %715 = vdwg.mxu0
        %v716 = vld [vmem:[%s3] sm:$0x1]
        %v718 = vlaneseq
        %v719 = vshrl.u32 %v718, 7
        %v720 = vsub.s32 0, %v719
        %v721 = vrot.slane %v716, %v720
        %v723 = vmul.f32 %v574, %v721
        %v724 = vmul.f32 %v577, %v721
        %v725 = vmul.f32 %v582, %v721
        %v726 = vmul.f32 %v585, %v721
        %v727 = vmul.f32 %v590, %v721
        %v728 = vmul.f32 %v593, %v721
        %v729 = vmul.f32 %v598, %v721
        %v730 = vmul.f32 %v601, %v721
        %v731 = vmul.f32 %v606, %v721
        %v732 = vmul.f32 %v609, %v721
        %v733 = vmul.f32 %v614, %v721
        %v734 = vmul.f32 %v617, %v721
        %v735 = vmul.f32 %v622, %v721
        %v736 = vmul.f32 %v625, %v721
        %v737 = vmul.f32 %v630, %v721
        %v738 = vmul.f32 %v633, %v721
        %v739 = vmul.f32 %v638, %v721
        %v740 = vmul.f32 %v641, %v721
        %v741 = vmul.f32 %v646, %v721
        %v742 = vmul.f32 %v649, %v721
        %v743 = vmul.f32 %v654, %v721
        %v744 = vmul.f32 %v657, %v721
        %v745 = vmul.f32 %v662, %v721
        %v746 = vmul.f32 %v665, %v721
        %v747 = vmul.f32 %v670, %v721
        %v748 = vmul.f32 %v673, %v721
        %v749 = vmul.f32 %v678, %v721
        %v750 = vmul.f32 %v681, %v721
        %v751 = vmul.f32 %v686, %v721
        %v752 = vmul.f32 %v689, %v721
        %v753 = vmul.f32 %v694, %v721
        %v754 = vmul.f32 %v697, %v721
        %v755 = vmul.f32 %v702, %v721
        %v756 = vmul.f32 %v705, %v721
        %v757 = vmul.f32 %v710, %v721
        %v758 = vmul.f32 %v713, %v721
        %v759 = vld [vmem:[%s4] sm:$0x1]
        %v761 = vlaneseq
        %v762 = vshrl.u32 %v761, 7
        %v763 = vsub.s32 0, %v762
        %v764 = vrot.slane %v759, %v763
        %v766 = vadd.f32 %v723, %v764
        %v767 = vadd.f32 %v724, %v764
        %v768 = vadd.f32 %v725, %v764
        %v769 = vadd.f32 %v726, %v764
        %v770 = vadd.f32 %v727, %v764
        %v771 = vadd.f32 %v728, %v764
        %v772 = vadd.f32 %v729, %v764
        %v773 = vadd.f32 %v730, %v764
        %v774 = vadd.f32 %v731, %v764
        %v775 = vadd.f32 %v732, %v764
        %v776 = vadd.f32 %v733, %v764
        %v777 = vadd.f32 %v734, %v764
        %v778 = vadd.f32 %v735, %v764
        %v779 = vadd.f32 %v736, %v764
        %v780 = vadd.f32 %v737, %v764
        %v781 = vadd.f32 %v738, %v764
        %v782 = vadd.f32 %v739, %v764
        %v783 = vadd.f32 %v740, %v764
        %v784 = vadd.f32 %v741, %v764
        %v785 = vadd.f32 %v742, %v764
        %v786 = vadd.f32 %v743, %v764
        %v787 = vadd.f32 %v744, %v764
        %v788 = vadd.f32 %v745, %v764
        %v789 = vadd.f32 %v746, %v764
        %v790 = vadd.f32 %v747, %v764
        %v791 = vadd.f32 %v748, %v764
        %v792 = vadd.f32 %v749, %v764
        %v793 = vadd.f32 %v750, %v764
        %v794 = vadd.f32 %v751, %v764
        %v795 = vadd.f32 %v752, %v764
        %v796 = vadd.f32 %v753, %v764
        %v797 = vadd.f32 %v754, %v764
        %v798 = vadd.f32 %v755, %v764
        %v799 = vadd.f32 %v756, %v764
        %v800 = vadd.f32 %v757, %v764
        %v801 = vadd.f32 %v758, %v764
        %vm802 = vcmp.gt.f32.partialorder %v766, 0.0
        %vm803 = vcmp.gt.f32.partialorder %v767, 0.0
        %vm804 = vcmp.gt.f32.partialorder %v768, 0.0
        %vm805 = vcmp.gt.f32.partialorder %v769, 0.0
        %vm806 = vcmp.gt.f32.partialorder %v770, 0.0
        %vm807 = vcmp.gt.f32.partialorder %v771, 0.0
        %vm808 = vcmp.gt.f32.partialorder %v772, 0.0
        %vm809 = vcmp.gt.f32.partialorder %v773, 0.0
        %vm810 = vcmp.gt.f32.partialorder %v774, 0.0
        %vm811 = vcmp.gt.f32.partialorder %v775, 0.0
        %vm812 = vcmp.gt.f32.partialorder %v776, 0.0
        %vm813 = vcmp.gt.f32.partialorder %v777, 0.0
        %vm814 = vcmp.gt.f32.partialorder %v778, 0.0
        %vm815 = vcmp.gt.f32.partialorder %v779, 0.0
        %vm816 = vcmp.gt.f32.partialorder %v780, 0.0
        %vm817 = vcmp.gt.f32.partialorder %v781, 0.0
        %vm818 = vcmp.gt.f32.partialorder %v782, 0.0
        %vm819 = vcmp.gt.f32.partialorder %v783, 0.0
        %vm820 = vcmp.gt.f32.partialorder %v784, 0.0
        %vm821 = vcmp.gt.f32.partialorder %v785, 0.0
        %vm822 = vcmp.gt.f32.partialorder %v786, 0.0
        %vm823 = vcmp.gt.f32.partialorder %v787, 0.0
        %vm824 = vcmp.gt.f32.partialorder %v788, 0.0
        %vm825 = vcmp.gt.f32.partialorder %v789, 0.0
        %vm826 = vcmp.gt.f32.partialorder %v790, 0.0
        %vm827 = vcmp.gt.f32.partialorder %v791, 0.0
        %vm828 = vcmp.gt.f32.partialorder %v792, 0.0
        %vm829 = vcmp.gt.f32.partialorder %v793, 0.0
        %vm830 = vcmp.gt.f32.partialorder %v794, 0.0
        %vm831 = vcmp.gt.f32.partialorder %v795, 0.0
        %vm832 = vcmp.gt.f32.partialorder %v796, 0.0
        %vm833 = vcmp.gt.f32.partialorder %v797, 0.0
        %vm834 = vcmp.gt.f32.partialorder %v798, 0.0
        %vm835 = vcmp.gt.f32.partialorder %v799, 0.0
        %vm836 = vcmp.gt.f32.partialorder %v800, 0.0
        %vm837 = vcmp.gt.f32.partialorder %v801, 0.0
        %v838 = vmul.f32 %v766, 0.01
        %v839 = vmul.f32 %v767, 0.01
        %v840 = vmul.f32 %v768, 0.01
        %v841 = vmul.f32 %v769, 0.01
        %v842 = vmul.f32 %v770, 0.01
        %v843 = vmul.f32 %v771, 0.01
        %v844 = vmul.f32 %v772, 0.01
        %v845 = vmul.f32 %v773, 0.01
        %v846 = vmul.f32 %v774, 0.01
        %v847 = vmul.f32 %v775, 0.01
        %v848 = vmul.f32 %v776, 0.01
        %v849 = vmul.f32 %v777, 0.01
        %v850 = vmul.f32 %v778, 0.01
        %v851 = vmul.f32 %v779, 0.01
        %v852 = vmul.f32 %v780, 0.01
        %v853 = vmul.f32 %v781, 0.01
        %v854 = vmul.f32 %v782, 0.01
        %v855 = vmul.f32 %v783, 0.01
        %v856 = vmul.f32 %v784, 0.01
        %v857 = vmul.f32 %v785, 0.01
        %v858 = vmul.f32 %v786, 0.01
        %v859 = vmul.f32 %v787, 0.01
        %v860 = vmul.f32 %v788, 0.01
        %v861 = vmul.f32 %v789, 0.01
        %v862 = vmul.f32 %v790, 0.01
        %v863 = vmul.f32 %v791, 0.01
        %v864 = vmul.f32 %v792, 0.01
        %v865 = vmul.f32 %v793, 0.01
        %v866 = vmul.f32 %v794, 0.01
        %v867 = vmul.f32 %v795, 0.01
        %v868 = vmul.f32 %v796, 0.01
        %v869 = vmul.f32 %v797, 0.01
        %v870 = vmul.f32 %v798, 0.01
        %v871 = vmul.f32 %v799, 0.01
        %v872 = vmul.f32 %v800, 0.01
        %v873 = vmul.f32 %v801, 0.01
        %v874 = vsel %vm802, %v766, %v838
        %v875 = vsel %vm803, %v767, %v839
        %v876 = vsel %vm804, %v768, %v840
        %v877 = vsel %vm805, %v769, %v841
        %v878 = vsel %vm806, %v770, %v842
        %v879 = vsel %vm807, %v771, %v843
        %v880 = vsel %vm808, %v772, %v844
        %v881 = vsel %vm809, %v773, %v845
        %v882 = vsel %vm810, %v774, %v846
        %v883 = vsel %vm811, %v775, %v847
        %v884 = vsel %vm812, %v776, %v848
        %v885 = vsel %vm813, %v777, %v849
        %v886 = vsel %vm814, %v778, %v850
        %v887 = vsel %vm815, %v779, %v851
        %v888 = vsel %vm816, %v780, %v852
        %v889 = vsel %vm817, %v781, %v853
        %v890 = vsel %vm818, %v782, %v854
        %v891 = vsel %vm819, %v783, %v855
        %v892 = vsel %vm820, %v784, %v856
        %v893 = vsel %vm821, %v785, %v857
        %v894 = vsel %vm822, %v786, %v858
        %v895 = vsel %vm823, %v787, %v859
        %v896 = vsel %vm824, %v788, %v860
        %v897 = vsel %vm825, %v789, %v861
        %v898 = vsel %vm826, %v790, %v862
        %v899 = vsel %vm827, %v791, %v863
        %v900 = vsel %vm828, %v792, %v864
        %v901 = vsel %vm829, %v793, %v865
        %v902 = vsel %vm830, %v794, %v866
        %v903 = vsel %vm831, %v795, %v867
        %v904 = vsel %vm832, %v796, %v868
        %v905 = vsel %vm833, %v797, %v869
        %v906 = vsel %vm834, %v798, %v870
        %v907 = vsel %vm835, %v799, %v871
        %v908 = vsel %vm836, %v800, %v872
        %v909 = vsel %vm837, %v801, %v873
        %v910 = vpack.c.bf16 %v875, %v874
        %v911 = vpack.c.bf16 %v877, %v876
        %v912 = vpack.c.bf16 %v879, %v878
        %v913 = vpack.c.bf16 %v881, %v880
        %v914 = vpack.c.bf16 %v883, %v882
        %v915 = vpack.c.bf16 %v885, %v884
        %v916 = vpack.c.bf16 %v887, %v886
        %v917 = vpack.c.bf16 %v889, %v888
        %v918 = vpack.c.bf16 %v891, %v890
        %v919 = vpack.c.bf16 %v893, %v892
        %v920 = vpack.c.bf16 %v895, %v894
        %v921 = vpack.c.bf16 %v897, %v896
        %v922 = vpack.c.bf16 %v899, %v898
        %v923 = vpack.c.bf16 %v901, %v900
        %v924 = vpack.c.bf16 %v903, %v902
        %v925 = vpack.c.bf16 %v905, %v904
        %v926 = vpack.c.bf16 %v907, %v906
        %v927 = vpack.c.bf16 %v909, %v908
        %v929 = vshrl.u32 %v910, 16
        %v931 = vrot.slane %v929, 7
        %v932 = vshll.u32 %v910, 16
        %v934 = vor.u32 %v931, %v932
        %v936 = vshrl.u32 %v911, 16
        %v938 = vrot.slane %v936, 7
        %v939 = vshll.u32 %v911, 16
        %v941 = vor.u32 %v938, %v939
        %v943 = vshrl.u32 %v912, 16
        %v945 = vrot.slane %v943, 7
        %v946 = vshll.u32 %v912, 16
        %v948 = vor.u32 %v945, %v946
        %v950 = vshrl.u32 %v913, 16
        %v952 = vrot.slane %v950, 7
        %v953 = vshll.u32 %v913, 16
        %v955 = vor.u32 %v952, %v953
        %v957 = vshrl.u32 %v914, 16
        %v959 = vrot.slane %v957, 7
        %v960 = vshll.u32 %v914, 16
        %v962 = vor.u32 %v959, %v960
        %v964 = vshrl.u32 %v915, 16
        %v966 = vrot.slane %v964, 7
        %v967 = vshll.u32 %v915, 16
        %v969 = vor.u32 %v966, %v967
        %v971 = vshrl.u32 %v916, 16
        %v973 = vrot.slane %v971, 7
        %v974 = vshll.u32 %v916, 16
        %v976 = vor.u32 %v973, %v974
        %v978 = vshrl.u32 %v917, 16
        %v980 = vrot.slane %v978, 7
        %v981 = vshll.u32 %v917, 16
        %v983 = vor.u32 %v980, %v981
        %v985 = vshrl.u32 %v918, 16
        %v987 = vrot.slane %v985, 7
        %v988 = vshll.u32 %v918, 16
        %v990 = vor.u32 %v987, %v988
        %v992 = vshrl.u32 %v919, 16
        %v994 = vrot.slane %v992, 7
        %v995 = vshll.u32 %v919, 16
        %v997 = vor.u32 %v994, %v995
        %v999 = vshrl.u32 %v920, 16
        %v1001 = vrot.slane %v999, 7
        %v1002 = vshll.u32 %v920, 16
        %v1004 = vor.u32 %v1001, %v1002
        %v1006 = vshrl.u32 %v921, 16
        %v1008 = vrot.slane %v1006, 7
        %v1009 = vshll.u32 %v921, 16
        %v1011 = vor.u32 %v1008, %v1009
        %v1013 = vshrl.u32 %v922, 16
        %v1015 = vrot.slane %v1013, 7
        %v1016 = vshll.u32 %v922, 16
        %v1018 = vor.u32 %v1015, %v1016
        %v1020 = vshrl.u32 %v923, 16
        %v1022 = vrot.slane %v1020, 7
        %v1023 = vshll.u32 %v923, 16
        %v1025 = vor.u32 %v1022, %v1023
        %v1027 = vshrl.u32 %v924, 16
        %v1029 = vrot.slane %v1027, 7
        %v1030 = vshll.u32 %v924, 16
        %v1032 = vor.u32 %v1029, %v1030
        %v1034 = vshrl.u32 %v925, 16
        %v1036 = vrot.slane %v1034, 7
        %v1037 = vshll.u32 %v925, 16
        %v1039 = vor.u32 %v1036, %v1037
        %v1041 = vshrl.u32 %v926, 16
        %v1043 = vrot.slane %v1041, 7
        %v1044 = vshll.u32 %v926, 16
        %v1046 = vor.u32 %v1043, %v1044
        %v1048 = vshrl.u32 %v927, 16
        %v1050 = vrot.slane %v1048, 7
        %v1051 = vshll.u32 %v927, 16
        %v1053 = vor.u32 %v1050, %v1051
        %vm1072 = vcmask 1040384
        %vm1073 = vsmask.f32 256
        %vm1074 = vmand %vm1072, %vm1073
        %v1075 = vsel %vm1074, 0, %v934
        %v1076 = vsel %vm1074, 0, %v941
        %v1077 = vsel %vm1074, 0, %v948
        %v1078 = vsel %vm1074, 0, %v955
        %v1079 = vsel %vm1074, 0, %v962
        %v1080 = vsel %vm1074, 0, %v969
        %v1081 = vsel %vm1074, 0, %v976
        %v1082 = vsel %vm1074, 0, %v983
        %v1083 = vsel %vm1074, 0, %v990
        %v1084 = vsel %vm1074, 0, %v997
        %v1085 = vsel %vm1074, 0, %v1004
        %v1086 = vsel %vm1074, 0, %v1011
        %v1087 = vsel %vm1074, 0, %v1018
        %v1088 = vsel %vm1074, 0, %v1025
        %v1089 = vsel %vm1074, 0, %v1032
        %v1090 = vsel %vm1074, 0, %v1039
        %v1091 = vsel %vm1074, 0, %v1046
        %v1092 = vsel %vm1074, 0, %v1053
        %v1093 = vrot.slane %v932, 1
        %v1094 = vor.u32 %v929, %v1093
        %v1095 = vrot.slane %v939, 1
        %v1096 = vor.u32 %v936, %v1095
        %v1097 = vrot.slane %v946, 1
        %v1098 = vor.u32 %v943, %v1097
        %v1099 = vrot.slane %v953, 1
        %v1100 = vor.u32 %v950, %v1099
        %v1101 = vrot.slane %v960, 1
        %v1102 = vor.u32 %v957, %v1101
        %v1103 = vrot.slane %v967, 1
        %v1104 = vor.u32 %v964, %v1103
        %v1105 = vrot.slane %v974, 1
        %v1106 = vor.u32 %v971, %v1105
        %v1107 = vrot.slane %v981, 1
        %v1108 = vor.u32 %v978, %v1107
        %v1109 = vrot.slane %v988, 1
        %v1110 = vor.u32 %v985, %v1109
        %v1111 = vrot.slane %v995, 1
        %v1112 = vor.u32 %v992, %v1111
        %v1113 = vrot.slane %v1002, 1
        %v1114 = vor.u32 %v999, %v1113
        %v1115 = vrot.slane %v1009, 1
        %v1116 = vor.u32 %v1006, %v1115
        %v1117 = vrot.slane %v1016, 1
        %v1118 = vor.u32 %v1013, %v1117
        %v1119 = vrot.slane %v1023, 1
        %v1120 = vor.u32 %v1020, %v1119
        %v1121 = vrot.slane %v1030, 1
        %v1122 = vor.u32 %v1027, %v1121
        %v1123 = vrot.slane %v1037, 1
        %v1124 = vor.u32 %v1034, %v1123
        %v1125 = vrot.slane %v1044, 1
        %v1126 = vor.u32 %v1041, %v1125
        %v1127 = vrot.slane %v1051, 1
        %v1128 = vor.u32 %v1048, %v1127
        %vm1147 = vcmask 1047552
        %vm1148 = vsmask.f32 7424
        %vm1149 = vmand %vm1147, %vm1148
        %v1150 = vsel %vm1149, %v1094, 0
        %v1151 = vsel %vm1149, %v1096, 0
        %v1152 = vsel %vm1149, %v1098, 0
        %v1153 = vsel %vm1149, %v1100, 0
        %v1154 = vsel %vm1149, %v1102, 0
        %v1155 = vsel %vm1149, %v1104, 0
        %v1156 = vsel %vm1149, %v1106, 0
        %v1157 = vsel %vm1149, %v1108, 0
        %v1158 = vsel %vm1149, %v1110, 0
        %v1159 = vsel %vm1149, %v1112, 0
        %v1160 = vsel %vm1149, %v1114, 0
        %v1161 = vsel %vm1149, %v1116, 0
        %v1162 = vsel %vm1149, %v1118, 0
        %v1163 = vsel %vm1149, %v1120, 0
        %v1164 = vsel %vm1149, %v1122, 0
        %v1165 = vsel %vm1149, %v1124, 0
        %v1166 = vsel %vm1149, %v1126, 0
        %v1167 = vsel %vm1149, %v1128, 0
        %1168 = vst [vmem:[#allocation2] sm:$0xff] %v1075
        %1169 = vst [vmem:[#allocation2 + $0x18] sm:$0xff] %v1076
        %1170 = vst [vmem:[#allocation2 + $0x30] sm:$0xff] %v1077
        %1171 = vst [vmem:[#allocation2 + $0x48] sm:$0xff] %v1078
        %1172 = vst [vmem:[#allocation2 + $0x60] sm:$0xff] %v1079
        %1173 = vst [vmem:[#allocation2 + $0x78] sm:$0xff] %v1080
        %1174 = vst [vmem:[#allocation2 + $0x90] sm:$0xff] %v1081
        %1175 = vst [vmem:[#allocation2 + $0xa8] sm:$0xff] %v1082
        %1176 = vst [vmem:[#allocation2 + $0xc0] sm:$0xff] %v1083
        %1177 = vst [vmem:[#allocation2 + $0xd8] sm:$0xff] %v1084
        %1178 = vst [vmem:[#allocation2 + $0xf0] sm:$0xff] %v1085
        %1179 = vst [vmem:[#allocation2 + $0x108] sm:$0xff] %v1086
        %1180 = vst [vmem:[#allocation2 + $0x120] sm:$0xff] %v1087
        %1181 = vst [vmem:[#allocation2 + $0x138] sm:$0xff] %v1088
        %1182 = vst [vmem:[#allocation2 + $0x150] sm:$0xff] %v1089
        %1183 = vst [vmem:[#allocation2 + $0x168] sm:$0xff] %v1090
        %1184 = vst [vmem:[#allocation2 + $0x180] sm:$0xff] %v1091
        %1185 = vst [vmem:[#allocation2 + $0x198] sm:$0xff] %v1092
        %1186 = vst [vmem:[#allocation2 + $0x8] sm:$0xff] %v910
        %1187 = vst [vmem:[#allocation2 + $0x20] sm:$0xff] %v911
        %1188 = vst [vmem:[#allocation2 + $0x38] sm:$0xff] %v912
        %1189 = vst [vmem:[#allocation2 + $0x50] sm:$0xff] %v913
        %1190 = vst [vmem:[#allocation2 + $0x68] sm:$0xff] %v914
        %1191 = vst [vmem:[#allocation2 + $0x80] sm:$0xff] %v915
        %1192 = vst [vmem:[#allocation2 + $0x98] sm:$0xff] %v916
        %1193 = vst [vmem:[#allocation2 + $0xb0] sm:$0xff] %v917
        %1194 = vst [vmem:[#allocation2 + $0xc8] sm:$0xff] %v918
        %1195 = vst [vmem:[#allocation2 + $0xe0] sm:$0xff] %v919
        %1196 = vst [vmem:[#allocation2 + $0xf8] sm:$0xff] %v920
        %1197 = vst [vmem:[#allocation2 + $0x110] sm:$0xff] %v921
        %1198 = vst [vmem:[#allocation2 + $0x128] sm:$0xff] %v922
        %1199 = vst [vmem:[#allocation2 + $0x140] sm:$0xff] %v923
        %1200 = vst [vmem:[#allocation2 + $0x158] sm:$0xff] %v924
        %1201 = vst [vmem:[#allocation2 + $0x170] sm:$0xff] %v925
        %1202 = vst [vmem:[#allocation2 + $0x188] sm:$0xff] %v926
        %1203 = vst [vmem:[#allocation2 + $0x1a0] sm:$0xff] %v927
        %1204 = vst [vmem:[#allocation2 + $0x10] sm:$0xff] %v1150
        %1205 = vst [vmem:[#allocation2 + $0x28] sm:$0xff] %v1151
        %1206 = vst [vmem:[#allocation2 + $0x40] sm:$0xff] %v1152
        %1207 = vst [vmem:[#allocation2 + $0x58] sm:$0xff] %v1153
        %1208 = vst [vmem:[#allocation2 + $0x70] sm:$0xff] %v1154
        %1209 = vst [vmem:[#allocation2 + $0x88] sm:$0xff] %v1155
        %1210 = vst [vmem:[#allocation2 + $0xa0] sm:$0xff] %v1156
        %1211 = vst [vmem:[#allocation2 + $0xb8] sm:$0xff] %v1157
        %1212 = vst [vmem:[#allocation2 + $0xd0] sm:$0xff] %v1158
        %1213 = vst [vmem:[#allocation2 + $0xe8] sm:$0xff] %v1159
        %1214 = vst [vmem:[#allocation2 + $0x100] sm:$0xff] %v1160
        %1215 = vst [vmem:[#allocation2 + $0x118] sm:$0xff] %v1161
        %1216 = vst [vmem:[#allocation2 + $0x130] sm:$0xff] %v1162
        %1217 = vst [vmem:[#allocation2 + $0x148] sm:$0xff] %v1163
        %1218 = vst [vmem:[#allocation2 + $0x160] sm:$0xff] %v1164
        %1219 = vst [vmem:[#allocation2 + $0x178] sm:$0xff] %v1165
        %1220 = vst [vmem:[#allocation2 + $0x190] sm:$0xff] %v1166
        %1221 = vst [vmem:[#allocation2 + $0x1a8] sm:$0xff] %v1167
        %p1222 = scmp.eq.s32.totalorder %s34, 0
        // Predicated region
        $region69: #{tpu_custom_call.1} parent=51 // pred_check
          %p1223 = pneg %p1222
        $region70: #{tpu_custom_call.1} parent=51 // pred_check_branch
          %1225 = sbr.rel (%p1223) target = $region72
        $region71: #{tpu_custom_call.1} parent=51 // pred_region
          %1226 = vst [vmem:[#allocation2] sm:$0xff] 0
          %1227 = vst [vmem:[#allocation2 + $0x8] sm:$0xff] 0
          %1228 = vst [vmem:[#allocation2 + $0x10] sm:$0xff] 0
          %1229 = vst [vmem:[#allocation2 + $0x198] sm:$0xff] 0
          %1230 = vst [vmem:[#allocation2 + $0x1a0] sm:$0xff] 0
          %1231 = vst [vmem:[#allocation2 + $0x1a8] sm:$0xff] 0
        $region72: #{tpu_custom_call.1} parent=51 // pred_fallthru
          _
        %v1232 = vld [vmem:[#allocation2] sm:$0xff]
        %v1233 = vld [vmem:[#allocation2 + $0x8] sm:$0xff]
        %v1234 = vld [vmem:[#allocation2 + $0x10] sm:$0xff]
        %v1235 = vld [vmem:[#allocation2 + $0x18] sm:$0xff]
        %v1236 = vld [vmem:[#allocation2 + $0x20] sm:$0xff]
        %v1237 = vld [vmem:[#allocation2 + $0x28] sm:$0xff]
        %v1238 = vld [vmem:[#allocation2 + $0x30] sm:$0xff]
        %v1239 = vld [vmem:[#allocation2 + $0x38] sm:$0xff]
        %v1240 = vld [vmem:[#allocation2 + $0x40] sm:$0xff]
        %v1241 = vld [vmem:[#allocation2 + $0x48] sm:$0xff]
        %v1242 = vld [vmem:[#allocation2 + $0x50] sm:$0xff]
        %v1243 = vld [vmem:[#allocation2 + $0x58] sm:$0xff]
        %v1244 = vld [vmem:[#allocation2 + $0x60] sm:$0xff]
        %v1245 = vld [vmem:[#allocation2 + $0x68] sm:$0xff]
        %v1246 = vld [vmem:[#allocation2 + $0x70] sm:$0xff]
        %v1247 = vld [vmem:[#allocation2 + $0x78] sm:$0xff]
        %v1248 = vld [vmem:[#allocation2 + $0x80] sm:$0xff]
        %v1249 = vld [vmem:[#allocation2 + $0x88] sm:$0xff]
        %v1250 = vld [vmem:[#allocation2 + $0x90] sm:$0xff]
        %v1251 = vld [vmem:[#allocation2 + $0x98] sm:$0xff]
        %v1252 = vld [vmem:[#allocation2 + $0xa0] sm:$0xff]
        %v1253 = vld [vmem:[#allocation2 + $0xa8] sm:$0xff]
        %v1254 = vld [vmem:[#allocation2 + $0xb0] sm:$0xff]
        %v1255 = vld [vmem:[#allocation2 + $0xb8] sm:$0xff]
        %v1256 = vld [vmem:[#allocation2 + $0xc0] sm:$0xff]
        %v1257 = vld [vmem:[#allocation2 + $0xc8] sm:$0xff]
        %v1258 = vld [vmem:[#allocation2 + $0xd0] sm:$0xff]
        %v1259 = vld [vmem:[#allocation2 + $0xd8] sm:$0xff]
        %v1260 = vld [vmem:[#allocation2 + $0xe0] sm:$0xff]
        %v1261 = vld [vmem:[#allocation2 + $0xe8] sm:$0xff]
        %v1262 = vld [vmem:[#allocation2 + $0xf0] sm:$0xff]
        %v1263 = vld [vmem:[#allocation2 + $0xf8] sm:$0xff]
        %v1264 = vld [vmem:[#allocation2 + $0x100] sm:$0xff]
        %v1265 = vld [vmem:[#allocation2 + $0x108] sm:$0xff]
        %v1266 = vld [vmem:[#allocation2 + $0x110] sm:$0xff]
        %v1267 = vld [vmem:[#allocation2 + $0x118] sm:$0xff]
        %v1268 = vld [vmem:[#allocation2 + $0x120] sm:$0xff]
        %v1269 = vld [vmem:[#allocation2 + $0x128] sm:$0xff]
        %v1270 = vld [vmem:[#allocation2 + $0x130] sm:$0xff]
        %v1271 = vld [vmem:[#allocation2 + $0x138] sm:$0xff]
        %v1272 = vld [vmem:[#allocation2 + $0x140] sm:$0xff]
        %v1273 = vld [vmem:[#allocation2 + $0x148] sm:$0xff]
        %v1274 = vld [vmem:[#allocation2 + $0x150] sm:$0xff]
        %v1275 = vld [vmem:[#allocation2 + $0x158] sm:$0xff]
        %v1276 = vld [vmem:[#allocation2 + $0x160] sm:$0xff]
        %v1277 = vld [vmem:[#allocation2 + $0x168] sm:$0xff]
        %v1278 = vld [vmem:[#allocation2 + $0x170] sm:$0xff]
        %v1279 = vld [vmem:[#allocation2 + $0x178] sm:$0xff]
        %v1280 = vld [vmem:[#allocation9] sm:$0xf]
        %v1281 = vld [vmem:[#allocation9 + $0x4] sm:$0xf]
        %v1282 = vld [vmem:[#allocation9 + $0x8] sm:$0xf]
        %v1283 = vld [vmem:[#allocation9 + $0xc] sm:$0xf]
        %v1284 = vld [vmem:[#allocation9 + $0x10] sm:$0xf]
        %v1285 = vld [vmem:[#allocation9 + $0x14] sm:$0xf]
        %v1286 = vld [vmem:[#allocation9 + $0x18] sm:$0xf]
        %v1287 = vld [vmem:[#allocation9 + $0x1c] sm:$0xf]
        %v1288 = vld [vmem:[#allocation9 + $0x20] sm:$0xf]
        %v1289 = vld [vmem:[#allocation9 + $0x24] sm:$0xf]
        %v1290 = vld [vmem:[#allocation9 + $0x28] sm:$0xf]
        %v1291 = vld [vmem:[#allocation9 + $0x2c] sm:$0xf]
        %v1292 = vld [vmem:[#allocation9 + $0x30] sm:$0xf]
        %v1293 = vld [vmem:[#allocation9 + $0x34] sm:$0xf]
        %v1294 = vld [vmem:[#allocation9 + $0x38] sm:$0xf]
        %v1295 = vld [vmem:[#allocation9 + $0x3c] sm:$0xf]
        %v1296 = vld [vmem:[#allocation9 + $0x40] sm:$0xf]
        %v1297 = vld [vmem:[#allocation9 + $0x44] sm:$0xf]
        %v1298 = vld [vmem:[#allocation9 + $0x48] sm:$0xf]
        %v1299 = vld [vmem:[#allocation9 + $0x4c] sm:$0xf]
        %v1300 = vld [vmem:[#allocation9 + $0x50] sm:$0xf]
        %v1301 = vld [vmem:[#allocation9 + $0x54] sm:$0xf]
        %v1302 = vld [vmem:[#allocation9 + $0x58] sm:$0xf]
        %v1303 = vld [vmem:[#allocation9 + $0x5c] sm:$0xf]
        %v1304 = vld [vmem:[#allocation9 + $0x60] sm:$0xf]
        %v1305 = vld [vmem:[#allocation9 + $0x64] sm:$0xf]
        %v1306 = vld [vmem:[#allocation9 + $0x68] sm:$0xf]
        %v1307 = vld [vmem:[#allocation9 + $0x6c] sm:$0xf]
        %v1308 = vld [vmem:[#allocation9 + $0x70] sm:$0xf]
        %v1309 = vld [vmem:[#allocation9 + $0x74] sm:$0xf]
        %v1310 = vld [vmem:[#allocation9 + $0x78] sm:$0xf]
        %v1311 = vld [vmem:[#allocation9 + $0x7c] sm:$0xf]
        %v1312 = vld [vmem:[#allocation9 + $0x80] sm:$0xf]
        %v1313 = vld [vmem:[#allocation9 + $0x84] sm:$0xf]
        %v1314 = vld [vmem:[#allocation9 + $0x88] sm:$0xf]
        %v1315 = vld [vmem:[#allocation9 + $0x8c] sm:$0xf]
        %v1316 = vld [vmem:[#allocation9 + $0x90] sm:$0xf]
        %v1317 = vld [vmem:[#allocation9 + $0x94] sm:$0xf]
        %v1318 = vld [vmem:[#allocation9 + $0x98] sm:$0xf]
        %v1319 = vld [vmem:[#allocation9 + $0x9c] sm:$0xf]
        %v1320 = vld [vmem:[#allocation9 + $0xa0] sm:$0xf]
        %v1321 = vld [vmem:[#allocation9 + $0xa4] sm:$0xf]
        %v1322 = vld [vmem:[#allocation9 + $0xa8] sm:$0xf]
        %v1323 = vld [vmem:[#allocation9 + $0xac] sm:$0xf]
        %v1324 = vld [vmem:[#allocation9 + $0xb0] sm:$0xf]
        %v1325 = vld [vmem:[#allocation9 + $0xb4] sm:$0xf]
        %v1326 = vld [vmem:[#allocation9 + $0xb8] sm:$0xf]
        %v1327 = vld [vmem:[#allocation9 + $0xbc] sm:$0xf]
        %v1328 = vld [vmem:[#allocation2 + $0x180] sm:$0xff]
        %v1329 = vld [vmem:[#allocation2 + $0x188] sm:$0xff]
        %v1330 = vld [vmem:[#allocation2 + $0x190] sm:$0xff]
        %s1331 = scalar_lea.vmem [#allocation9], 192
        %v1332 = vld [vmem:[%s1331] sm:$0xf]
        %v1333 = vld [vmem:[%s1331 + $0x4] sm:$0xf]
        %v1334 = vld [vmem:[%s1331 + $0x8] sm:$0xf]
        %v1335 = vld [vmem:[%s1331 + $0xc] sm:$0xf]
        %v1336 = vld [vmem:[%s1331 + $0x10] sm:$0xf]
        %v1337 = vld [vmem:[%s1331 + $0x14] sm:$0xf]
        %v1338 = vld [vmem:[%s1331 + $0x18] sm:$0xf]
        %v1339 = vld [vmem:[%s1331 + $0x1c] sm:$0xf]
        %v1340 = vld [vmem:[%s1331 + $0x20] sm:$0xf]
        %v1341 = vld [vmem:[%s1331 + $0x24] sm:$0xf]
        %v1342 = vld [vmem:[%s1331 + $0x28] sm:$0xf]
        %v1343 = vld [vmem:[%s1331 + $0x2c] sm:$0xf]
        %v1344 = vld [vmem:[%s1331 + $0x30] sm:$0xf]
        %v1345 = vld [vmem:[%s1331 + $0x34] sm:$0xf]
        %v1346 = vld [vmem:[%s1331 + $0x38] sm:$0xf]
        %v1347 = vld [vmem:[%s1331 + $0x3c] sm:$0xf]
        %v1348 = vld [vmem:[%s1331 + $0x40] sm:$0xf]
        %v1349 = vld [vmem:[%s1331 + $0x44] sm:$0xf]
        %v1350 = vld [vmem:[%s1331 + $0x48] sm:$0xf]
        %v1351 = vld [vmem:[%s1331 + $0x4c] sm:$0xf]
        %v1352 = vld [vmem:[%s1331 + $0x50] sm:$0xf]
        %v1353 = vld [vmem:[%s1331 + $0x54] sm:$0xf]
        %v1354 = vld [vmem:[%s1331 + $0x58] sm:$0xf]
        %v1355 = vld [vmem:[%s1331 + $0x5c] sm:$0xf]
        %v1356 = vld [vmem:[%s1331 + $0x60] sm:$0xf]
        %v1357 = vld [vmem:[%s1331 + $0x64] sm:$0xf]
        %v1358 = vld [vmem:[%s1331 + $0x68] sm:$0xf]
        %v1359 = vld [vmem:[%s1331 + $0x6c] sm:$0xf]
        %v1360 = vld [vmem:[%s1331 + $0x70] sm:$0xf]
        %v1361 = vld [vmem:[%s1331 + $0x74] sm:$0xf]
        %v1362 = vld [vmem:[%s1331 + $0x78] sm:$0xf]
        %v1363 = vld [vmem:[%s1331 + $0x7c] sm:$0xf]
        %v1364 = vld [vmem:[%s1331 + $0x80] sm:$0xf]
        %v1365 = vld [vmem:[%s1331 + $0x84] sm:$0xf]
        %v1366 = vld [vmem:[%s1331 + $0x88] sm:$0xf]
        %v1367 = vld [vmem:[%s1331 + $0x8c] sm:$0xf]
        %v1368 = vld [vmem:[%s1331 + $0x90] sm:$0xf]
        %v1369 = vld [vmem:[%s1331 + $0x94] sm:$0xf]
        %v1370 = vld [vmem:[%s1331 + $0x98] sm:$0xf]
        %v1371 = vld [vmem:[%s1331 + $0x9c] sm:$0xf]
        %v1372 = vld [vmem:[%s1331 + $0xa0] sm:$0xf]
        %v1373 = vld [vmem:[%s1331 + $0xa4] sm:$0xf]
        %v1374 = vld [vmem:[%s1331 + $0xa8] sm:$0xf]
        %v1375 = vld [vmem:[%s1331 + $0xac] sm:$0xf]
        %v1376 = vld [vmem:[%s1331 + $0xb0] sm:$0xf]
        %v1377 = vld [vmem:[%s1331 + $0xb4] sm:$0xf]
        %v1378 = vld [vmem:[%s1331 + $0xb8] sm:$0xf]
        %v1379 = vld [vmem:[%s1331 + $0xbc] sm:$0xf]
        %v1428 = vunpack.c.l.b16 %v1332
        %v1429 = vunpack.c.l.b16 %v1333
        %v1430 = vunpack.c.l.b16 %v1334
        %v1431 = vunpack.c.l.b16 %v1335
        %v1432 = vunpack.c.l.b16 %v1336
        %v1433 = vunpack.c.l.b16 %v1337
        %v1434 = vunpack.c.l.b16 %v1338
        %v1435 = vunpack.c.l.b16 %v1339
        %v1436 = vunpack.c.l.b16 %v1340
        %v1437 = vunpack.c.l.b16 %v1341
        %v1438 = vunpack.c.l.b16 %v1342
        %v1439 = vunpack.c.l.b16 %v1343
        %v1440 = vunpack.c.l.b16 %v1344
        %v1441 = vunpack.c.l.b16 %v1345
        %v1442 = vunpack.c.l.b16 %v1346
        %v1443 = vunpack.c.l.b16 %v1347
        %v1444 = vunpack.c.l.b16 %v1348
        %v1445 = vunpack.c.l.b16 %v1349
        %v1446 = vunpack.c.l.b16 %v1350
        %v1447 = vunpack.c.l.b16 %v1351
        %v1448 = vunpack.c.l.b16 %v1352
        %v1449 = vunpack.c.l.b16 %v1353
        %v1450 = vunpack.c.l.b16 %v1354
        %v1451 = vunpack.c.l.b16 %v1355
        %v1452 = vunpack.c.l.b16 %v1356
        %v1453 = vunpack.c.l.b16 %v1357
        %v1454 = vunpack.c.l.b16 %v1358
        %v1455 = vunpack.c.l.b16 %v1359
        %v1456 = vunpack.c.l.b16 %v1360
        %v1457 = vunpack.c.l.b16 %v1361
        %v1458 = vunpack.c.l.b16 %v1362
        %v1459 = vunpack.c.l.b16 %v1363
        %v1460 = vunpack.c.l.b16 %v1364
        %v1461 = vunpack.c.l.b16 %v1365
        %v1462 = vunpack.c.l.b16 %v1366
        %v1463 = vunpack.c.l.b16 %v1367
        %v1464 = vunpack.c.l.b16 %v1368
        %v1465 = vunpack.c.l.b16 %v1369
        %v1466 = vunpack.c.l.b16 %v1370
        %v1467 = vunpack.c.l.b16 %v1371
        %v1468 = vunpack.c.l.b16 %v1372
        %v1469 = vunpack.c.l.b16 %v1373
        %v1470 = vunpack.c.l.b16 %v1374
        %v1471 = vunpack.c.l.b16 %v1375
        %v1472 = vunpack.c.l.b16 %v1376
        %v1473 = vunpack.c.l.b16 %v1377
        %v1474 = vunpack.c.l.b16 %v1378
        %v1475 = vunpack.c.l.b16 %v1379
        %v1476 = vpack.c.b16 %v1429, %v1428
        %v1477 = vpack.c.b16 %v1431, %v1430
        %v1478 = vpack.c.b16 %v1433, %v1432
        %v1479 = vpack.c.b16 %v1435, %v1434
        %v1480 = vpack.c.b16 %v1437, %v1436
        %v1481 = vpack.c.b16 %v1439, %v1438
        %v1482 = vpack.c.b16 %v1441, %v1440
        %v1483 = vpack.c.b16 %v1443, %v1442
        %v1484 = vpack.c.b16 %v1445, %v1444
        %v1485 = vpack.c.b16 %v1447, %v1446
        %v1486 = vpack.c.b16 %v1449, %v1448
        %v1487 = vpack.c.b16 %v1451, %v1450
        %v1488 = vpack.c.b16 %v1453, %v1452
        %v1489 = vpack.c.b16 %v1455, %v1454
        %v1490 = vpack.c.b16 %v1457, %v1456
        %v1491 = vpack.c.b16 %v1459, %v1458
        %v1492 = vpack.c.b16 %v1461, %v1460
        %v1493 = vpack.c.b16 %v1463, %v1462
        %v1494 = vpack.c.b16 %v1465, %v1464
        %v1495 = vpack.c.b16 %v1467, %v1466
        %v1496 = vpack.c.b16 %v1469, %v1468
        %v1497 = vpack.c.b16 %v1471, %v1470
        %v1498 = vpack.c.b16 %v1473, %v1472
        %v1499 = vpack.c.b16 %v1475, %v1474
        %1524 = vmatprep.subr.bf16.mxu0 0
        %1525 = vmatpush1.bf16.msra.mxu0 %v1476
        %1526 = vmatprep.subr.bf16.mxu0 0
        %1527 = vmatpush1.bf16.msra.mxu0 %v1477
        %1528 = vmatprep.subr.bf16.mxu0 0
        %1529 = vmatpush1.bf16.msra.mxu0 %v1478
        %1530 = vmatprep.subr.bf16.mxu0 0
        %1531 = vmatpush1.bf16.msra.mxu0 %v1479
        %1532 = vmatprep.subr.bf16.mxu0 0
        %1533 = vmatpush1.bf16.msra.mxu0 %v1480
        %1534 = vmatprep.subr.bf16.mxu0 0
        %1535 = vmatpush1.bf16.msra.mxu0 %v1481
        %1536 = vmatprep.subr.bf16.mxu0 0
        %1537 = vmatpush1.bf16.msra.mxu0 %v1482
        %1538 = vmatprep.subr.bf16.mxu0 0
        %1539 = vmatpush1.bf16.msra.mxu0 %v1483
        %1540 = vmatprep.subr.bf16.mxu0 0
        %1541 = vmatpush1.bf16.msra.mxu0 %v1484
        %1542 = vmatprep.subr.bf16.mxu0 0
        %1543 = vmatpush1.bf16.msra.mxu0 %v1485
        %1544 = vmatprep.subr.bf16.mxu0 0
        %1545 = vmatpush1.bf16.msra.mxu0 %v1486
        %1546 = vmatprep.subr.bf16.mxu0 0
        %1547 = vmatpush1.bf16.msra.mxu0 %v1487
        %1548 = vmatprep.subr.bf16.mxu0 0
        %1549 = vmatpush1.bf16.msra.mxu0 %v1488
        %1550 = vmatprep.subr.bf16.mxu0 0
        %1551 = vmatpush1.bf16.msra.mxu0 %v1489
        %1552 = vmatprep.subr.bf16.mxu0 0
        %1553 = vmatpush1.bf16.msra.mxu0 %v1490
        %1554 = vmatprep.subr.bf16.mxu0 0
        %1555 = vmatpush1.bf16.msra.mxu0 %v1491
        %1556 = vmatprep.mubr.bf16.mxu0 %v1236
        %1557 = vmatmul.mubr.bf16.gmra.mrb[0].mxu0 %v1235
        %v1558 = vpop.f32.mrb[0].mxu0
        %v1559 = vadd.f32 0.0, %v1558
        %v1560 = vpop.f32.mrb[0].mxu0
        %v1561 = vpop.f32.mrb[0].mxu0
        %v1562 = vadd.f32 0.0, %v1561
        %v1563 = vpop.f32.mrb[0].mxu0
        %1564 = vmatprep.mubr.bf16.mxu0 %v1239
        %1565 = vmatmul.mubr.bf16.gmra.mrb[0].mxu0 %v1238
        %v1566 = vpop.f32.mrb[0].mxu0
        %v1567 = vadd.f32 0.0, %v1566
        %v1568 = vpop.f32.mrb[0].mxu0
        %v1569 = vpop.f32.mrb[0].mxu0
        %v1570 = vadd.f32 0.0, %v1569
        %v1571 = vpop.f32.mrb[0].mxu0
        %1572 = vmatprep.mubr.bf16.mxu0 %v1242
        %1573 = vmatmul.mubr.bf16.gmra.mrb[0].mxu0 %v1241
        %v1574 = vpop.f32.mrb[0].mxu0
        %v1575 = vadd.f32 0.0, %v1574
        %v1576 = vpop.f32.mrb[0].mxu0
        %v1577 = vpop.f32.mrb[0].mxu0
        %v1578 = vadd.f32 0.0, %v1577
        %v1579 = vpop.f32.mrb[0].mxu0
        %1580 = vmatprep.mubr.bf16.mxu0 %v1245
        %1581 = vmatmul.mubr.bf16.gmra.mrb[0].mxu0 %v1244
        %v1582 = vpop.f32.mrb[0].mxu0
        %v1583 = vadd.f32 0.0, %v1582
        %v1584 = vpop.f32.mrb[0].mxu0
        %v1585 = vpop.f32.mrb[0].mxu0
        %v1586 = vadd.f32 0.0, %v1585
        %v1587 = vpop.f32.mrb[0].mxu0
        %1588 = vmatprep.mubr.bf16.mxu0 %v1248
        %1589 = vmatmul.mubr.bf16.gmra.mrb[0].mxu0 %v1247
        %v1590 = vpop.f32.mrb[0].mxu0
        %v1591 = vadd.f32 0.0, %v1590
        %v1592 = vpop.f32.mrb[0].mxu0
        %v1593 = vpop.f32.mrb[0].mxu0
        %v1594 = vadd.f32 0.0, %v1593
        %v1595 = vpop.f32.mrb[0].mxu0
        %1596 = vmatprep.mubr.bf16.mxu0 %v1251
        %1597 = vmatmul.mubr.bf16.gmra.mrb[0].mxu0 %v1250
        %v1598 = vpop.f32.mrb[0].mxu0
        %v1599 = vadd.f32 0.0, %v1598
        %v1600 = vpop.f32.mrb[0].mxu0
        %v1601 = vpop.f32.mrb[0].mxu0
        %v1602 = vadd.f32 0.0, %v1601
        %v1603 = vpop.f32.mrb[0].mxu0
        %1604 = vmatprep.mubr.bf16.mxu0 %v1254
        %1605 = vmatmul.mubr.bf16.gmra.mrb[0].mxu0 %v1253
        %v1606 = vpop.f32.mrb[0].mxu0
        %v1607 = vadd.f32 0.0, %v1606
        %v1608 = vpop.f32.mrb[0].mxu0
        %v1609 = vpop.f32.mrb[0].mxu0
        %v1610 = vadd.f32 0.0, %v1609
        %v1611 = vpop.f32.mrb[0].mxu0
        %1612 = vmatprep.mubr.bf16.mxu0 %v1257
        %1613 = vmatmul.mubr.bf16.gmra.mrb[0].mxu0 %v1256
        %v1614 = vpop.f32.mrb[0].mxu0
        %v1615 = vadd.f32 0.0, %v1614
        %v1616 = vpop.f32.mrb[0].mxu0
        %v1617 = vpop.f32.mrb[0].mxu0
        %v1618 = vadd.f32 0.0, %v1617
        %v1619 = vpop.f32.mrb[0].mxu0
        %1620 = vmatprep.mubr.bf16.mxu0 %v1260
        %1621 = vmatmul.mubr.bf16.gmra.mrb[0].mxu0 %v1259
        %v1622 = vpop.f32.mrb[0].mxu0
        %v1623 = vadd.f32 0.0, %v1622
        %v1624 = vpop.f32.mrb[0].mxu0
        %v1625 = vpop.f32.mrb[0].mxu0
        %v1626 = vadd.f32 0.0, %v1625
        %v1627 = vpop.f32.mrb[0].mxu0
        %1628 = vmatprep.mubr.bf16.mxu0 %v1263
        %1629 = vmatmul.mubr.bf16.gmra.mrb[0].mxu0 %v1262
        %v1630 = vpop.f32.mrb[0].mxu0
        %v1631 = vadd.f32 0.0, %v1630
        %v1632 = vpop.f32.mrb[0].mxu0
        %v1633 = vpop.f32.mrb[0].mxu0
        %v1634 = vadd.f32 0.0, %v1633
        %v1635 = vpop.f32.mrb[0].mxu0
        %1636 = vmatprep.mubr.bf16.mxu0 %v1266
        %1637 = vmatmul.mubr.bf16.gmra.mrb[0].mxu0 %v1265
        %v1638 = vpop.f32.mrb[0].mxu0
        %v1639 = vadd.f32 0.0, %v1638
        %v1640 = vpop.f32.mrb[0].mxu0
        %v1641 = vpop.f32.mrb[0].mxu0
        %v1642 = vadd.f32 0.0, %v1641
        %v1643 = vpop.f32.mrb[0].mxu0
        %1644 = vmatprep.mubr.bf16.mxu0 %v1269
        %1645 = vmatmul.mubr.bf16.gmra.mrb[0].mxu0 %v1268
        %v1646 = vpop.f32.mrb[0].mxu0
        %v1647 = vadd.f32 0.0, %v1646
        %v1648 = vpop.f32.mrb[0].mxu0
        %v1649 = vpop.f32.mrb[0].mxu0
        %v1650 = vadd.f32 0.0, %v1649
        %v1651 = vpop.f32.mrb[0].mxu0
        %1652 = vmatprep.mubr.bf16.mxu0 %v1272
        %1653 = vmatmul.mubr.bf16.gmra.mrb[0].mxu0 %v1271
        %v1654 = vpop.f32.mrb[0].mxu0
        %v1655 = vadd.f32 0.0, %v1654
        %v1656 = vpop.f32.mrb[0].mxu0
        %v1657 = vpop.f32.mrb[0].mxu0
        %v1658 = vadd.f32 0.0, %v1657
        %v1659 = vpop.f32.mrb[0].mxu0
        %1660 = vmatprep.mubr.bf16.mxu0 %v1275
        %1661 = vmatmul.mubr.bf16.gmra.mrb[0].mxu0 %v1274
        %v1662 = vpop.f32.mrb[0].mxu0
        %v1663 = vadd.f32 0.0, %v1662
        %v1664 = vpop.f32.mrb[0].mxu0
        %v1665 = vpop.f32.mrb[0].mxu0
        %v1666 = vadd.f32 0.0, %v1665
        %v1667 = vpop.f32.mrb[0].mxu0
        %1668 = vmatprep.mubr.bf16.mxu0 %v1278
        %1669 = vmatmul.mubr.bf16.gmra.mrb[0].mxu0 %v1277
        %v1670 = vpop.f32.mrb[0].mxu0
        %v1671 = vadd.f32 0.0, %v1670
        %v1672 = vpop.f32.mrb[0].mxu0
        %v1673 = vpop.f32.mrb[0].mxu0
        %v1674 = vadd.f32 0.0, %v1673
        %v1675 = vpop.f32.mrb[0].mxu0
        %1676 = vmatprep.mubr.bf16.mxu0 %v1329
        %1677 = vmatmul.mubr.bf16.gmra.mrb[0].mxu0 %v1328
        %v1678 = vpop.f32.mrb[0].mxu0
        %v1679 = vadd.f32 0.0, %v1678
        %v1680 = vpop.f32.mrb[0].mxu0
        %v1681 = vpop.f32.mrb[0].mxu0
        %v1682 = vadd.f32 0.0, %v1681
        %v1683 = vpop.f32.mrb[0].mxu0
        %1684 = vdwg.mxu0
        %1685 = vmatprep.subr.bf16.mxu0 0
        %1686 = vmatpush1.bf16.msra.mxu0 %v1492
        %1687 = vmatprep.subr.bf16.mxu0 0
        %1688 = vmatpush1.bf16.msra.mxu0 %v1493
        %1689 = vmatprep.subr.bf16.mxu0 0
        %1690 = vmatpush1.bf16.msra.mxu0 %v1494
        %1691 = vmatprep.subr.bf16.mxu0 0
        %1692 = vmatpush1.bf16.msra.mxu0 %v1495
        %1693 = vmatprep.subr.bf16.mxu0 0
        %1694 = vmatpush1.bf16.msra.mxu0 %v1496
        %1695 = vmatprep.subr.bf16.mxu0 0
        %1696 = vmatpush1.bf16.msra.mxu0 %v1497
        %1697 = vmatprep.subr.bf16.mxu0 0
        %1698 = vmatpush1.bf16.msra.mxu0 %v1498
        %1699 = vmatprep.subr.bf16.mxu0 0
        %1700 = vmatpush1.bf16.msra.mxu0 %v1499
        %1701 = vmatprep.subr.bf16.mxu0 0
        %1702 = vmatpush1.bf16.msra.mxu0 0
        %1703 = vmatprep.subr.bf16.mxu0 0
        %1704 = vmatpush1.bf16.msra.mxu0 0
        %1705 = vmatprep.subr.bf16.mxu0 0
        %1706 = vmatpush1.bf16.msra.mxu0 0
        %1707 = vmatprep.subr.bf16.mxu0 0
        %1708 = vmatpush1.bf16.msra.mxu0 0
        %1709 = vmatprep.subr.bf16.mxu0 0
        %1710 = vmatpush1.bf16.msra.mxu0 0
        %1711 = vmatprep.subr.bf16.mxu0 0
        %1712 = vmatpush1.bf16.msra.mxu0 0
        %1713 = vmatprep.subr.bf16.mxu0 0
        %1714 = vmatpush1.bf16.msra.mxu0 0
        %1715 = vmatprep.subr.bf16.mxu0 0
        %1716 = vmatpush1.bf16.msra.mxu0 0
        %1717 = vmatprep.mubr.bf16.mxu0 0
        %1718 = vmatmul.mubr.bf16.gmra.mrb[0].mxu0 %v1237
        %v1719 = vpop.f32.mrb[0].mxu0
        %v1720 = vadd.f32 %v1559, %v1719
        %v1721 = vpop.f32.mrb[0].mxu0
        %v1722 = vpop.f32.mrb[0].mxu0
        %v1723 = vadd.f32 %v1562, %v1722
        %v1724 = vpop.f32.mrb[0].mxu0
        %1725 = vmatprep.mubr.bf16.mxu0 0
        %1726 = vmatmul.mubr.bf16.gmra.mrb[0].mxu0 %v1240
        %v1727 = vpop.f32.mrb[0].mxu0
        %v1728 = vadd.f32 %v1567, %v1727
        %v1729 = vpop.f32.mrb[0].mxu0
        %v1730 = vpop.f32.mrb[0].mxu0
        %v1731 = vadd.f32 %v1570, %v1730
        %v1732 = vpop.f32.mrb[0].mxu0
        %1733 = vmatprep.mubr.bf16.mxu0 0
        %1734 = vmatmul.mubr.bf16.gmra.mrb[0].mxu0 %v1243
        %v1735 = vpop.f32.mrb[0].mxu0
        %v1736 = vadd.f32 %v1575, %v1735
        %v1737 = vpop.f32.mrb[0].mxu0
        %v1738 = vpop.f32.mrb[0].mxu0
        %v1739 = vadd.f32 %v1578, %v1738
        %v1740 = vpop.f32.mrb[0].mxu0
        %1741 = vmatprep.mubr.bf16.mxu0 0
        %1742 = vmatmul.mubr.bf16.gmra.mrb[0].mxu0 %v1246
        %v1743 = vpop.f32.mrb[0].mxu0
        %v1744 = vadd.f32 %v1583, %v1743
        %v1745 = vpop.f32.mrb[0].mxu0
        %v1746 = vpop.f32.mrb[0].mxu0
        %v1747 = vadd.f32 %v1586, %v1746
        %v1748 = vpop.f32.mrb[0].mxu0
        %1749 = vmatprep.mubr.bf16.mxu0 0
        %1750 = vmatmul.mubr.bf16.gmra.mrb[0].mxu0 %v1249
        %v1751 = vpop.f32.mrb[0].mxu0
        %v1752 = vadd.f32 %v1591, %v1751
        %v1753 = vpop.f32.mrb[0].mxu0
        %v1754 = vpop.f32.mrb[0].mxu0
        %v1755 = vadd.f32 %v1594, %v1754
        %v1756 = vpop.f32.mrb[0].mxu0
        %1757 = vmatprep.mubr.bf16.mxu0 0
        %1758 = vmatmul.mubr.bf16.gmra.mrb[0].mxu0 %v1252
        %v1759 = vpop.f32.mrb[0].mxu0
        %v1760 = vadd.f32 %v1599, %v1759
        %v1761 = vpop.f32.mrb[0].mxu0
        %v1762 = vpop.f32.mrb[0].mxu0
        %v1763 = vadd.f32 %v1602, %v1762
        %v1764 = vpop.f32.mrb[0].mxu0
        %1765 = vmatprep.mubr.bf16.mxu0 0
        %1766 = vmatmul.mubr.bf16.gmra.mrb[0].mxu0 %v1255
        %v1767 = vpop.f32.mrb[0].mxu0
        %v1768 = vadd.f32 %v1607, %v1767
        %v1769 = vpop.f32.mrb[0].mxu0
        %v1770 = vpop.f32.mrb[0].mxu0
        %v1771 = vadd.f32 %v1610, %v1770
        %v1772 = vpop.f32.mrb[0].mxu0
        %1773 = vmatprep.mubr.bf16.mxu0 0
        %1774 = vmatmul.mubr.bf16.gmra.mrb[0].mxu0 %v1258
        %v1775 = vpop.f32.mrb[0].mxu0
        %v1776 = vadd.f32 %v1615, %v1775
        %v1777 = vpop.f32.mrb[0].mxu0
        %v1778 = vpop.f32.mrb[0].mxu0
        %v1779 = vadd.f32 %v1618, %v1778
        %v1780 = vpop.f32.mrb[0].mxu0
        %1781 = vmatprep.mubr.bf16.mxu0 0
        %1782 = vmatmul.mubr.bf16.gmra.mrb[0].mxu0 %v1261
        %v1783 = vpop.f32.mrb[0].mxu0
        %v1784 = vadd.f32 %v1623, %v1783
        %v1785 = vpop.f32.mrb[0].mxu0
        %v1786 = vpop.f32.mrb[0].mxu0
        %v1787 = vadd.f32 %v1626, %v1786
        %v1788 = vpop.f32.mrb[0].mxu0
        %1789 = vmatprep.mubr.bf16.mxu0 0
        %1790 = vmatmul.mubr.bf16.gmra.mrb[0].mxu0 %v1264
        %v1791 = vpop.f32.mrb[0].mxu0
        %v1792 = vadd.f32 %v1631, %v1791
        %v1793 = vpop.f32.mrb[0].mxu0
        %v1794 = vpop.f32.mrb[0].mxu0
        %v1795 = vadd.f32 %v1634, %v1794
        %v1796 = vpop.f32.mrb[0].mxu0
        %1797 = vmatprep.mubr.bf16.mxu0 0
        %1798 = vmatmul.mubr.bf16.gmra.mrb[0].mxu0 %v1267
        %v1799 = vpop.f32.mrb[0].mxu0
        %v1800 = vadd.f32 %v1639, %v1799
        %v1801 = vpop.f32.mrb[0].mxu0
        %v1802 = vpop.f32.mrb[0].mxu0
        %v1803 = vadd.f32 %v1642, %v1802
        %v1804 = vpop.f32.mrb[0].mxu0
        %1805 = vmatprep.mubr.bf16.mxu0 0
        %1806 = vmatmul.mubr.bf16.gmra.mrb[0].mxu0 %v1270
        %v1807 = vpop.f32.mrb[0].mxu0
        %v1808 = vadd.f32 %v1647, %v1807
        %v1809 = vpop.f32.mrb[0].mxu0
        %v1810 = vpop.f32.mrb[0].mxu0
        %v1811 = vadd.f32 %v1650, %v1810
        %v1812 = vpop.f32.mrb[0].mxu0
        %1813 = vmatprep.mubr.bf16.mxu0 0
        %1814 = vmatmul.mubr.bf16.gmra.mrb[0].mxu0 %v1273
        %v1815 = vpop.f32.mrb[0].mxu0
        %v1816 = vadd.f32 %v1655, %v1815
        %v1817 = vpop.f32.mrb[0].mxu0
        %v1818 = vpop.f32.mrb[0].mxu0
        %v1819 = vadd.f32 %v1658, %v1818
        %v1820 = vpop.f32.mrb[0].mxu0
        %1821 = vmatprep.mubr.bf16.mxu0 0
        %1822 = vmatmul.mubr.bf16.gmra.mrb[0].mxu0 %v1276
        %v1823 = vpop.f32.mrb[0].mxu0
        %v1824 = vadd.f32 %v1663, %v1823
        %v1825 = vpop.f32.mrb[0].mxu0
        %v1826 = vpop.f32.mrb[0].mxu0
        %v1827 = vadd.f32 %v1666, %v1826
        %v1828 = vpop.f32.mrb[0].mxu0
        %1829 = vmatprep.mubr.bf16.mxu0 0
        %1830 = vmatmul.mubr.bf16.gmra.mrb[0].mxu0 %v1279
        %v1831 = vpop.f32.mrb[0].mxu0
        %v1832 = vadd.f32 %v1671, %v1831
        %v1833 = vpop.f32.mrb[0].mxu0
        %v1834 = vpop.f32.mrb[0].mxu0
        %v1835 = vadd.f32 %v1674, %v1834
        %v1836 = vpop.f32.mrb[0].mxu0
        %1837 = vmatprep.mubr.bf16.mxu0 0
        %1838 = vmatmul.mubr.bf16.gmra.mrb[0].mxu0 %v1330
        %v1839 = vpop.f32.mrb[0].mxu0
        %v1840 = vadd.f32 %v1679, %v1839
        %v1841 = vpop.f32.mrb[0].mxu0
        %v1842 = vpop.f32.mrb[0].mxu0
        %v1843 = vadd.f32 %v1682, %v1842
        %v1844 = vpop.f32.mrb[0].mxu0
        %1845 = vdwg.mxu0
        %v1894 = vunpack.c.l.b16 %v1280
        %v1895 = vunpack.c.l.b16 %v1281
        %v1896 = vunpack.c.l.b16 %v1282
        %v1897 = vunpack.c.l.b16 %v1283
        %v1898 = vunpack.c.l.b16 %v1284
        %v1899 = vunpack.c.l.b16 %v1285
        %v1900 = vunpack.c.l.b16 %v1286
        %v1901 = vunpack.c.l.b16 %v1287
        %v1902 = vunpack.c.l.b16 %v1288
        %v1903 = vunpack.c.l.b16 %v1289
        %v1904 = vunpack.c.l.b16 %v1290
        %v1905 = vunpack.c.l.b16 %v1291
        %v1906 = vunpack.c.l.b16 %v1292
        %v1907 = vunpack.c.l.b16 %v1293
        %v1908 = vunpack.c.l.b16 %v1294
        %v1909 = vunpack.c.l.b16 %v1295
        %v1910 = vunpack.c.l.b16 %v1296
        %v1911 = vunpack.c.l.b16 %v1297
        %v1912 = vunpack.c.l.b16 %v1298
        %v1913 = vunpack.c.l.b16 %v1299
        %v1914 = vunpack.c.l.b16 %v1300
        %v1915 = vunpack.c.l.b16 %v1301
        %v1916 = vunpack.c.l.b16 %v1302
        %v1917 = vunpack.c.l.b16 %v1303
        %v1918 = vunpack.c.l.b16 %v1304
        %v1919 = vunpack.c.l.b16 %v1305
        %v1920 = vunpack.c.l.b16 %v1306
        %v1921 = vunpack.c.l.b16 %v1307
        %v1922 = vunpack.c.l.b16 %v1308
        %v1923 = vunpack.c.l.b16 %v1309
        %v1924 = vunpack.c.l.b16 %v1310
        %v1925 = vunpack.c.l.b16 %v1311
        %v1926 = vunpack.c.l.b16 %v1312
        %v1927 = vunpack.c.l.b16 %v1313
        %v1928 = vunpack.c.l.b16 %v1314
        %v1929 = vunpack.c.l.b16 %v1315
        %v1930 = vunpack.c.l.b16 %v1316
        %v1931 = vunpack.c.l.b16 %v1317
        %v1932 = vunpack.c.l.b16 %v1318
        %v1933 = vunpack.c.l.b16 %v1319
        %v1934 = vunpack.c.l.b16 %v1320
        %v1935 = vunpack.c.l.b16 %v1321
        %v1936 = vunpack.c.l.b16 %v1322
        %v1937 = vunpack.c.l.b16 %v1323
        %v1938 = vunpack.c.l.b16 %v1324
        %v1939 = vunpack.c.l.b16 %v1325
        %v1940 = vunpack.c.l.b16 %v1326
        %v1941 = vunpack.c.l.b16 %v1327
        %v1942 = vpack.c.b16 %v1895, %v1894
        %v1943 = vpack.c.b16 %v1897, %v1896
        %v1944 = vpack.c.b16 %v1899, %v1898
        %v1945 = vpack.c.b16 %v1901, %v1900
        %v1946 = vpack.c.b16 %v1903, %v1902
        %v1947 = vpack.c.b16 %v1905, %v1904
        %v1948 = vpack.c.b16 %v1907, %v1906
        %v1949 = vpack.c.b16 %v1909, %v1908
        %v1950 = vpack.c.b16 %v1911, %v1910
        %v1951 = vpack.c.b16 %v1913, %v1912
        %v1952 = vpack.c.b16 %v1915, %v1914
        %v1953 = vpack.c.b16 %v1917, %v1916
        %v1954 = vpack.c.b16 %v1919, %v1918
        %v1955 = vpack.c.b16 %v1921, %v1920
        %v1956 = vpack.c.b16 %v1923, %v1922
        %v1957 = vpack.c.b16 %v1925, %v1924
        %v1958 = vpack.c.b16 %v1927, %v1926
        %v1959 = vpack.c.b16 %v1929, %v1928
        %v1960 = vpack.c.b16 %v1931, %v1930
        %v1961 = vpack.c.b16 %v1933, %v1932
        %v1962 = vpack.c.b16 %v1935, %v1934
        %v1963 = vpack.c.b16 %v1937, %v1936
        %v1964 = vpack.c.b16 %v1939, %v1938
        %v1965 = vpack.c.b16 %v1941, %v1940
        %1990 = vmatprep.subr.bf16.mxu0 0
        %1991 = vmatpush1.bf16.msra.mxu0 %v1942
        %1992 = vmatprep.subr.bf16.mxu0 0
        %1993 = vmatpush1.bf16.msra.mxu0 %v1943
        %1994 = vmatprep.subr.bf16.mxu0 0
        %1995 = vmatpush1.bf16.msra.mxu0 %v1944
        %1996 = vmatprep.subr.bf16.mxu0 0
        %1997 = vmatpush1.bf16.msra.mxu0 %v1945
        %1998 = vmatprep.subr.bf16.mxu0 0
        %1999 = vmatpush1.bf16.msra.mxu0 %v1946
        %2000 = vmatprep.subr.bf16.mxu0 0
        %2001 = vmatpush1.bf16.msra.mxu0 %v1947
        %2002 = vmatprep.subr.bf16.mxu0 0
        %2003 = vmatpush1.bf16.msra.mxu0 %v1948
        %2004 = vmatprep.subr.bf16.mxu0 0
        %2005 = vmatpush1.bf16.msra.mxu0 %v1949
        %2006 = vmatprep.subr.bf16.mxu0 0
        %2007 = vmatpush1.bf16.msra.mxu0 %v1950
        %2008 = vmatprep.subr.bf16.mxu0 0
        %2009 = vmatpush1.bf16.msra.mxu0 %v1951
        %2010 = vmatprep.subr.bf16.mxu0 0
        %2011 = vmatpush1.bf16.msra.mxu0 %v1952
        %2012 = vmatprep.subr.bf16.mxu0 0
        %2013 = vmatpush1.bf16.msra.mxu0 %v1953
        %2014 = vmatprep.subr.bf16.mxu0 0
        %2015 = vmatpush1.bf16.msra.mxu0 %v1954
        %2016 = vmatprep.subr.bf16.mxu0 0
        %2017 = vmatpush1.bf16.msra.mxu0 %v1955
        %2018 = vmatprep.subr.bf16.mxu0 0
        %2019 = vmatpush1.bf16.msra.mxu0 %v1956
        %2020 = vmatprep.subr.bf16.mxu0 0
        %2021 = vmatpush1.bf16.msra.mxu0 %v1957
        %2022 = vmatprep.mubr.bf16.mxu0 %v1233
        %2023 = vmatmul.mubr.bf16.gmra.mrb[0].mxu0 %v1232
        %v2024 = vpop.f32.mrb[0].mxu0
        %v2025 = vadd.f32 %v1720, %v2024
        %v2026 = vpop.f32.mrb[0].mxu0
        %v2027 = vpop.f32.mrb[0].mxu0
        %v2028 = vadd.f32 %v1723, %v2027
        %v2029 = vpop.f32.mrb[0].mxu0
        %2030 = vmatprep.mubr.bf16.mxu0 %v1236
        %2031 = vmatmul.mubr.bf16.gmra.mrb[0].mxu0 %v1235
        %v2032 = vpop.f32.mrb[0].mxu0
        %v2033 = vadd.f32 %v1728, %v2032
        %v2034 = vpop.f32.mrb[0].mxu0
        %v2035 = vpop.f32.mrb[0].mxu0
        %v2036 = vadd.f32 %v1731, %v2035
        %v2037 = vpop.f32.mrb[0].mxu0
        %2038 = vmatprep.mubr.bf16.mxu0 %v1239
        %2039 = vmatmul.mubr.bf16.gmra.mrb[0].mxu0 %v1238
        %v2040 = vpop.f32.mrb[0].mxu0
        %v2041 = vadd.f32 %v1736, %v2040
        %v2042 = vpop.f32.mrb[0].mxu0
        %v2043 = vpop.f32.mrb[0].mxu0
        %v2044 = vadd.f32 %v1739, %v2043
        %v2045 = vpop.f32.mrb[0].mxu0
        %2046 = vmatprep.mubr.bf16.mxu0 %v1242
        %2047 = vmatmul.mubr.bf16.gmra.mrb[0].mxu0 %v1241
        %v2048 = vpop.f32.mrb[0].mxu0
        %v2049 = vadd.f32 %v1744, %v2048
        %v2050 = vpop.f32.mrb[0].mxu0
        %v2051 = vpop.f32.mrb[0].mxu0
        %v2052 = vadd.f32 %v1747, %v2051
        %v2053 = vpop.f32.mrb[0].mxu0
        %2054 = vmatprep.mubr.bf16.mxu0 %v1245
        %2055 = vmatmul.mubr.bf16.gmra.mrb[0].mxu0 %v1244
        %v2056 = vpop.f32.mrb[0].mxu0
        %v2057 = vadd.f32 %v1752, %v2056
        %v2058 = vpop.f32.mrb[0].mxu0
        %v2059 = vpop.f32.mrb[0].mxu0
        %v2060 = vadd.f32 %v1755, %v2059
        %v2061 = vpop.f32.mrb[0].mxu0
        %2062 = vmatprep.mubr.bf16.mxu0 %v1248
        %2063 = vmatmul.mubr.bf16.gmra.mrb[0].mxu0 %v1247
        %v2064 = vpop.f32.mrb[0].mxu0
        %v2065 = vadd.f32 %v1760, %v2064
        %v2066 = vpop.f32.mrb[0].mxu0
        %v2067 = vpop.f32.mrb[0].mxu0
        %v2068 = vadd.f32 %v1763, %v2067
        %v2069 = vpop.f32.mrb[0].mxu0
        %2070 = vmatprep.mubr.bf16.mxu0 %v1251
        %2071 = vmatmul.mubr.bf16.gmra.mrb[0].mxu0 %v1250
        %v2072 = vpop.f32.mrb[0].mxu0
        %v2073 = vadd.f32 %v1768, %v2072
        %v2074 = vpop.f32.mrb[0].mxu0
        %v2075 = vpop.f32.mrb[0].mxu0
        %v2076 = vadd.f32 %v1771, %v2075
        %v2077 = vpop.f32.mrb[0].mxu0
        %2078 = vmatprep.mubr.bf16.mxu0 %v1254
        %2079 = vmatmul.mubr.bf16.gmra.mrb[0].mxu0 %v1253
        %v2080 = vpop.f32.mrb[0].mxu0
        %v2081 = vadd.f32 %v1776, %v2080
        %v2082 = vpop.f32.mrb[0].mxu0
        %v2083 = vpop.f32.mrb[0].mxu0
        %v2084 = vadd.f32 %v1779, %v2083
        %v2085 = vpop.f32.mrb[0].mxu0
        %2086 = vmatprep.mubr.bf16.mxu0 %v1257
        %2087 = vmatmul.mubr.bf16.gmra.mrb[0].mxu0 %v1256
        %v2088 = vpop.f32.mrb[0].mxu0
        %v2089 = vadd.f32 %v1784, %v2088
        %v2090 = vpop.f32.mrb[0].mxu0
        %v2091 = vpop.f32.mrb[0].mxu0
        %v2092 = vadd.f32 %v1787, %v2091
        %v2093 = vpop.f32.mrb[0].mxu0
        %2094 = vmatprep.mubr.bf16.mxu0 %v1260
        %2095 = vmatmul.mubr.bf16.gmra.mrb[0].mxu0 %v1259
        %v2096 = vpop.f32.mrb[0].mxu0
        %v2097 = vadd.f32 %v1792, %v2096
        %v2098 = vpop.f32.mrb[0].mxu0
        %v2099 = vpop.f32.mrb[0].mxu0
        %v2100 = vadd.f32 %v1795, %v2099
        %v2101 = vpop.f32.mrb[0].mxu0
        %2102 = vmatprep.mubr.bf16.mxu0 %v1263
        %2103 = vmatmul.mubr.bf16.gmra.mrb[0].mxu0 %v1262
        %v2104 = vpop.f32.mrb[0].mxu0
        %v2105 = vadd.f32 %v1800, %v2104
        %v2106 = vpop.f32.mrb[0].mxu0
        %v2107 = vpop.f32.mrb[0].mxu0
        %v2108 = vadd.f32 %v1803, %v2107
        %v2109 = vpop.f32.mrb[0].mxu0
        %2110 = vmatprep.mubr.bf16.mxu0 %v1266
        %2111 = vmatmul.mubr.bf16.gmra.mrb[0].mxu0 %v1265
        %v2112 = vpop.f32.mrb[0].mxu0
        %v2113 = vadd.f32 %v1808, %v2112
        %v2114 = vpop.f32.mrb[0].mxu0
        %v2115 = vpop.f32.mrb[0].mxu0
        %v2116 = vadd.f32 %v1811, %v2115
        %v2117 = vpop.f32.mrb[0].mxu0
        %2118 = vmatprep.mubr.bf16.mxu0 %v1269
        %2119 = vmatmul.mubr.bf16.gmra.mrb[0].mxu0 %v1268
        %v2120 = vpop.f32.mrb[0].mxu0
        %v2121 = vadd.f32 %v1816, %v2120
        %v2122 = vpop.f32.mrb[0].mxu0
        %v2123 = vpop.f32.mrb[0].mxu0
        %v2124 = vadd.f32 %v1819, %v2123
        %v2125 = vpop.f32.mrb[0].mxu0
        %2126 = vmatprep.mubr.bf16.mxu0 %v1272
        %2127 = vmatmul.mubr.bf16.gmra.mrb[0].mxu0 %v1271
        %v2128 = vpop.f32.mrb[0].mxu0
        %v2129 = vadd.f32 %v1824, %v2128
        %v2130 = vpop.f32.mrb[0].mxu0
        %v2131 = vpop.f32.mrb[0].mxu0
        %v2132 = vadd.f32 %v1827, %v2131
        %v2133 = vpop.f32.mrb[0].mxu0
        %2134 = vmatprep.mubr.bf16.mxu0 %v1275
        %2135 = vmatmul.mubr.bf16.gmra.mrb[0].mxu0 %v1274
        %v2136 = vpop.f32.mrb[0].mxu0
        %v2137 = vadd.f32 %v1832, %v2136
        %v2138 = vpop.f32.mrb[0].mxu0
        %v2139 = vpop.f32.mrb[0].mxu0
        %v2140 = vadd.f32 %v1835, %v2139
        %v2141 = vpop.f32.mrb[0].mxu0
        %2142 = vmatprep.mubr.bf16.mxu0 %v1278
        %2143 = vmatmul.mubr.bf16.gmra.mrb[0].mxu0 %v1277
        %v2144 = vpop.f32.mrb[0].mxu0
        %v2145 = vadd.f32 %v1840, %v2144
        %v2146 = vpop.f32.mrb[0].mxu0
        %v2147 = vpop.f32.mrb[0].mxu0
        %v2148 = vadd.f32 %v1843, %v2147
        %v2149 = vpop.f32.mrb[0].mxu0
        %2150 = vdwg.mxu0
        %2151 = vmatprep.subr.bf16.mxu0 0
        %2152 = vmatpush1.bf16.msra.mxu0 %v1958
        %2153 = vmatprep.subr.bf16.mxu0 0
        %2154 = vmatpush1.bf16.msra.mxu0 %v1959
        %2155 = vmatprep.subr.bf16.mxu0 0
        %2156 = vmatpush1.bf16.msra.mxu0 %v1960
        %2157 = vmatprep.subr.bf16.mxu0 0
        %2158 = vmatpush1.bf16.msra.mxu0 %v1961
        %2159 = vmatprep.subr.bf16.mxu0 0
        %2160 = vmatpush1.bf16.msra.mxu0 %v1962
        %2161 = vmatprep.subr.bf16.mxu0 0
        %2162 = vmatpush1.bf16.msra.mxu0 %v1963
        %2163 = vmatprep.subr.bf16.mxu0 0
        %2164 = vmatpush1.bf16.msra.mxu0 %v1964
        %2165 = vmatprep.subr.bf16.mxu0 0
        %2166 = vmatpush1.bf16.msra.mxu0 %v1965
        %2167 = vmatprep.subr.bf16.mxu0 0
        %2168 = vmatpush1.bf16.msra.mxu0 0
        %2169 = vmatprep.subr.bf16.mxu0 0
        %2170 = vmatpush1.bf16.msra.mxu0 0
        %2171 = vmatprep.subr.bf16.mxu0 0
        %2172 = vmatpush1.bf16.msra.mxu0 0
        %2173 = vmatprep.subr.bf16.mxu0 0
        %2174 = vmatpush1.bf16.msra.mxu0 0
        %2175 = vmatprep.subr.bf16.mxu0 0
        %2176 = vmatpush1.bf16.msra.mxu0 0
        %2177 = vmatprep.subr.bf16.mxu0 0
        %2178 = vmatpush1.bf16.msra.mxu0 0
        %2179 = vmatprep.subr.bf16.mxu0 0
        %2180 = vmatpush1.bf16.msra.mxu0 0
        %2181 = vmatprep.subr.bf16.mxu0 0
        %2182 = vmatpush1.bf16.msra.mxu0 0
        %2183 = vmatprep.mubr.bf16.mxu0 0
        %2184 = vmatmul.mubr.bf16.gmra.mrb[0].mxu0 %v1234
        %v2185 = vpop.f32.mrb[0].mxu0
        %v2186 = vadd.f32 %v2025, %v2185
        %v2187 = vpop.f32.mrb[0].mxu0
        %v2188 = vpop.f32.mrb[0].mxu0
        %v2189 = vadd.f32 %v2028, %v2188
        %v2190 = vpop.f32.mrb[0].mxu0
        %2191 = vmatprep.mubr.bf16.mxu0 0
        %2192 = vmatmul.mubr.bf16.gmra.mrb[0].mxu0 %v1237
        %v2193 = vpop.f32.mrb[0].mxu0
        %v2194 = vadd.f32 %v2033, %v2193
        %v2195 = vpop.f32.mrb[0].mxu0
        %v2196 = vpop.f32.mrb[0].mxu0
        %v2197 = vadd.f32 %v2036, %v2196
        %v2198 = vpop.f32.mrb[0].mxu0
        %2199 = vmatprep.mubr.bf16.mxu0 0
        %2200 = vmatmul.mubr.bf16.gmra.mrb[0].mxu0 %v1240
        %v2201 = vpop.f32.mrb[0].mxu0
        %v2202 = vadd.f32 %v2041, %v2201
        %v2203 = vpop.f32.mrb[0].mxu0
        %v2204 = vpop.f32.mrb[0].mxu0
        %v2205 = vadd.f32 %v2044, %v2204
        %v2206 = vpop.f32.mrb[0].mxu0
        %2207 = vmatprep.mubr.bf16.mxu0 0
        %2208 = vmatmul.mubr.bf16.gmra.mrb[0].mxu0 %v1243
        %v2209 = vpop.f32.mrb[0].mxu0
        %v2210 = vadd.f32 %v2049, %v2209
        %v2211 = vpop.f32.mrb[0].mxu0
        %v2212 = vpop.f32.mrb[0].mxu0
        %v2213 = vadd.f32 %v2052, %v2212
        %v2214 = vpop.f32.mrb[0].mxu0
        %2215 = vmatprep.mubr.bf16.mxu0 0
        %2216 = vmatmul.mubr.bf16.gmra.mrb[0].mxu0 %v1246
        %v2217 = vpop.f32.mrb[0].mxu0
        %v2218 = vadd.f32 %v2057, %v2217
        %v2219 = vpop.f32.mrb[0].mxu0
        %v2220 = vpop.f32.mrb[0].mxu0
        %v2221 = vadd.f32 %v2060, %v2220
        %v2222 = vpop.f32.mrb[0].mxu0
        %2223 = vmatprep.mubr.bf16.mxu0 0
        %2224 = vmatmul.mubr.bf16.gmra.mrb[0].mxu0 %v1249
        %v2225 = vpop.f32.mrb[0].mxu0
        %v2226 = vadd.f32 %v2065, %v2225
        %v2227 = vpop.f32.mrb[0].mxu0
        %v2228 = vpop.f32.mrb[0].mxu0
        %v2229 = vadd.f32 %v2068, %v2228
        %v2230 = vpop.f32.mrb[0].mxu0
        %2231 = vmatprep.mubr.bf16.mxu0 0
        %2232 = vmatmul.mubr.bf16.gmra.mrb[0].mxu0 %v1252
        %v2233 = vpop.f32.mrb[0].mxu0
        %v2234 = vadd.f32 %v2073, %v2233
        %v2235 = vpop.f32.mrb[0].mxu0
        %v2236 = vpop.f32.mrb[0].mxu0
        %v2237 = vadd.f32 %v2076, %v2236
        %v2238 = vpop.f32.mrb[0].mxu0
        %2239 = vmatprep.mubr.bf16.mxu0 0
        %2240 = vmatmul.mubr.bf16.gmra.mrb[0].mxu0 %v1255
        %v2241 = vpop.f32.mrb[0].mxu0
        %v2242 = vadd.f32 %v2081, %v2241
        %v2243 = vpop.f32.mrb[0].mxu0
        %v2244 = vpop.f32.mrb[0].mxu0
        %v2245 = vadd.f32 %v2084, %v2244
        %v2246 = vpop.f32.mrb[0].mxu0
        %2247 = vmatprep.mubr.bf16.mxu0 0
        %2248 = vmatmul.mubr.bf16.gmra.mrb[0].mxu0 %v1258
        %v2249 = vpop.f32.mrb[0].mxu0
        %v2250 = vadd.f32 %v2089, %v2249
        %v2251 = vpop.f32.mrb[0].mxu0
        %v2252 = vpop.f32.mrb[0].mxu0
        %v2253 = vadd.f32 %v2092, %v2252
        %v2254 = vpop.f32.mrb[0].mxu0
        %2255 = vmatprep.mubr.bf16.mxu0 0
        %2256 = vmatmul.mubr.bf16.gmra.mrb[0].mxu0 %v1261
        %v2257 = vpop.f32.mrb[0].mxu0
        %v2258 = vadd.f32 %v2097, %v2257
        %v2259 = vpop.f32.mrb[0].mxu0
        %v2260 = vpop.f32.mrb[0].mxu0
        %v2261 = vadd.f32 %v2100, %v2260
        %v2262 = vpop.f32.mrb[0].mxu0
        %2263 = vmatprep.mubr.bf16.mxu0 0
        %2264 = vmatmul.mubr.bf16.gmra.mrb[0].mxu0 %v1264
        %v2265 = vpop.f32.mrb[0].mxu0
        %v2266 = vadd.f32 %v2105, %v2265
        %v2267 = vpop.f32.mrb[0].mxu0
        %v2268 = vpop.f32.mrb[0].mxu0
        %v2269 = vadd.f32 %v2108, %v2268
        %v2270 = vpop.f32.mrb[0].mxu0
        %2271 = vmatprep.mubr.bf16.mxu0 0
        %2272 = vmatmul.mubr.bf16.gmra.mrb[0].mxu0 %v1267
        %v2273 = vpop.f32.mrb[0].mxu0
        %v2274 = vadd.f32 %v2113, %v2273
        %v2275 = vpop.f32.mrb[0].mxu0
        %v2276 = vpop.f32.mrb[0].mxu0
        %v2277 = vadd.f32 %v2116, %v2276
        %v2278 = vpop.f32.mrb[0].mxu0
        %2279 = vmatprep.mubr.bf16.mxu0 0
        %2280 = vmatmul.mubr.bf16.gmra.mrb[0].mxu0 %v1270
        %v2281 = vpop.f32.mrb[0].mxu0
        %v2282 = vadd.f32 %v2121, %v2281
        %v2283 = vpop.f32.mrb[0].mxu0
        %v2284 = vpop.f32.mrb[0].mxu0
        %v2285 = vadd.f32 %v2124, %v2284
        %v2286 = vpop.f32.mrb[0].mxu0
        %2287 = vmatprep.mubr.bf16.mxu0 0
        %2288 = vmatmul.mubr.bf16.gmra.mrb[0].mxu0 %v1273
        %v2289 = vpop.f32.mrb[0].mxu0
        %v2290 = vadd.f32 %v2129, %v2289
        %v2291 = vpop.f32.mrb[0].mxu0
        %v2292 = vpop.f32.mrb[0].mxu0
        %v2293 = vadd.f32 %v2132, %v2292
        %v2294 = vpop.f32.mrb[0].mxu0
        %2295 = vmatprep.mubr.bf16.mxu0 0
        %2296 = vmatmul.mubr.bf16.gmra.mrb[0].mxu0 %v1276
        %v2297 = vpop.f32.mrb[0].mxu0
        %v2298 = vadd.f32 %v2137, %v2297
        %v2299 = vpop.f32.mrb[0].mxu0
        %v2300 = vpop.f32.mrb[0].mxu0
        %v2301 = vadd.f32 %v2140, %v2300
        %v2302 = vpop.f32.mrb[0].mxu0
        %2303 = vmatprep.mubr.bf16.mxu0 0
        %2304 = vmatmul.mubr.bf16.gmra.mrb[0].mxu0 %v1279
        %v2305 = vpop.f32.mrb[0].mxu0
        %v2306 = vadd.f32 %v2145, %v2305
        %v2307 = vpop.f32.mrb[0].mxu0
        %v2308 = vpop.f32.mrb[0].mxu0
        %v2309 = vadd.f32 %v2148, %v2308
        %v2310 = vpop.f32.mrb[0].mxu0
        %2311 = vdwg.mxu0
        %v2312 = vld [vmem:[#allocation2 + $0x30] sm:$0xff]
        %v2313 = vld [vmem:[#allocation2 + $0x38] sm:$0xff]
        %v2314 = vld [vmem:[#allocation2 + $0x40] sm:$0xff]
        %v2315 = vld [vmem:[#allocation2 + $0x48] sm:$0xff]
        %v2316 = vld [vmem:[#allocation2 + $0x50] sm:$0xff]
        %v2317 = vld [vmem:[#allocation2 + $0x58] sm:$0xff]
        %v2318 = vld [vmem:[#allocation2 + $0x60] sm:$0xff]
        %v2319 = vld [vmem:[#allocation2 + $0x68] sm:$0xff]
        %v2320 = vld [vmem:[#allocation2 + $0x70] sm:$0xff]
        %v2321 = vld [vmem:[#allocation2 + $0x78] sm:$0xff]
        %v2322 = vld [vmem:[#allocation2 + $0x80] sm:$0xff]
        %v2323 = vld [vmem:[#allocation2 + $0x88] sm:$0xff]
        %v2324 = vld [vmem:[#allocation2 + $0x90] sm:$0xff]
        %v2325 = vld [vmem:[#allocation2 + $0x98] sm:$0xff]
        %v2326 = vld [vmem:[#allocation2 + $0xa0] sm:$0xff]
        %v2327 = vld [vmem:[#allocation2 + $0xa8] sm:$0xff]
        %v2328 = vld [vmem:[#allocation2 + $0xb0] sm:$0xff]
        %v2329 = vld [vmem:[#allocation2 + $0xb8] sm:$0xff]
        %v2330 = vld [vmem:[#allocation2 + $0xc0] sm:$0xff]
        %v2331 = vld [vmem:[#allocation2 + $0xc8] sm:$0xff]
        %v2332 = vld [vmem:[#allocation2 + $0xd0] sm:$0xff]
        %v2333 = vld [vmem:[#allocation2 + $0xd8] sm:$0xff]
        %v2334 = vld [vmem:[#allocation2 + $0xe0] sm:$0xff]
        %v2335 = vld [vmem:[#allocation2 + $0xe8] sm:$0xff]
        %v2336 = vld [vmem:[#allocation2 + $0xf0] sm:$0xff]
        %v2337 = vld [vmem:[#allocation2 + $0xf8] sm:$0xff]
        %v2338 = vld [vmem:[#allocation2 + $0x100] sm:$0xff]
        %v2339 = vld [vmem:[#allocation2 + $0x108] sm:$0xff]
        %v2340 = vld [vmem:[#allocation2 + $0x110] sm:$0xff]
        %v2341 = vld [vmem:[#allocation2 + $0x118] sm:$0xff]
        %v2342 = vld [vmem:[#allocation2 + $0x120] sm:$0xff]
        %v2343 = vld [vmem:[#allocation2 + $0x128] sm:$0xff]
        %v2344 = vld [vmem:[#allocation2 + $0x130] sm:$0xff]
        %v2345 = vld [vmem:[#allocation2 + $0x138] sm:$0xff]
        %v2346 = vld [vmem:[#allocation2 + $0x140] sm:$0xff]
        %v2347 = vld [vmem:[#allocation2 + $0x148] sm:$0xff]
        %v2348 = vld [vmem:[#allocation2 + $0x150] sm:$0xff]
        %v2349 = vld [vmem:[#allocation2 + $0x158] sm:$0xff]
        %v2350 = vld [vmem:[#allocation2 + $0x160] sm:$0xff]
        %v2351 = vld [vmem:[#allocation2 + $0x168] sm:$0xff]
        %v2352 = vld [vmem:[#allocation2 + $0x170] sm:$0xff]
        %v2353 = vld [vmem:[#allocation2 + $0x178] sm:$0xff]
        %v2354 = vld [vmem:[#allocation2 + $0x180] sm:$0xff]
        %v2355 = vld [vmem:[#allocation2 + $0x188] sm:$0xff]
        %v2356 = vld [vmem:[#allocation2 + $0x190] sm:$0xff]
        %v2357 = vld [vmem:[#allocation2 + $0x198] sm:$0xff]
        %v2358 = vld [vmem:[#allocation2 + $0x1a0] sm:$0xff]
        %v2359 = vld [vmem:[#allocation2 + $0x1a8] sm:$0xff]
        %s2360 = scalar_lea.vmem [#allocation9], 384
        %v2361 = vld [vmem:[%s2360] sm:$0xf]
        %v2362 = vld [vmem:[%s2360 + $0x4] sm:$0xf]
        %v2363 = vld [vmem:[%s2360 + $0x8] sm:$0xf]
        %v2364 = vld [vmem:[%s2360 + $0xc] sm:$0xf]
        %v2365 = vld [vmem:[%s2360 + $0x10] sm:$0xf]
        %v2366 = vld [vmem:[%s2360 + $0x14] sm:$0xf]
        %v2367 = vld [vmem:[%s2360 + $0x18] sm:$0xf]
        %v2368 = vld [vmem:[%s2360 + $0x1c] sm:$0xf]
        %v2369 = vld [vmem:[%s2360 + $0x20] sm:$0xf]
        %v2370 = vld [vmem:[%s2360 + $0x24] sm:$0xf]
        %v2371 = vld [vmem:[%s2360 + $0x28] sm:$0xf]
        %v2372 = vld [vmem:[%s2360 + $0x2c] sm:$0xf]
        %v2373 = vld [vmem:[%s2360 + $0x30] sm:$0xf]
        %v2374 = vld [vmem:[%s2360 + $0x34] sm:$0xf]
        %v2375 = vld [vmem:[%s2360 + $0x38] sm:$0xf]
        %v2376 = vld [vmem:[%s2360 + $0x3c] sm:$0xf]
        %v2377 = vld [vmem:[%s2360 + $0x40] sm:$0xf]
        %v2378 = vld [vmem:[%s2360 + $0x44] sm:$0xf]
        %v2379 = vld [vmem:[%s2360 + $0x48] sm:$0xf]
        %v2380 = vld [vmem:[%s2360 + $0x4c] sm:$0xf]
        %v2381 = vld [vmem:[%s2360 + $0x50] sm:$0xf]
        %v2382 = vld [vmem:[%s2360 + $0x54] sm:$0xf]
        %v2383 = vld [vmem:[%s2360 + $0x58] sm:$0xf]
        %v2384 = vld [vmem:[%s2360 + $0x5c] sm:$0xf]
        %v2385 = vld [vmem:[%s2360 + $0x60] sm:$0xf]
        %v2386 = vld [vmem:[%s2360 + $0x64] sm:$0xf]
        %v2387 = vld [vmem:[%s2360 + $0x68] sm:$0xf]
        %v2388 = vld [vmem:[%s2360 + $0x6c] sm:$0xf]
        %v2389 = vld [vmem:[%s2360 + $0x70] sm:$0xf]
        %v2390 = vld [vmem:[%s2360 + $0x74] sm:$0xf]
        %v2391 = vld [vmem:[%s2360 + $0x78] sm:$0xf]
        %v2392 = vld [vmem:[%s2360 + $0x7c] sm:$0xf]
        %v2393 = vld [vmem:[%s2360 + $0x80] sm:$0xf]
        %v2394 = vld [vmem:[%s2360 + $0x84] sm:$0xf]
        %v2395 = vld [vmem:[%s2360 + $0x88] sm:$0xf]
        %v2396 = vld [vmem:[%s2360 + $0x8c] sm:$0xf]
        %v2397 = vld [vmem:[%s2360 + $0x90] sm:$0xf]
        %v2398 = vld [vmem:[%s2360 + $0x94] sm:$0xf]
        %v2399 = vld [vmem:[%s2360 + $0x98] sm:$0xf]
        %v2400 = vld [vmem:[%s2360 + $0x9c] sm:$0xf]
        %v2401 = vld [vmem:[%s2360 + $0xa0] sm:$0xf]
        %v2402 = vld [vmem:[%s2360 + $0xa4] sm:$0xf]
        %v2403 = vld [vmem:[%s2360 + $0xa8] sm:$0xf]
        %v2404 = vld [vmem:[%s2360 + $0xac] sm:$0xf]
        %v2405 = vld [vmem:[%s2360 + $0xb0] sm:$0xf]
        %v2406 = vld [vmem:[%s2360 + $0xb4] sm:$0xf]
        %v2407 = vld [vmem:[%s2360 + $0xb8] sm:$0xf]
        %v2408 = vld [vmem:[%s2360 + $0xbc] sm:$0xf]
        %v2457 = vunpack.c.l.b16 %v2361
        %v2458 = vunpack.c.l.b16 %v2362
        %v2459 = vunpack.c.l.b16 %v2363
        %v2460 = vunpack.c.l.b16 %v2364
        %v2461 = vunpack.c.l.b16 %v2365
        %v2462 = vunpack.c.l.b16 %v2366
        %v2463 = vunpack.c.l.b16 %v2367
        %v2464 = vunpack.c.l.b16 %v2368
        %v2465 = vunpack.c.l.b16 %v2369
        %v2466 = vunpack.c.l.b16 %v2370
        %v2467 = vunpack.c.l.b16 %v2371
        %v2468 = vunpack.c.l.b16 %v2372
        %v2469 = vunpack.c.l.b16 %v2373
        %v2470 = vunpack.c.l.b16 %v2374
        %v2471 = vunpack.c.l.b16 %v2375
        %v2472 = vunpack.c.l.b16 %v2376
        %v2473 = vunpack.c.l.b16 %v2377
        %v2474 = vunpack.c.l.b16 %v2378
        %v2475 = vunpack.c.l.b16 %v2379
        %v2476 = vunpack.c.l.b16 %v2380
        %v2477 = vunpack.c.l.b16 %v2381
        %v2478 = vunpack.c.l.b16 %v2382
        %v2479 = vunpack.c.l.b16 %v2383
        %v2480 = vunpack.c.l.b16 %v2384
        %v2481 = vunpack.c.l.b16 %v2385
        %v2482 = vunpack.c.l.b16 %v2386
        %v2483 = vunpack.c.l.b16 %v2387
        %v2484 = vunpack.c.l.b16 %v2388
        %v2485 = vunpack.c.l.b16 %v2389
        %v2486 = vunpack.c.l.b16 %v2390
        %v2487 = vunpack.c.l.b16 %v2391
        %v2488 = vunpack.c.l.b16 %v2392
        %v2489 = vunpack.c.l.b16 %v2393
        %v2490 = vunpack.c.l.b16 %v2394
        %v2491 = vunpack.c.l.b16 %v2395
        %v2492 = vunpack.c.l.b16 %v2396
        %v2493 = vunpack.c.l.b16 %v2397
        %v2494 = vunpack.c.l.b16 %v2398
        %v2495 = vunpack.c.l.b16 %v2399
        %v2496 = vunpack.c.l.b16 %v2400
        %v2497 = vunpack.c.l.b16 %v2401
        %v2498 = vunpack.c.l.b16 %v2402
        %v2499 = vunpack.c.l.b16 %v2403
        %v2500 = vunpack.c.l.b16 %v2404
        %v2501 = vunpack.c.l.b16 %v2405
        %v2502 = vunpack.c.l.b16 %v2406
        %v2503 = vunpack.c.l.b16 %v2407
        %v2504 = vunpack.c.l.b16 %v2408
        %v2505 = vpack.c.b16 %v2458, %v2457
        %v2506 = vpack.c.b16 %v2460, %v2459
        %v2507 = vpack.c.b16 %v2462, %v2461
        %v2508 = vpack.c.b16 %v2464, %v2463
        %v2509 = vpack.c.b16 %v2466, %v2465
        %v2510 = vpack.c.b16 %v2468, %v2467
        %v2511 = vpack.c.b16 %v2470, %v2469
        %v2512 = vpack.c.b16 %v2472, %v2471
        %v2513 = vpack.c.b16 %v2474, %v2473
        %v2514 = vpack.c.b16 %v2476, %v2475
        %v2515 = vpack.c.b16 %v2478, %v2477
        %v2516 = vpack.c.b16 %v2480, %v2479
        %v2517 = vpack.c.b16 %v2482, %v2481
        %v2518 = vpack.c.b16 %v2484, %v2483
        %v2519 = vpack.c.b16 %v2486, %v2485
        %v2520 = vpack.c.b16 %v2488, %v2487
        %v2521 = vpack.c.b16 %v2490, %v2489
        %v2522 = vpack.c.b16 %v2492, %v2491
        %v2523 = vpack.c.b16 %v2494, %v2493
        %v2524 = vpack.c.b16 %v2496, %v2495
        %v2525 = vpack.c.b16 %v2498, %v2497
        %v2526 = vpack.c.b16 %v2500, %v2499
        %v2527 = vpack.c.b16 %v2502, %v2501
        %v2528 = vpack.c.b16 %v2504, %v2503
        %2553 = vmatprep.subr.bf16.mxu0 0
        %2554 = vmatpush1.bf16.msra.mxu0 %v2505
        %2555 = vmatprep.subr.bf16.mxu0 0
        %2556 = vmatpush1.bf16.msra.mxu0 %v2506
        %2557 = vmatprep.subr.bf16.mxu0 0
        %2558 = vmatpush1.bf16.msra.mxu0 %v2507
        %2559 = vmatprep.subr.bf16.mxu0 0
        %2560 = vmatpush1.bf16.msra.mxu0 %v2508
        %2561 = vmatprep.subr.bf16.mxu0 0
        %2562 = vmatpush1.bf16.msra.mxu0 %v2509
        %2563 = vmatprep.subr.bf16.mxu0 0
        %2564 = vmatpush1.bf16.msra.mxu0 %v2510
        %2565 = vmatprep.subr.bf16.mxu0 0
        %2566 = vmatpush1.bf16.msra.mxu0 %v2511
        %2567 = vmatprep.subr.bf16.mxu0 0
        %2568 = vmatpush1.bf16.msra.mxu0 %v2512
        %2569 = vmatprep.subr.bf16.mxu0 0
        %2570 = vmatpush1.bf16.msra.mxu0 %v2513
        %2571 = vmatprep.subr.bf16.mxu0 0
        %2572 = vmatpush1.bf16.msra.mxu0 %v2514
        %2573 = vmatprep.subr.bf16.mxu0 0
        %2574 = vmatpush1.bf16.msra.mxu0 %v2515
        %2575 = vmatprep.subr.bf16.mxu0 0
        %2576 = vmatpush1.bf16.msra.mxu0 %v2516
        %2577 = vmatprep.subr.bf16.mxu0 0
        %2578 = vmatpush1.bf16.msra.mxu0 %v2517
        %2579 = vmatprep.subr.bf16.mxu0 0
        %2580 = vmatpush1.bf16.msra.mxu0 %v2518
        %2581 = vmatprep.subr.bf16.mxu0 0
        %2582 = vmatpush1.bf16.msra.mxu0 %v2519
        %2583 = vmatprep.subr.bf16.mxu0 0
        %2584 = vmatpush1.bf16.msra.mxu0 %v2520
        %2585 = vmatprep.mubr.bf16.mxu0 %v2313
        %2586 = vmatmul.mubr.bf16.gmra.mrb[0].mxu0 %v2312
        %v2587 = vpop.f32.mrb[0].mxu0
        %v2588 = vadd.f32 0.0, %v2587
        %v2589 = vpop.f32.mrb[0].mxu0
        %v2590 = vpop.f32.mrb[0].mxu0
        %v2591 = vadd.f32 0.0, %v2590
        %v2592 = vpop.f32.mrb[0].mxu0
        %2593 = vmatprep.mubr.bf16.mxu0 %v2316
        %2594 = vmatmul.mubr.bf16.gmra.mrb[0].mxu0 %v2315
        %v2595 = vpop.f32.mrb[0].mxu0
        %v2596 = vadd.f32 0.0, %v2595
        %v2597 = vpop.f32.mrb[0].mxu0
        %v2598 = vpop.f32.mrb[0].mxu0
        %v2599 = vadd.f32 0.0, %v2598
        %v2600 = vpop.f32.mrb[0].mxu0
        %2601 = vmatprep.mubr.bf16.mxu0 %v2319
        %2602 = vmatmul.mubr.bf16.gmra.mrb[0].mxu0 %v2318
        %v2603 = vpop.f32.mrb[0].mxu0
        %v2604 = vadd.f32 0.0, %v2603
        %v2605 = vpop.f32.mrb[0].mxu0
        %v2606 = vpop.f32.mrb[0].mxu0
        %v2607 = vadd.f32 0.0, %v2606
        %v2608 = vpop.f32.mrb[0].mxu0
        %2609 = vmatprep.mubr.bf16.mxu0 %v2322
        %2610 = vmatmul.mubr.bf16.gmra.mrb[0].mxu0 %v2321
        %v2611 = vpop.f32.mrb[0].mxu0
        %v2612 = vadd.f32 0.0, %v2611
        %v2613 = vpop.f32.mrb[0].mxu0
        %v2614 = vpop.f32.mrb[0].mxu0
        %v2615 = vadd.f32 0.0, %v2614
        %v2616 = vpop.f32.mrb[0].mxu0
        %2617 = vmatprep.mubr.bf16.mxu0 %v2325
        %2618 = vmatmul.mubr.bf16.gmra.mrb[0].mxu0 %v2324
        %v2619 = vpop.f32.mrb[0].mxu0
        %v2620 = vadd.f32 0.0, %v2619
        %v2621 = vpop.f32.mrb[0].mxu0
        %v2622 = vpop.f32.mrb[0].mxu0
        %v2623 = vadd.f32 0.0, %v2622
        %v2624 = vpop.f32.mrb[0].mxu0
        %2625 = vmatprep.mubr.bf16.mxu0 %v2328
        %2626 = vmatmul.mubr.bf16.gmra.mrb[0].mxu0 %v2327
        %v2627 = vpop.f32.mrb[0].mxu0
        %v2628 = vadd.f32 0.0, %v2627
        %v2629 = vpop.f32.mrb[0].mxu0
        %v2630 = vpop.f32.mrb[0].mxu0
        %v2631 = vadd.f32 0.0, %v2630
        %v2632 = vpop.f32.mrb[0].mxu0
        %2633 = vmatprep.mubr.bf16.mxu0 %v2331
        %2634 = vmatmul.mubr.bf16.gmra.mrb[0].mxu0 %v2330
        %v2635 = vpop.f32.mrb[0].mxu0
        %v2636 = vadd.f32 0.0, %v2635
        %v2637 = vpop.f32.mrb[0].mxu0
        %v2638 = vpop.f32.mrb[0].mxu0
        %v2639 = vadd.f32 0.0, %v2638
        %v2640 = vpop.f32.mrb[0].mxu0
        %2641 = vmatprep.mubr.bf16.mxu0 %v2334
        %2642 = vmatmul.mubr.bf16.gmra.mrb[0].mxu0 %v2333
        %v2643 = vpop.f32.mrb[0].mxu0
        %v2644 = vadd.f32 0.0, %v2643
        %v2645 = vpop.f32.mrb[0].mxu0
        %v2646 = vpop.f32.mrb[0].mxu0
        %v2647 = vadd.f32 0.0, %v2646
        %v2648 = vpop.f32.mrb[0].mxu0
        %2649 = vmatprep.mubr.bf16.mxu0 %v2337
        %2650 = vmatmul.mubr.bf16.gmra.mrb[0].mxu0 %v2336
        %v2651 = vpop.f32.mrb[0].mxu0
        %v2652 = vadd.f32 0.0, %v2651
        %v2653 = vpop.f32.mrb[0].mxu0
        %v2654 = vpop.f32.mrb[0].mxu0
        %v2655 = vadd.f32 0.0, %v2654
        %v2656 = vpop.f32.mrb[0].mxu0
        %2657 = vmatprep.mubr.bf16.mxu0 %v2340
        %2658 = vmatmul.mubr.bf16.gmra.mrb[0].mxu0 %v2339
        %v2659 = vpop.f32.mrb[0].mxu0
        %v2660 = vadd.f32 0.0, %v2659
        %v2661 = vpop.f32.mrb[0].mxu0
        %v2662 = vpop.f32.mrb[0].mxu0
        %v2663 = vadd.f32 0.0, %v2662
        %v2664 = vpop.f32.mrb[0].mxu0
        %2665 = vmatprep.mubr.bf16.mxu0 %v2343
        %2666 = vmatmul.mubr.bf16.gmra.mrb[0].mxu0 %v2342
        %v2667 = vpop.f32.mrb[0].mxu0
        %v2668 = vadd.f32 0.0, %v2667
        %v2669 = vpop.f32.mrb[0].mxu0
        %v2670 = vpop.f32.mrb[0].mxu0
        %v2671 = vadd.f32 0.0, %v2670
        %v2672 = vpop.f32.mrb[0].mxu0
        %2673 = vmatprep.mubr.bf16.mxu0 %v2346
        %2674 = vmatmul.mubr.bf16.gmra.mrb[0].mxu0 %v2345
        %v2675 = vpop.f32.mrb[0].mxu0
        %v2676 = vadd.f32 0.0, %v2675
        %v2677 = vpop.f32.mrb[0].mxu0
        %v2678 = vpop.f32.mrb[0].mxu0
        %v2679 = vadd.f32 0.0, %v2678
        %v2680 = vpop.f32.mrb[0].mxu0
        %2681 = vmatprep.mubr.bf16.mxu0 %v2349
        %2682 = vmatmul.mubr.bf16.gmra.mrb[0].mxu0 %v2348
        %v2683 = vpop.f32.mrb[0].mxu0
        %v2684 = vadd.f32 0.0, %v2683
        %v2685 = vpop.f32.mrb[0].mxu0
        %v2686 = vpop.f32.mrb[0].mxu0
        %v2687 = vadd.f32 0.0, %v2686
        %v2688 = vpop.f32.mrb[0].mxu0
        %2689 = vmatprep.mubr.bf16.mxu0 %v2352
        %2690 = vmatmul.mubr.bf16.gmra.mrb[0].mxu0 %v2351
        %v2691 = vpop.f32.mrb[0].mxu0
        %v2692 = vadd.f32 0.0, %v2691
        %v2693 = vpop.f32.mrb[0].mxu0
        %v2694 = vpop.f32.mrb[0].mxu0
        %v2695 = vadd.f32 0.0, %v2694
        %v2696 = vpop.f32.mrb[0].mxu0
        %2697 = vmatprep.mubr.bf16.mxu0 %v2355
        %2698 = vmatmul.mubr.bf16.gmra.mrb[0].mxu0 %v2354
        %v2699 = vpop.f32.mrb[0].mxu0
        %v2700 = vadd.f32 0.0, %v2699
        %v2701 = vpop.f32.mrb[0].mxu0
        %v2702 = vpop.f32.mrb[0].mxu0
        %v2703 = vadd.f32 0.0, %v2702
        %v2704 = vpop.f32.mrb[0].mxu0
        %2705 = vmatprep.mubr.bf16.mxu0 %v2358
        %2706 = vmatmul.mubr.bf16.gmra.mrb[0].mxu0 %v2357
        %v2707 = vpop.f32.mrb[0].mxu0
        %v2708 = vadd.f32 0.0, %v2707
        %v2709 = vpop.f32.mrb[0].mxu0
        %v2710 = vpop.f32.mrb[0].mxu0
        %v2711 = vadd.f32 0.0, %v2710
        %v2712 = vpop.f32.mrb[0].mxu0
        %2713 = vdwg.mxu0
        %2714 = vmatprep.subr.bf16.mxu0 0
        %2715 = vmatpush1.bf16.msra.mxu0 %v2521
        %2716 = vmatprep.subr.bf16.mxu0 0
        %2717 = vmatpush1.bf16.msra.mxu0 %v2522
        %2718 = vmatprep.subr.bf16.mxu0 0
        %2719 = vmatpush1.bf16.msra.mxu0 %v2523
        %2720 = vmatprep.subr.bf16.mxu0 0
        %2721 = vmatpush1.bf16.msra.mxu0 %v2524
        %2722 = vmatprep.subr.bf16.mxu0 0
        %2723 = vmatpush1.bf16.msra.mxu0 %v2525
        %2724 = vmatprep.subr.bf16.mxu0 0
        %2725 = vmatpush1.bf16.msra.mxu0 %v2526
        %2726 = vmatprep.subr.bf16.mxu0 0
        %2727 = vmatpush1.bf16.msra.mxu0 %v2527
        %2728 = vmatprep.subr.bf16.mxu0 0
        %2729 = vmatpush1.bf16.msra.mxu0 %v2528
        %2730 = vmatprep.subr.bf16.mxu0 0
        %2731 = vmatpush1.bf16.msra.mxu0 0
        %2732 = vmatprep.subr.bf16.mxu0 0
        %2733 = vmatpush1.bf16.msra.mxu0 0
        %2734 = vmatprep.subr.bf16.mxu0 0
        %2735 = vmatpush1.bf16.msra.mxu0 0
        %2736 = vmatprep.subr.bf16.mxu0 0
        %2737 = vmatpush1.bf16.msra.mxu0 0
        %2738 = vmatprep.subr.bf16.mxu0 0
        %2739 = vmatpush1.bf16.msra.mxu0 0
        %2740 = vmatprep.subr.bf16.mxu0 0
        %2741 = vmatpush1.bf16.msra.mxu0 0
        %2742 = vmatprep.subr.bf16.mxu0 0
        %2743 = vmatpush1.bf16.msra.mxu0 0
        %2744 = vmatprep.subr.bf16.mxu0 0
        %2745 = vmatpush1.bf16.msra.mxu0 0
        %2746 = vmatprep.mubr.bf16.mxu0 0
        %2747 = vmatmul.mubr.bf16.gmra.mrb[0].mxu0 %v2314
        %v2748 = vpop.f32.mrb[0].mxu0
        %v2749 = vadd.f32 %v2588, %v2748
        %v2750 = vpop.f32.mrb[0].mxu0
        %v2751 = vpop.f32.mrb[0].mxu0
        %v2752 = vadd.f32 %v2591, %v2751
        %v2753 = vpop.f32.mrb[0].mxu0
        %2754 = vmatprep.mubr.bf16.mxu0 0
        %2755 = vmatmul.mubr.bf16.gmra.mrb[0].mxu0 %v2317
        %v2756 = vpop.f32.mrb[0].mxu0
        %v2757 = vadd.f32 %v2596, %v2756
        %v2758 = vpop.f32.mrb[0].mxu0
        %v2759 = vpop.f32.mrb[0].mxu0
        %v2760 = vadd.f32 %v2599, %v2759
        %v2761 = vpop.f32.mrb[0].mxu0
        %2762 = vmatprep.mubr.bf16.mxu0 0
        %2763 = vmatmul.mubr.bf16.gmra.mrb[0].mxu0 %v2320
        %v2764 = vpop.f32.mrb[0].mxu0
        %v2765 = vadd.f32 %v2604, %v2764
        %v2766 = vpop.f32.mrb[0].mxu0
        %v2767 = vpop.f32.mrb[0].mxu0
        %v2768 = vadd.f32 %v2607, %v2767
        %v2769 = vpop.f32.mrb[0].mxu0
        %2770 = vmatprep.mubr.bf16.mxu0 0
        %2771 = vmatmul.mubr.bf16.gmra.mrb[0].mxu0 %v2323
        %v2772 = vpop.f32.mrb[0].mxu0
        %v2773 = vadd.f32 %v2612, %v2772
        %v2774 = vpop.f32.mrb[0].mxu0
        %v2775 = vpop.f32.mrb[0].mxu0
        %v2776 = vadd.f32 %v2615, %v2775
        %v2777 = vpop.f32.mrb[0].mxu0
        %2778 = vmatprep.mubr.bf16.mxu0 0
        %2779 = vmatmul.mubr.bf16.gmra.mrb[0].mxu0 %v2326
        %v2780 = vpop.f32.mrb[0].mxu0
        %v2781 = vadd.f32 %v2620, %v2780
        %v2782 = vpop.f32.mrb[0].mxu0
        %v2783 = vpop.f32.mrb[0].mxu0
        %v2784 = vadd.f32 %v2623, %v2783
        %v2785 = vpop.f32.mrb[0].mxu0
        %2786 = vmatprep.mubr.bf16.mxu0 0
        %2787 = vmatmul.mubr.bf16.gmra.mrb[0].mxu0 %v2329
        %v2788 = vpop.f32.mrb[0].mxu0
        %v2789 = vadd.f32 %v2628, %v2788
        %v2790 = vpop.f32.mrb[0].mxu0
        %v2791 = vpop.f32.mrb[0].mxu0
        %v2792 = vadd.f32 %v2631, %v2791
        %v2793 = vpop.f32.mrb[0].mxu0
        %2794 = vmatprep.mubr.bf16.mxu0 0
        %2795 = vmatmul.mubr.bf16.gmra.mrb[0].mxu0 %v2332
        %v2796 = vpop.f32.mrb[0].mxu0
        %v2797 = vadd.f32 %v2636, %v2796
        %v2798 = vpop.f32.mrb[0].mxu0
        %v2799 = vpop.f32.mrb[0].mxu0
        %v2800 = vadd.f32 %v2639, %v2799
        %v2801 = vpop.f32.mrb[0].mxu0
        %2802 = vmatprep.mubr.bf16.mxu0 0
        %2803 = vmatmul.mubr.bf16.gmra.mrb[0].mxu0 %v2335
        %v2804 = vpop.f32.mrb[0].mxu0
        %v2805 = vadd.f32 %v2644, %v2804
        %v2806 = vpop.f32.mrb[0].mxu0
        %v2807 = vpop.f32.mrb[0].mxu0
        %v2808 = vadd.f32 %v2647, %v2807
        %v2809 = vpop.f32.mrb[0].mxu0
        %2810 = vmatprep.mubr.bf16.mxu0 0
        %2811 = vmatmul.mubr.bf16.gmra.mrb[0].mxu0 %v2338
        %v2812 = vpop.f32.mrb[0].mxu0
        %v2813 = vadd.f32 %v2652, %v2812
        %v2814 = vpop.f32.mrb[0].mxu0
        %v2815 = vpop.f32.mrb[0].mxu0
        %v2816 = vadd.f32 %v2655, %v2815
        %v2817 = vpop.f32.mrb[0].mxu0
        %2818 = vmatprep.mubr.bf16.mxu0 0
        %2819 = vmatmul.mubr.bf16.gmra.mrb[0].mxu0 %v2341
        %v2820 = vpop.f32.mrb[0].mxu0
        %v2821 = vadd.f32 %v2660, %v2820
        %v2822 = vpop.f32.mrb[0].mxu0
        %v2823 = vpop.f32.mrb[0].mxu0
        %v2824 = vadd.f32 %v2663, %v2823
        %v2825 = vpop.f32.mrb[0].mxu0
        %2826 = vmatprep.mubr.bf16.mxu0 0
        %2827 = vmatmul.mubr.bf16.gmra.mrb[0].mxu0 %v2344
        %v2828 = vpop.f32.mrb[0].mxu0
        %v2829 = vadd.f32 %v2668, %v2828
        %v2830 = vpop.f32.mrb[0].mxu0
        %v2831 = vpop.f32.mrb[0].mxu0
        %v2832 = vadd.f32 %v2671, %v2831
        %v2833 = vpop.f32.mrb[0].mxu0
        %2834 = vmatprep.mubr.bf16.mxu0 0
        %2835 = vmatmul.mubr.bf16.gmra.mrb[0].mxu0 %v2347
        %v2836 = vpop.f32.mrb[0].mxu0
        %v2837 = vadd.f32 %v2676, %v2836
        %v2838 = vpop.f32.mrb[0].mxu0
        %v2839 = vpop.f32.mrb[0].mxu0
        %v2840 = vadd.f32 %v2679, %v2839
        %v2841 = vpop.f32.mrb[0].mxu0
        %2842 = vmatprep.mubr.bf16.mxu0 0
        %2843 = vmatmul.mubr.bf16.gmra.mrb[0].mxu0 %v2350
        %v2844 = vpop.f32.mrb[0].mxu0
        %v2845 = vadd.f32 %v2684, %v2844
        %v2846 = vpop.f32.mrb[0].mxu0
        %v2847 = vpop.f32.mrb[0].mxu0
        %v2848 = vadd.f32 %v2687, %v2847
        %v2849 = vpop.f32.mrb[0].mxu0
        %2850 = vmatprep.mubr.bf16.mxu0 0
        %2851 = vmatmul.mubr.bf16.gmra.mrb[0].mxu0 %v2353
        %v2852 = vpop.f32.mrb[0].mxu0
        %v2853 = vadd.f32 %v2692, %v2852
        %v2854 = vpop.f32.mrb[0].mxu0
        %v2855 = vpop.f32.mrb[0].mxu0
        %v2856 = vadd.f32 %v2695, %v2855
        %v2857 = vpop.f32.mrb[0].mxu0
        %2858 = vmatprep.mubr.bf16.mxu0 0
        %2859 = vmatmul.mubr.bf16.gmra.mrb[0].mxu0 %v2356
        %v2860 = vpop.f32.mrb[0].mxu0
        %v2861 = vadd.f32 %v2700, %v2860
        %v2862 = vpop.f32.mrb[0].mxu0
        %v2863 = vpop.f32.mrb[0].mxu0
        %v2864 = vadd.f32 %v2703, %v2863
        %v2865 = vpop.f32.mrb[0].mxu0
        %2866 = vmatprep.mubr.bf16.mxu0 0
        %2867 = vmatmul.mubr.bf16.gmra.mrb[0].mxu0 %v2359
        %v2868 = vpop.f32.mrb[0].mxu0
        %v2869 = vadd.f32 %v2708, %v2868
        %v2870 = vpop.f32.mrb[0].mxu0
        %v2871 = vpop.f32.mrb[0].mxu0
        %v2872 = vadd.f32 %v2711, %v2871
        %v2873 = vpop.f32.mrb[0].mxu0
        %2874 = vdwg.mxu0
        %v2875 = vadd.f32 %v2186, %v2749
        %v2876 = vadd.f32 %v2189, %v2752
        %v2877 = vadd.f32 %v2194, %v2757
        %v2878 = vadd.f32 %v2197, %v2760
        %v2879 = vadd.f32 %v2202, %v2765
        %v2880 = vadd.f32 %v2205, %v2768
        %v2881 = vadd.f32 %v2210, %v2773
        %v2882 = vadd.f32 %v2213, %v2776
        %v2883 = vadd.f32 %v2218, %v2781
        %v2884 = vadd.f32 %v2221, %v2784
        %v2885 = vadd.f32 %v2226, %v2789
        %v2886 = vadd.f32 %v2229, %v2792
        %v2887 = vadd.f32 %v2234, %v2797
        %v2888 = vadd.f32 %v2237, %v2800
        %v2889 = vadd.f32 %v2242, %v2805
        %v2890 = vadd.f32 %v2245, %v2808
        %v2891 = vadd.f32 %v2250, %v2813
        %v2892 = vadd.f32 %v2253, %v2816
        %v2893 = vadd.f32 %v2258, %v2821
        %v2894 = vadd.f32 %v2261, %v2824
        %v2895 = vadd.f32 %v2266, %v2829
        %v2896 = vadd.f32 %v2269, %v2832
        %v2897 = vadd.f32 %v2274, %v2837
        %v2898 = vadd.f32 %v2277, %v2840
        %v2899 = vadd.f32 %v2282, %v2845
        %v2900 = vadd.f32 %v2285, %v2848
        %v2901 = vadd.f32 %v2290, %v2853
        %v2902 = vadd.f32 %v2293, %v2856
        %v2903 = vadd.f32 %v2298, %v2861
        %v2904 = vadd.f32 %v2301, %v2864
        %v2905 = vadd.f32 %v2306, %v2869
        %v2906 = vadd.f32 %v2309, %v2872
        %v2907 = vld [vmem:[%s6] sm:$0x1]
        %v2909 = vlaneseq
        %v2910 = vshrl.u32 %v2909, 7
        %v2911 = vsub.s32 0, %v2910
        %v2912 = vrot.slane %v2907, %v2911
        %v2914 = vmul.f32 %v2875, %v2912
        %v2915 = vmul.f32 %v2876, %v2912
        %v2916 = vmul.f32 %v2877, %v2912
        %v2917 = vmul.f32 %v2878, %v2912
        %v2918 = vmul.f32 %v2879, %v2912
        %v2919 = vmul.f32 %v2880, %v2912
        %v2920 = vmul.f32 %v2881, %v2912
        %v2921 = vmul.f32 %v2882, %v2912
        %v2922 = vmul.f32 %v2883, %v2912
        %v2923 = vmul.f32 %v2884, %v2912
        %v2924 = vmul.f32 %v2885, %v2912
        %v2925 = vmul.f32 %v2886, %v2912
        %v2926 = vmul.f32 %v2887, %v2912
        %v2927 = vmul.f32 %v2888, %v2912
        %v2928 = vmul.f32 %v2889, %v2912
        %v2929 = vmul.f32 %v2890, %v2912
        %v2930 = vmul.f32 %v2891, %v2912
        %v2931 = vmul.f32 %v2892, %v2912
        %v2932 = vmul.f32 %v2893, %v2912
        %v2933 = vmul.f32 %v2894, %v2912
        %v2934 = vmul.f32 %v2895, %v2912
        %v2935 = vmul.f32 %v2896, %v2912
        %v2936 = vmul.f32 %v2897, %v2912
        %v2937 = vmul.f32 %v2898, %v2912
        %v2938 = vmul.f32 %v2899, %v2912
        %v2939 = vmul.f32 %v2900, %v2912
        %v2940 = vmul.f32 %v2901, %v2912
        %v2941 = vmul.f32 %v2902, %v2912
        %v2942 = vmul.f32 %v2903, %v2912
        %v2943 = vmul.f32 %v2904, %v2912
        %v2944 = vmul.f32 %v2905, %v2912
        %v2945 = vmul.f32 %v2906, %v2912
        %v2946 = vld [vmem:[%s7] sm:$0x1]
        %v2948 = vlaneseq
        %v2949 = vshrl.u32 %v2948, 7
        %v2950 = vsub.s32 0, %v2949
        %v2951 = vrot.slane %v2946, %v2950
        %v2953 = vadd.f32 %v2914, %v2951
        %v2954 = vadd.f32 %v2915, %v2951
        %v2955 = vadd.f32 %v2916, %v2951
        %v2956 = vadd.f32 %v2917, %v2951
        %v2957 = vadd.f32 %v2918, %v2951
        %v2958 = vadd.f32 %v2919, %v2951
        %v2959 = vadd.f32 %v2920, %v2951
        %v2960 = vadd.f32 %v2921, %v2951
        %v2961 = vadd.f32 %v2922, %v2951
        %v2962 = vadd.f32 %v2923, %v2951
        %v2963 = vadd.f32 %v2924, %v2951
        %v2964 = vadd.f32 %v2925, %v2951
        %v2965 = vadd.f32 %v2926, %v2951
        %v2966 = vadd.f32 %v2927, %v2951
        %v2967 = vadd.f32 %v2928, %v2951
        %v2968 = vadd.f32 %v2929, %v2951
        %v2969 = vadd.f32 %v2930, %v2951
        %v2970 = vadd.f32 %v2931, %v2951
        %v2971 = vadd.f32 %v2932, %v2951
        %v2972 = vadd.f32 %v2933, %v2951
        %v2973 = vadd.f32 %v2934, %v2951
        %v2974 = vadd.f32 %v2935, %v2951
        %v2975 = vadd.f32 %v2936, %v2951
        %v2976 = vadd.f32 %v2937, %v2951
        %v2977 = vadd.f32 %v2938, %v2951
        %v2978 = vadd.f32 %v2939, %v2951
        %v2979 = vadd.f32 %v2940, %v2951
        %v2980 = vadd.f32 %v2941, %v2951
        %v2981 = vadd.f32 %v2942, %v2951
        %v2982 = vadd.f32 %v2943, %v2951
        %v2983 = vadd.f32 %v2944, %v2951
        %v2984 = vadd.f32 %v2945, %v2951
        %vm2985 = vcmp.gt.f32.partialorder %v2953, 0.0
        %vm2986 = vcmp.gt.f32.partialorder %v2954, 0.0
        %vm2987 = vcmp.gt.f32.partialorder %v2955, 0.0
        %vm2988 = vcmp.gt.f32.partialorder %v2956, 0.0
        %vm2989 = vcmp.gt.f32.partialorder %v2957, 0.0
        %vm2990 = vcmp.gt.f32.partialorder %v2958, 0.0
        %vm2991 = vcmp.gt.f32.partialorder %v2959, 0.0
        %vm2992 = vcmp.gt.f32.partialorder %v2960, 0.0
        %vm2993 = vcmp.gt.f32.partialorder %v2961, 0.0
        %vm2994 = vcmp.gt.f32.partialorder %v2962, 0.0
        %vm2995 = vcmp.gt.f32.partialorder %v2963, 0.0
        %vm2996 = vcmp.gt.f32.partialorder %v2964, 0.0
        %vm2997 = vcmp.gt.f32.partialorder %v2965, 0.0
        %vm2998 = vcmp.gt.f32.partialorder %v2966, 0.0
        %vm2999 = vcmp.gt.f32.partialorder %v2967, 0.0
        %vm3000 = vcmp.gt.f32.partialorder %v2968, 0.0
        %vm3001 = vcmp.gt.f32.partialorder %v2969, 0.0
        %vm3002 = vcmp.gt.f32.partialorder %v2970, 0.0
        %vm3003 = vcmp.gt.f32.partialorder %v2971, 0.0
        %vm3004 = vcmp.gt.f32.partialorder %v2972, 0.0
        %vm3005 = vcmp.gt.f32.partialorder %v2973, 0.0
        %vm3006 = vcmp.gt.f32.partialorder %v2974, 0.0
        %vm3007 = vcmp.gt.f32.partialorder %v2975, 0.0
        %vm3008 = vcmp.gt.f32.partialorder %v2976, 0.0
        %vm3009 = vcmp.gt.f32.partialorder %v2977, 0.0
        %vm3010 = vcmp.gt.f32.partialorder %v2978, 0.0
        %vm3011 = vcmp.gt.f32.partialorder %v2979, 0.0
        %vm3012 = vcmp.gt.f32.partialorder %v2980, 0.0
        %vm3013 = vcmp.gt.f32.partialorder %v2981, 0.0
        %vm3014 = vcmp.gt.f32.partialorder %v2982, 0.0
        %vm3015 = vcmp.gt.f32.partialorder %v2983, 0.0
        %vm3016 = vcmp.gt.f32.partialorder %v2984, 0.0
        %v3017 = vmul.f32 %v2953, 0.01
        %v3018 = vmul.f32 %v2954, 0.01
        %v3019 = vmul.f32 %v2955, 0.01
        %v3020 = vmul.f32 %v2956, 0.01
        %v3021 = vmul.f32 %v2957, 0.01
        %v3022 = vmul.f32 %v2958, 0.01
        %v3023 = vmul.f32 %v2959, 0.01
        %v3024 = vmul.f32 %v2960, 0.01
        %v3025 = vmul.f32 %v2961, 0.01
        %v3026 = vmul.f32 %v2962, 0.01
        %v3027 = vmul.f32 %v2963, 0.01
        %v3028 = vmul.f32 %v2964, 0.01
        %v3029 = vmul.f32 %v2965, 0.01
        %v3030 = vmul.f32 %v2966, 0.01
        %v3031 = vmul.f32 %v2967, 0.01
        %v3032 = vmul.f32 %v2968, 0.01
        %v3033 = vmul.f32 %v2969, 0.01
        %v3034 = vmul.f32 %v2970, 0.01
        %v3035 = vmul.f32 %v2971, 0.01
        %v3036 = vmul.f32 %v2972, 0.01
        %v3037 = vmul.f32 %v2973, 0.01
        %v3038 = vmul.f32 %v2974, 0.01
        %v3039 = vmul.f32 %v2975, 0.01
        %v3040 = vmul.f32 %v2976, 0.01
        %v3041 = vmul.f32 %v2977, 0.01
        %v3042 = vmul.f32 %v2978, 0.01
        %v3043 = vmul.f32 %v2979, 0.01
        %v3044 = vmul.f32 %v2980, 0.01
        %v3045 = vmul.f32 %v2981, 0.01
        %v3046 = vmul.f32 %v2982, 0.01
        %v3047 = vmul.f32 %v2983, 0.01
        %v3048 = vmul.f32 %v2984, 0.01
        %v3049 = vsel %vm2985, %v2953, %v3017
        %v3050 = vsel %vm2986, %v2954, %v3018
        %v3051 = vsel %vm2987, %v2955, %v3019
        %v3052 = vsel %vm2988, %v2956, %v3020
        %v3053 = vsel %vm2989, %v2957, %v3021
        %v3054 = vsel %vm2990, %v2958, %v3022
        %v3055 = vsel %vm2991, %v2959, %v3023
        %v3056 = vsel %vm2992, %v2960, %v3024
        %v3057 = vsel %vm2993, %v2961, %v3025
        %v3058 = vsel %vm2994, %v2962, %v3026
        %v3059 = vsel %vm2995, %v2963, %v3027
        %v3060 = vsel %vm2996, %v2964, %v3028
        %v3061 = vsel %vm2997, %v2965, %v3029
        %v3062 = vsel %vm2998, %v2966, %v3030
        %v3063 = vsel %vm2999, %v2967, %v3031
        %v3064 = vsel %vm3000, %v2968, %v3032
        %v3065 = vsel %vm3001, %v2969, %v3033
        %v3066 = vsel %vm3002, %v2970, %v3034
        %v3067 = vsel %vm3003, %v2971, %v3035
        %v3068 = vsel %vm3004, %v2972, %v3036
        %v3069 = vsel %vm3005, %v2973, %v3037
        %v3070 = vsel %vm3006, %v2974, %v3038
        %v3071 = vsel %vm3007, %v2975, %v3039
        %v3072 = vsel %vm3008, %v2976, %v3040
        %v3073 = vsel %vm3009, %v2977, %v3041
        %v3074 = vsel %vm3010, %v2978, %v3042
        %v3075 = vsel %vm3011, %v2979, %v3043
        %v3076 = vsel %vm3012, %v2980, %v3044
        %v3077 = vsel %vm3013, %v2981, %v3045
        %v3078 = vsel %vm3014, %v2982, %v3046
        %v3079 = vsel %vm3015, %v2983, %v3047
        %v3080 = vsel %vm3016, %v2984, %v3048
        %v3081 = vadd.f32 %v421, %v3049
        %v3082 = vadd.f32 %v422, %v3050
        %v3083 = vadd.f32 %v423, %v3051
        %v3084 = vadd.f32 %v424, %v3052
        %v3085 = vadd.f32 %v425, %v3053
        %v3086 = vadd.f32 %v426, %v3054
        %v3087 = vadd.f32 %v427, %v3055
        %v3088 = vadd.f32 %v428, %v3056
        %v3089 = vadd.f32 %v429, %v3057
        %v3090 = vadd.f32 %v430, %v3058
        %v3091 = vadd.f32 %v431, %v3059
        %v3092 = vadd.f32 %v432, %v3060
        %v3093 = vadd.f32 %v433, %v3061
        %v3094 = vadd.f32 %v434, %v3062
        %v3095 = vadd.f32 %v435, %v3063
        %v3096 = vadd.f32 %v436, %v3064
        %v3097 = vadd.f32 %v437, %v3065
        %v3098 = vadd.f32 %v438, %v3066
        %v3099 = vadd.f32 %v439, %v3067
        %v3100 = vadd.f32 %v440, %v3068
        %v3101 = vadd.f32 %v441, %v3069
        %v3102 = vadd.f32 %v442, %v3070
        %v3103 = vadd.f32 %v443, %v3071
        %v3104 = vadd.f32 %v444, %v3072
        %v3105 = vadd.f32 %v445, %v3073
        %v3106 = vadd.f32 %v446, %v3074
        %v3107 = vadd.f32 %v447, %v3075
        %v3108 = vadd.f32 %v448, %v3076
        %v3109 = vadd.f32 %v449, %v3077
        %v3110 = vadd.f32 %v450, %v3078
        %v3111 = vadd.f32 %v451, %v3079
        %v3112 = vadd.f32 %v452, %v3080
        %3113 = vst [vmem:[%s416] sm:$0xff] %v3081
        %3114 = vst [vmem:[%s416 + $0x8] sm:$0xff] %v3082
        %3115 = vst [vmem:[%s416 + $0x10] sm:$0xff] %v3083
        %3116 = vst [vmem:[%s416 + $0x18] sm:$0xff] %v3084
        %3117 = vst [vmem:[%s416 + $0x20] sm:$0xff] %v3085
        %3118 = vst [vmem:[%s416 + $0x28] sm:$0xff] %v3086
        %3119 = vst [vmem:[%s416 + $0x30] sm:$0xff] %v3087
        %3120 = vst [vmem:[%s416 + $0x38] sm:$0xff] %v3088
        %3121 = vst [vmem:[%s416 + $0x40] sm:$0xff] %v3089
        %3122 = vst [vmem:[%s416 + $0x48] sm:$0xff] %v3090
        %3123 = vst [vmem:[%s416 + $0x50] sm:$0xff] %v3091
        %3124 = vst [vmem:[%s416 + $0x58] sm:$0xff] %v3092
        %3125 = vst [vmem:[%s416 + $0x60] sm:$0xff] %v3093
        %3126 = vst [vmem:[%s416 + $0x68] sm:$0xff] %v3094
        %3127 = vst [vmem:[%s416 + $0x70] sm:$0xff] %v3095
        %3128 = vst [vmem:[%s416 + $0x78] sm:$0xff] %v3096
        %3129 = vst [vmem:[%s416 + $0x80] sm:$0xff] %v3097
        %3130 = vst [vmem:[%s416 + $0x88] sm:$0xff] %v3098
        %3131 = vst [vmem:[%s416 + $0x90] sm:$0xff] %v3099
        %3132 = vst [vmem:[%s416 + $0x98] sm:$0xff] %v3100
        %3133 = vst [vmem:[%s416 + $0xa0] sm:$0xff] %v3101
        %3134 = vst [vmem:[%s416 + $0xa8] sm:$0xff] %v3102
        %3135 = vst [vmem:[%s416 + $0xb0] sm:$0xff] %v3103
        %3136 = vst [vmem:[%s416 + $0xb8] sm:$0xff] %v3104
        %3137 = vst [vmem:[%s416 + $0xc0] sm:$0xff] %v3105
        %3138 = vst [vmem:[%s416 + $0xc8] sm:$0xff] %v3106
        %3139 = vst [vmem:[%s416 + $0xd0] sm:$0xff] %v3107
        %3140 = vst [vmem:[%s416 + $0xd8] sm:$0xff] %v3108
        %3141 = vst [vmem:[%s416 + $0xe0] sm:$0xff] %v3109
        %3142 = vst [vmem:[%s416 + $0xe8] sm:$0xff] %v3110
        %3143 = vst [vmem:[%s416 + $0xf0] sm:$0xff] %v3111
        %3144 = vst [vmem:[%s416 + $0xf8] sm:$0xff] %v3112
        %s3145 = sand.u32 %s233, 1
        %s3146 = scalar_lea.sflag [#allocation5], %s3145
        %s3147 = sand.u32 %s233, 1
        %s3148 = smul.addr %s3147, 256
        %s3149 = scalar_lea.vmem [#allocation11], %s3148
        // Predicated region
        $region73: #{tpu_custom_call.1} parent=51 // pred_check
          %p3150 = pneg %p243
        $region74: #{tpu_custom_call.1} parent=51 // pred_check_branch
          %3152 = sbr.rel (%p3150) target = $region76
        $region75: #{tpu_custom_call.1} parent=51 // pred_region
          %s3153 = smul.u32 16, %s34
          %s3155 = ssub.s32 4096, 4096
          %3156 = vsyncadd %s3146, %s3155
          %s3157 = smul.addr %s3153, 2
          %s3158 = smul.addr %s33, 32
          %s3159 = sadd.s32 %s3157, %s3158
          %s3160 = smul.addr %s3159, 128
          %s3161 = scalar_lea.hbm %s8, %s3160
          %s3162 = sshll.u32 %s3149, 4
          %s3163 = int_to_ptr.vmem [resolvable:$true] %s3162
          %3168 = dma.vmem_to_hbm [thread:$0]  %s3163, 4096, %s3161, %s3146, 128, 128, 8
        $region76: #{tpu_custom_call.1} parent=51 // pred_fallthru
          _
      $region52: #{tpu_custom_call.1} parent=5 // pred_fallthru
        _
      %p3169 = scmp.le.s32.totalorder 2, %s24
      // Predicated region
      $region77: #{tpu_custom_call.1} parent=5 // pred_check
        %p3170 = pneg %p3169
      $region78: #{tpu_custom_call.1} parent=5 // pred_check_branch
        %3172 = sbr.rel (%p3170) target = $region80
      $region79: #{tpu_custom_call.1} parent=5 // pred_region
        %s3173 = ssub.s32 %s24, 2
        // Predicated region
        $region81: #{tpu_custom_call.1} parent=79 // pred_check
          %p3174 = pneg %p249
        $region82: #{tpu_custom_call.1} parent=79 // pred_check_branch
          %3176 = sbr.rel (%p3174) target = $region84
        $region83: #{tpu_custom_call.1} parent=79 // pred_region
          %s3177 = sand.u32 %s234, 1
          %s3178 = scalar_lea.sflag [#allocation5], %s3177
          %s3179 = sand.u32 %s234, 1
          %s3180 = smul.addr %s3179, 256
          %s3181 = scalar_lea.vmem [#allocation11], %s3180
          %3182 = dma.done %s3178, 4096
        $region84: #{tpu_custom_call.1} parent=79 // pred_fallthru
          _
      $region80: #{tpu_custom_call.1} parent=5 // pred_fallthru
        _
    $region6: #{tpu_custom_call.1} parent=1 // loop_footer
      %s28 = sadd.s32 1, %s24
    $region7: #{tpu_custom_call.1} parent=1 // loop_footer_branch
      %23 = sbr.rel target = $region3
    $region8: #{tpu_custom_call.1} parent=1 // loop_exit
      _
    %3183 = vsyncpa [#allocation4], 1
    %s3184 = scalar_lea.sflag [#allocation4], 1
    %3185 = vsyncpa %s3184, 1
    %3186 = vsyncpa [#allocation7], 1
    %s3187 = scalar_lea.sflag [#allocation7], 1
    %3188 = vsyncpa %s3187, 1
    %3189 = vsyncpa [#allocation10], 1
    %3190 = vsyncpa [#allocation5], 1
    %s3191 = scalar_lea.sflag [#allocation5], 1
    %3192 = vsyncpa %s3191, 1

</llo_original>
